<compile_context>
chip_gen: v7x
topology: tpu7x:2x2x1
jax: 0.10.0
libtpu: 0.0.40
codegen_flags: <defaults>
</compile_context>

<pallas_src>
import jax
import jax.numpy as jnp
from jax.experimental import pallas as pl
from jax.experimental.pallas import tpu as pltpu

IN_FEATURES = 768 * 2   # 1536
HIDDEN = 768


def mlp_kernel(x_ref, w1_ref, b1_ref, w2_ref, b2_ref, o_ref):
    # x arrives f32; cast to bf16 on the VPU so the MXU takes the native
    # single-pass bf16 path.  W1/W2 are already bf16 in HBM.
    x = x_ref[...].astype(jnp.bfloat16)
    h = jnp.dot(x, w1_ref[...], preferred_element_type=jnp.float32)
    h = jnp.maximum(h + b1_ref[...], 0.0)          # bias + ReLU (f32)
    # dropout(p=0.1) is identity at inference time.
    logits = jnp.dot(h.astype(jnp.bfloat16), w2_ref[...],
                     preferred_element_type=jnp.float32)
    o_ref[...] = (logits + b2_ref[...]).astype(o_ref.dtype)


def prepare_params(w1, b1, w2, b2):
    """One-time conversion to kernel-ready form (hoisted out of the call path):
    weights stored bf16, biases reshaped to 2-D f32 rows."""
    return (w1.astype(jnp.bfloat16),
            b1.reshape(1, HIDDEN).astype(jnp.float32),
            w2.astype(jnp.bfloat16),
            b2.reshape(1, -1).astype(jnp.float32))


def mmodel_forward(inputs, w1_bf, b1_2d, w2_bf, b2_2d):
    """inputs: (B, 1, 1536) float32. Returns logits (B, num_labels) float32."""
    x = jnp.squeeze(inputs, axis=1)               # (B, 1536), like .squeeze(1)
    B = x.shape[0]
    num_labels = w2_bf.shape[1]

    return pl.pallas_call(
        mlp_kernel,
        out_shape=jax.ShapeDtypeStruct((B, num_labels), jnp.float32),
        grid=(1,),
        in_specs=[
            pl.BlockSpec((B, IN_FEATURES), lambda i: (0, 0)),       # x   (f32)
            pl.BlockSpec((IN_FEATURES, HIDDEN), lambda i: (0, 0)),  # W1  (bf16)
            pl.BlockSpec((1, HIDDEN), lambda i: (0, 0)),            # b1  (f32)
            pl.BlockSpec((HIDDEN, num_labels), lambda i: (0, 0)),   # W2  (bf16)
            pl.BlockSpec((1, num_labels), lambda i: (0, 0)),        # b2  (f32)
        ],
        out_specs=pl.BlockSpec((B, num_labels), lambda i: (0, 0)),
        compiler_params=pltpu.CompilerParams(
            dimension_semantics=("arbitrary",),
        ),
    )(x, w1_bf, b1_2d, w2_bf, b2_2d)


def init_params(key, num_labels):
    """Deterministic params, torch.nn.Linear-style uniform init, stored as
    (in_features, out_features) for direct x @ W use."""
    k1, k2, k3, k4 = jax.random.split(key, 4)
    bound1 = 1.0 / (IN_FEATURES ** 0.5)
    w1 = jax.random.uniform(k1, (IN_FEATURES, HIDDEN), jnp.float32, -bound1, bound1)
    b1 = jax.random.uniform(k2, (HIDDEN,), jnp.float32, -bound1, bound1)
    bound2 = 1.0 / (HIDDEN ** 0.5)
    w2 = jax.random.uniform(k3, (HIDDEN, num_labels), jnp.float32, -bound2, bound2)
    b2 = jax.random.uniform(k4, (num_labels,), jnp.float32, -bound2, bound2)
    return w1, b1, w2, b2


if __name__ == "__main__":
    key = jax.random.PRNGKey(0)
    k_in, k_par = jax.random.split(key)

    B = 8
    NUM_LABELS = 8

    inputs = jax.random.normal(k_in, (B, 1, IN_FEATURES), jnp.float32)
    w1, b1, w2, b2 = init_params(k_par, NUM_LABELS)

    # One-time weight preparation (bf16 store, bias reshape) — outside call path.
    w1_bf, b1_2d, w2_bf, b2_2d = prepare_params(w1, b1, w2, b2)
    w1_bf, b1_2d, w2_bf, b2_2d = jax.block_until_ready((w1_bf, b1_2d, w2_bf, b2_2d))

    logits = mmodel_forward(inputs, w1_bf, b1_2d, w2_bf, b2_2d)
    logits = jax.block_until_ready(logits)

    # Reference in plain JAX with the same bf16 casts as the kernel so
    # tolerances stay tight (accumulation in f32 in both paths).
    x = jnp.squeeze(inputs, axis=1)
    h_ref = jnp.dot(x.astype(jnp.bfloat16), w1.astype(jnp.bfloat16),
                    preferred_element_type=jnp.float32) + b1
    h_ref = jnp.maximum(h_ref, 0.0)
    ref = jnp.dot(h_ref.astype(jnp.bfloat16), w2.astype(jnp.bfloat16),
                  preferred_element_type=jnp.float32) + b2

    assert logits.shape == (B, NUM_LABELS)
    assert jnp.allclose(logits, ref, atol=1e-2, rtol=1e-2)

    print("KERNEL_OK")
</pallas_src>

<mosaic_0001>
module attributes {stable_mosaic.version = 11 : i64} {
  func.func @mlp_kernel(%arg0: i32, %arg1: memref<8x1536xf32, #tpu.memory_space<vmem>>, %arg2: memref<1536x768xbf16, #tpu.memory_space<vmem>>, %arg3: memref<1x768xf32, #tpu.memory_space<vmem>>, %arg4: memref<768x8xbf16, #tpu.memory_space<vmem>>, %arg5: memref<1x8xf32, #tpu.memory_space<vmem>>, %arg6: memref<8x8xf32, #tpu.memory_space<vmem>>) attributes {dimension_semantics = [#tpu.dimension_semantics<arbitrary>], iteration_bounds = array<i64: 1>, scalar_prefetch = 0 : i64, scratch_operands = 0 : i64, tpu.core_type = #tpu.core_type<tc>, window_params = [{pipeline_mode = #tpu.pipeline_mode<synchronous>, transform_indices = @transform_0, window_bounds = array<i64: 8, 1536>}, {pipeline_mode = #tpu.pipeline_mode<synchronous>, transform_indices = @transform_1, window_bounds = array<i64: 1536, 768>}, {pipeline_mode = #tpu.pipeline_mode<synchronous>, transform_indices = @transform_2, window_bounds = array<i64: 1, 768>}, {pipeline_mode = #tpu.pipeline_mode<synchronous>, transform_indices = @transform_3, window_bounds = array<i64: 768, 8>}, {pipeline_mode = #tpu.pipeline_mode<synchronous>, transform_indices = @transform_4, window_bounds = array<i64: 1, 8>}, {pipeline_mode = #tpu.pipeline_mode<synchronous>, transform_indices = @transform_5, window_bounds = array<i64: 8, 8>}]} {
    %c0 = arith.constant 0 : index
    %c0_0 = arith.constant 0 : index
    %0 = vector.load %arg1[%c0, %c0_0] : memref<8x1536xf32, #tpu.memory_space<vmem>>, vector<8x1536xf32>
    %1 = arith.truncf %0 : vector<8x1536xf32> to vector<8x1536xbf16>
    %c0_1 = arith.constant 0 : index
    %c0_2 = arith.constant 0 : index
    %2 = vector.load %arg2[%c0_1, %c0_2] : memref<1536x768xbf16, #tpu.memory_space<vmem>>, vector<1536x768xbf16>
    %cst = arith.constant dense<0.000000e+00> : vector<8x768xf32>
    %3 = tpu.matmul %1, %2, %cst {dimension_numbers = #tpu.dot_dimension_numbers<[1], [0], [0], [1], [0, 0, 1, 1], [], []>} : vector<8x1536xbf16>, vector<1536x768xbf16>, vector<8x768xf32> -> vector<8x768xf32>
    %c0_3 = arith.constant 0 : index
    %c0_4 = arith.constant 0 : index
    %4 = vector.load %arg3[%c0_3, %c0_4] : memref<1x768xf32, #tpu.memory_space<vmem>>, vector<1x768xf32>
    %5 = vector.broadcast %4 : vector<1x768xf32> to vector<8x768xf32>
    %6 = arith.addf %3, %5 : vector<8x768xf32>
    %cst_5 = arith.constant 0.000000e+00 : f32
    %7 = vector.broadcast %cst_5 : f32 to vector<8x768xf32>
    %8 = arith.maximumf %6, %7 : vector<8x768xf32>
    %9 = arith.truncf %8 : vector<8x768xf32> to vector<8x768xbf16>
    %c0_6 = arith.constant 0 : index
    %c0_7 = arith.constant 0 : index
    %10 = vector.load %arg4[%c0_6, %c0_7] : memref<768x8xbf16, #tpu.memory_space<vmem>>, vector<768x8xbf16>
    %cst_8 = arith.constant dense<0.000000e+00> : vector<8x8xf32>
    %11 = tpu.matmul %9, %10, %cst_8 {dimension_numbers = #tpu.dot_dimension_numbers<[1], [0], [0], [1], [0, 0, 1, 1], [], []>} : vector<8x768xbf16>, vector<768x8xbf16>, vector<8x8xf32> -> vector<8x8xf32>
    %c0_9 = arith.constant 0 : index
    %c0_10 = arith.constant 0 : index
    %12 = vector.load %arg5[%c0_9, %c0_10] : memref<1x8xf32, #tpu.memory_space<vmem>>, vector<1x8xf32>
    %13 = vector.broadcast %12 : vector<1x8xf32> to vector<8x8xf32>
    %14 = arith.addf %11, %13 : vector<8x8xf32>
    %c0_11 = arith.constant 0 : index
    %c0_12 = arith.constant 0 : index
    %15 = vector.load %arg6[%c0_11, %c0_12] : memref<8x8xf32, #tpu.memory_space<vmem>>, vector<8x8xf32>
    tpu.vector_store %arg6[%c0_11, %c0_12], %14 {strides = array<i32>} : memref<8x8xf32, #tpu.memory_space<vmem>>, vector<8x8xf32>,
    return
  }
  func.func @transform_0(%arg0: i32) -> (i32, i32) {
    %c0_i32 = arith.constant 0 : i32
    %c0_i32_0 = arith.constant 0 : i32
    %c0_i32_1 = arith.constant 0 : i32
    return %c0_i32, %c0_i32_0 : i32, i32
  }
  func.func @transform_1(%arg0: i32) -> (i32, i32) {
    %c0_i32 = arith.constant 0 : i32
    %c0_i32_0 = arith.constant 0 : i32
    %c0_i32_1 = arith.constant 0 : i32
    return %c0_i32, %c0_i32_0 : i32, i32
  }
  func.func @transform_2(%arg0: i32) -> (i32, i32) {
    %c0_i32 = arith.constant 0 : i32
    %c0_i32_0 = arith.constant 0 : i32
    %c0_i32_1 = arith.constant 0 : i32
    return %c0_i32, %c0_i32_0 : i32, i32
  }
  func.func @transform_3(%arg0: i32) -> (i32, i32) {
    %c0_i32 = arith.constant 0 : i32
    %c0_i32_0 = arith.constant 0 : i32
    %c0_i32_1 = arith.constant 0 : i32
    return %c0_i32, %c0_i32_0 : i32, i32
  }
  func.func @transform_4(%arg0: i32) -> (i32, i32) {
    %c0_i32 = arith.constant 0 : i32
    %c0_i32_0 = arith.constant 0 : i32
    %c0_i32_1 = arith.constant 0 : i32
    return %c0_i32, %c0_i32_0 : i32, i32
  }
  func.func @transform_5(%arg0: i32) -> (i32, i32) {
    %c0_i32 = arith.constant 0 : i32
    %c0_i32_0 = arith.constant 0 : i32
    %c0_i32_1 = arith.constant 0 : i32
    return %c0_i32, %c0_i32_0 : i32, i32
  }
}

</mosaic_0001>

<llo_original>
// kernel: tpu_custom_call.1
$region0: #{tpu_custom_call.1}
  #allocation0 [shape = 'u32[]', space=smem, size = 0x4, offset = 0x4, fixed_abs, tag = 'smem constant byte address 0x4 - core index']
  #allocation1 [shape = 'u32[144,128]{1,0:T(1,128)}', space=vmem, size = 0x12000, scoped, tag = 'internal scratch']
  %s0 = inlined_call_operand.hbm [shape: f32[8,1536], index: 0, kind: input, shape index: {}]
  %s1 = inlined_call_operand.hbm [shape: bf16[1536,768], index: 1, kind: input, shape index: {}]
  %s2 = inlined_call_operand.hbm [shape: f32[1,768], index: 2, kind: input, shape index: {}]
  %s3 = inlined_call_operand.vmem [shape: bf16[768,8], index: 3, kind: input, shape index: {}]
  %s4 = inlined_call_operand.hbm [shape: f32[1,8], index: 4, kind: input, shape index: {}]
  %s5 = inlined_call_operand.hbm [shape: f32[8,8], index: 5, kind: output, shape index: {}]
  %s6 = sld [smem:[#allocation0]]
  $region46: #{tpu_custom_call.1} parent=0
    _
  %s8 = ssub.s32 1, %s6
  %s9 = scalar_select 0, %s8, %s6
  $region1: #{tpu_custom_call.1} parent=0
    #allocation2 [shape = 'u8[49152]{0}', space=vmem, size = 0xc000, scoped, tag = 'input window, operand 0, single buffered']
    #allocation3 [shape = 's32[1]{0}', space=sflag, size = 0x4, scoped, tag = 'scoped memory for tpu_custom_call.1']
    #allocation4 [shape = 's32[1]{0}', space=sflag, size = 0x4, scoped, tag = 'scoped memory for tpu_custom_call.1']
    #allocation5 [shape = 'u8[2359296]{0}', space=vmem, size = 0x240000, scoped, tag = 'input window, operand 1, single buffered']
    #allocation6 [shape = 's32[1]{0}', space=sflag, size = 0x4, scoped, tag = 'scoped memory for tpu_custom_call.1']
    #allocation7 [shape = 'u8[3072]{0}', space=vmem, size = 0xc00, scoped, tag = 'input window, operand 2, single buffered']
    #allocation8 [shape = 'u8[512]{0}', space=vmem, size = 0x400, scoped, tag = 'input window, operand 4, single buffered']
    #allocation9 [shape = 's32[1]{0}', space=sflag, size = 0x4, scoped, tag = 'scoped memory for tpu_custom_call.1']
    #allocation10 [shape = 'u8[4096]{0}', space=vmem, size = 0x1000, scoped, tag = 'output window, operand 0, single buffered']
    %10 = vsyncpa [#allocation3], 0
    %11 = vsyncpa [#allocation6], 0
    %12 = vsyncpa [#allocation9], 0
    %13 = vsyncpa [#allocation4], 0
    // Predicated region
    $region2: #{tpu_custom_call.1} parent=1 // pred_check
      _
    $region3: #{tpu_custom_call.1} parent=1 // pred_check_branch
      %15 = sbr.rel (0) target = $region5
    $region4: #{tpu_custom_call.1} parent=1 // pred_region
      %s17 = ssub.s32 1536, 1536
      %18 = vsyncadd [#allocation3], %s17
      %s20 = sshll.u32 [#allocation2], 4
      %s21 = int_to_ptr.vmem [resolvable:$true] %s20
      %23 = dma.hbm_to_vmem [thread:$0]  %s0, 1536, %s21, [#allocation3]
    $region5: #{tpu_custom_call.1} parent=1 // pred_fallthru
      _
    // Predicated region
    $region6: #{tpu_custom_call.1} parent=1 // pred_check
      _
    $region7: #{tpu_custom_call.1} parent=1 // pred_check_branch
      %25 = sbr.rel (0) target = $region9
    $region8: #{tpu_custom_call.1} parent=1 // pred_region
      %s27 = ssub.s32 73728, 73728
      %28 = vsyncadd [#allocation6], %s27
      %s29 = sshll.u32 [#allocation5], 4
      %s30 = int_to_ptr.vmem [resolvable:$true] %s29
      %35 = dma.hbm_to_vmem [thread:$0]  %s1, 73728, %s30, [#allocation6], 384, 384, 24
    $region9: #{tpu_custom_call.1} parent=1 // pred_fallthru
      _
    // Predicated region
    $region10: #{tpu_custom_call.1} parent=1 // pred_check
      _
    $region11: #{tpu_custom_call.1} parent=1 // pred_check_branch
      %37 = sbr.rel (0) target = $region13
    $region12: #{tpu_custom_call.1} parent=1 // pred_region
      %s39 = ssub.s32 96, 96
      %40 = vsyncadd [#allocation6], %s39
      %s42 = sshll.u32 [#allocation7], 4
      %s43 = int_to_ptr.vmem [resolvable:$true] %s42
      %45 = dma.hbm_to_vmem [thread:$0]  %s2, 96, %s43, [#allocation6]
    $region13: #{tpu_custom_call.1} parent=1 // pred_fallthru
      _
    // Predicated region
    $region14: #{tpu_custom_call.1} parent=1 // pred_check
      _
    $region15: #{tpu_custom_call.1} parent=1 // pred_check_branch
      %47 = sbr.rel (0) target = $region17
    $region16: #{tpu_custom_call.1} parent=1 // pred_region
      _
    $region17: #{tpu_custom_call.1} parent=1 // pred_fallthru
      _
    // Predicated region
    $region18: #{tpu_custom_call.1} parent=1 // pred_check
      _
    $region19: #{tpu_custom_call.1} parent=1 // pred_check_branch
      %49 = sbr.rel (0) target = $region21
    $region20: #{tpu_custom_call.1} parent=1 // pred_region
      %s51 = ssub.s32 16, 16
      %52 = vsyncadd [#allocation9], %s51
      %s54 = sshll.u32 [#allocation8], 4
      %s55 = int_to_ptr.vmem [resolvable:$true] %s54
      %57 = dma.hbm_to_vmem [thread:$0]  %s4, 16, %s55, [#allocation9]
    $region21: #{tpu_custom_call.1} parent=1 // pred_fallthru
      _
    // Predicated region
    $region22: #{tpu_custom_call.1} parent=1 // pred_check
      _
    $region23: #{tpu_custom_call.1} parent=1 // pred_check_branch
      %59 = sbr.rel (0) target = $region25
    $region24: #{tpu_custom_call.1} parent=1 // pred_region
      %60 = dma.done [#allocation3], 1536
    $region25: #{tpu_custom_call.1} parent=1 // pred_fallthru
      _
    // Predicated region
    $region26: #{tpu_custom_call.1} parent=1 // pred_check
      _
    $region27: #{tpu_custom_call.1} parent=1 // pred_check_branch
      %62 = sbr.rel (0) target = $region29
    $region28: #{tpu_custom_call.1} parent=1 // pred_region
      %63 = dma.done [#allocation6], 73728
    $region29: #{tpu_custom_call.1} parent=1 // pred_fallthru
      _
    // Predicated region
    $region30: #{tpu_custom_call.1} parent=1 // pred_check
      _
    $region31: #{tpu_custom_call.1} parent=1 // pred_check_branch
      %65 = sbr.rel (0) target = $region33
    $region32: #{tpu_custom_call.1} parent=1 // pred_region
      %66 = dma.done [#allocation6], 96
    $region33: #{tpu_custom_call.1} parent=1 // pred_fallthru
      _
    // Predicated region
    $region34: #{tpu_custom_call.1} parent=1 // pred_check
      _
    $region35: #{tpu_custom_call.1} parent=1 // pred_check_branch
      %68 = sbr.rel (0) target = $region37
    $region36: #{tpu_custom_call.1} parent=1 // pred_region
      %69 = dma.done [#allocation9], 16
    $region37: #{tpu_custom_call.1} parent=1 // pred_fallthru
      _
    %v71 = vld [vmem:[#allocation2] sm:$0xff]
    %v72 = vld [vmem:[#allocation2 + $0x8] sm:$0xff]
    %v73 = vld [vmem:[#allocation2 + $0x10] sm:$0xff]
    %v74 = vld [vmem:[#allocation2 + $0x18] sm:$0xff]
    %v75 = vld [vmem:[#allocation2 + $0x20] sm:$0xff]
    %v76 = vld [vmem:[#allocation2 + $0x28] sm:$0xff]
    %v77 = vld [vmem:[#allocation2 + $0x30] sm:$0xff]
    %v78 = vld [vmem:[#allocation2 + $0x38] sm:$0xff]
    %v79 = vld [vmem:[#allocation2 + $0x40] sm:$0xff]
    %v80 = vld [vmem:[#allocation2 + $0x48] sm:$0xff]
    %v81 = vld [vmem:[#allocation2 + $0x50] sm:$0xff]
    %v82 = vld [vmem:[#allocation2 + $0x58] sm:$0xff]
    %v83 = vpack.c.bf16 %v71, %v71
    %v84 = vpack.c.bf16 %v72, %v72
    %v85 = vpack.c.bf16 %v73, %v73
    %v86 = vpack.c.bf16 %v74, %v74
    %v87 = vpack.c.bf16 %v75, %v75
    %v88 = vpack.c.bf16 %v76, %v76
    %v89 = vpack.c.bf16 %v77, %v77
    %v90 = vpack.c.bf16 %v78, %v78
    %v91 = vpack.c.bf16 %v79, %v79
    %v92 = vpack.c.bf16 %v80, %v80
    %v93 = vpack.c.bf16 %v81, %v81
    %v94 = vpack.c.bf16 %v82, %v82
    %v95 = vld [vmem:[#allocation5] sm:$0xff]
    %v96 = vld [vmem:[#allocation5 + $0x8] sm:$0xff]
    %v97 = vld [vmem:[#allocation5 + $0x10] sm:$0xff]
    %v98 = vld [vmem:[#allocation5 + $0x18] sm:$0xff]
    %v99 = vld [vmem:[#allocation5 + $0x20] sm:$0xff]
    %v100 = vld [vmem:[#allocation5 + $0x28] sm:$0xff]
    %v101 = vld [vmem:[#allocation5 + $0x30] sm:$0xff]
    %v102 = vld [vmem:[#allocation5 + $0x38] sm:$0xff]
    %v103 = vld [vmem:[#allocation5 + $0x40] sm:$0xff]
    %v104 = vld [vmem:[#allocation5 + $0x48] sm:$0xff]
    %v105 = vld [vmem:[#allocation5 + $0x50] sm:$0xff]
    %v106 = vld [vmem:[#allocation5 + $0x58] sm:$0xff]
    %v107 = vld [vmem:[#allocation5 + $0x60] sm:$0xff]
    %v108 = vld [vmem:[#allocation5 + $0x68] sm:$0xff]
    %v109 = vld [vmem:[#allocation5 + $0x70] sm:$0xff]
    %v110 = vld [vmem:[#allocation5 + $0x78] sm:$0xff]
    %v111 = vld [vmem:[#allocation5 + $0x80] sm:$0xff]
    %v112 = vld [vmem:[#allocation5 + $0x88] sm:$0xff]
    %v113 = vld [vmem:[#allocation5 + $0x90] sm:$0xff]
    %v114 = vld [vmem:[#allocation5 + $0x98] sm:$0xff]
    %v115 = vld [vmem:[#allocation5 + $0xa0] sm:$0xff]
    %v116 = vld [vmem:[#allocation5 + $0xa8] sm:$0xff]
    %v117 = vld [vmem:[#allocation5 + $0xb0] sm:$0xff]
    %v118 = vld [vmem:[#allocation5 + $0xb8] sm:$0xff]
    %v119 = vld [vmem:[#allocation5 + $0xc0] sm:$0xff]
    %v120 = vld [vmem:[#allocation5 + $0xc8] sm:$0xff]
    %v121 = vld [vmem:[#allocation5 + $0xd0] sm:$0xff]
    %v122 = vld [vmem:[#allocation5 + $0xd8] sm:$0xff]
    %v123 = vld [vmem:[#allocation5 + $0xe0] sm:$0xff]
    %v124 = vld [vmem:[#allocation5 + $0xe8] sm:$0xff]
    %v125 = vld [vmem:[#allocation5 + $0xf0] sm:$0xff]
    %v126 = vld [vmem:[#allocation5 + $0xf8] sm:$0xff]
    %v127 = vld [vmem:[#allocation5 + $0x100] sm:$0xff]
    %v128 = vld [vmem:[#allocation5 + $0x108] sm:$0xff]
    %v129 = vld [vmem:[#allocation5 + $0x110] sm:$0xff]
    %v130 = vld [vmem:[#allocation5 + $0x118] sm:$0xff]
    %v131 = vld [vmem:[#allocation5 + $0x120] sm:$0xff]
    %v132 = vld [vmem:[#allocation5 + $0x128] sm:$0xff]
    %v133 = vld [vmem:[#allocation5 + $0x130] sm:$0xff]
    %v134 = vld [vmem:[#allocation5 + $0x138] sm:$0xff]
    %v135 = vld [vmem:[#allocation5 + $0x140] sm:$0xff]
    %v136 = vld [vmem:[#allocation5 + $0x148] sm:$0xff]
    %v137 = vld [vmem:[#allocation5 + $0x150] sm:$0xff]
    %v138 = vld [vmem:[#allocation5 + $0x158] sm:$0xff]
    %v139 = vld [vmem:[#allocation5 + $0x160] sm:$0xff]
    %v140 = vld [vmem:[#allocation5 + $0x168] sm:$0xff]
    %v141 = vld [vmem:[#allocation5 + $0x170] sm:$0xff]
    %v142 = vld [vmem:[#allocation5 + $0x178] sm:$0xff]
    %v143 = vld [vmem:[#allocation5 + $0x180] sm:$0xff]
    %v144 = vld [vmem:[#allocation5 + $0x188] sm:$0xff]
    %v145 = vld [vmem:[#allocation5 + $0x190] sm:$0xff]
    %v146 = vld [vmem:[#allocation5 + $0x198] sm:$0xff]
    %v147 = vld [vmem:[#allocation5 + $0x1a0] sm:$0xff]
    %v148 = vld [vmem:[#allocation5 + $0x1a8] sm:$0xff]
    %v149 = vld [vmem:[#allocation5 + $0x1b0] sm:$0xff]
    %v150 = vld [vmem:[#allocation5 + $0x1b8] sm:$0xff]
    %v151 = vld [vmem:[#allocation5 + $0x1c0] sm:$0xff]
    %v152 = vld [vmem:[#allocation5 + $0x1c8] sm:$0xff]
    %v153 = vld [vmem:[#allocation5 + $0x1d0] sm:$0xff]
    %v154 = vld [vmem:[#allocation5 + $0x1d8] sm:$0xff]
    %v155 = vld [vmem:[#allocation5 + $0x1e0] sm:$0xff]
    %v156 = vld [vmem:[#allocation5 + $0x1e8] sm:$0xff]
    %v157 = vld [vmem:[#allocation5 + $0x1f0] sm:$0xff]
    %v158 = vld [vmem:[#allocation5 + $0x1f8] sm:$0xff]
    %v159 = vld [vmem:[#allocation5 + $0x200] sm:$0xff]
    %v160 = vld [vmem:[#allocation5 + $0x208] sm:$0xff]
    %v161 = vld [vmem:[#allocation5 + $0x210] sm:$0xff]
    %v162 = vld [vmem:[#allocation5 + $0x218] sm:$0xff]
    %v163 = vld [vmem:[#allocation5 + $0x220] sm:$0xff]
    %v164 = vld [vmem:[#allocation5 + $0x228] sm:$0xff]
    %v165 = vld [vmem:[#allocation5 + $0x230] sm:$0xff]
    %v166 = vld [vmem:[#allocation5 + $0x238] sm:$0xff]
    %v167 = vld [vmem:[#allocation5 + $0x240] sm:$0xff]
    %v168 = vld [vmem:[#allocation5 + $0x248] sm:$0xff]
    %v169 = vld [vmem:[#allocation5 + $0x250] sm:$0xff]
    %v170 = vld [vmem:[#allocation5 + $0x258] sm:$0xff]
    %v171 = vld [vmem:[#allocation5 + $0x260] sm:$0xff]
    %v172 = vld [vmem:[#allocation5 + $0x268] sm:$0xff]
    %v173 = vld [vmem:[#allocation5 + $0x270] sm:$0xff]
    %v174 = vld [vmem:[#allocation5 + $0x278] sm:$0xff]
    %v175 = vld [vmem:[#allocation5 + $0x280] sm:$0xff]
    %v176 = vld [vmem:[#allocation5 + $0x288] sm:$0xff]
    %v177 = vld [vmem:[#allocation5 + $0x290] sm:$0xff]
    %v178 = vld [vmem:[#allocation5 + $0x298] sm:$0xff]
    %v179 = vld [vmem:[#allocation5 + $0x2a0] sm:$0xff]
    %v180 = vld [vmem:[#allocation5 + $0x2a8] sm:$0xff]
    %v181 = vld [vmem:[#allocation5 + $0x2b0] sm:$0xff]
    %v182 = vld [vmem:[#allocation5 + $0x2b8] sm:$0xff]
    %v183 = vld [vmem:[#allocation5 + $0x2c0] sm:$0xff]
    %v184 = vld [vmem:[#allocation5 + $0x2c8] sm:$0xff]
    %v185 = vld [vmem:[#allocation5 + $0x2d0] sm:$0xff]
    %v186 = vld [vmem:[#allocation5 + $0x2d8] sm:$0xff]
    %v187 = vld [vmem:[#allocation5 + $0x2e0] sm:$0xff]
    %v188 = vld [vmem:[#allocation5 + $0x2e8] sm:$0xff]
    %v189 = vld [vmem:[#allocation5 + $0x2f0] sm:$0xff]
    %v190 = vld [vmem:[#allocation5 + $0x2f8] sm:$0xff]
    %v191 = vld [vmem:[#allocation5 + $0x300] sm:$0xff]
    %v192 = vld [vmem:[#allocation5 + $0x308] sm:$0xff]
    %v193 = vld [vmem:[#allocation5 + $0x310] sm:$0xff]
    %v194 = vld [vmem:[#allocation5 + $0x318] sm:$0xff]
    %v195 = vld [vmem:[#allocation5 + $0x320] sm:$0xff]
    %v196 = vld [vmem:[#allocation5 + $0x328] sm:$0xff]
    %v197 = vld [vmem:[#allocation5 + $0x330] sm:$0xff]
    %v198 = vld [vmem:[#allocation5 + $0x338] sm:$0xff]
    %v199 = vld [vmem:[#allocation5 + $0x340] sm:$0xff]
    %v200 = vld [vmem:[#allocation5 + $0x348] sm:$0xff]
    %v201 = vld [vmem:[#allocation5 + $0x350] sm:$0xff]
    %v202 = vld [vmem:[#allocation5 + $0x358] sm:$0xff]
    %v203 = vld [vmem:[#allocation5 + $0x360] sm:$0xff]
    %v204 = vld [vmem:[#allocation5 + $0x368] sm:$0xff]
    %v205 = vld [vmem:[#allocation5 + $0x370] sm:$0xff]
    %v206 = vld [vmem:[#allocation5 + $0x378] sm:$0xff]
    %v207 = vld [vmem:[#allocation5 + $0x380] sm:$0xff]
    %v208 = vld [vmem:[#allocation5 + $0x388] sm:$0xff]
    %v209 = vld [vmem:[#allocation5 + $0x390] sm:$0xff]
    %v210 = vld [vmem:[#allocation5 + $0x398] sm:$0xff]
    %v211 = vld [vmem:[#allocation5 + $0x3a0] sm:$0xff]
    %v212 = vld [vmem:[#allocation5 + $0x3a8] sm:$0xff]
    %v213 = vld [vmem:[#allocation5 + $0x3b0] sm:$0xff]
    %v214 = vld [vmem:[#allocation5 + $0x3b8] sm:$0xff]
    %v215 = vld [vmem:[#allocation5 + $0x3c0] sm:$0xff]
    %v216 = vld [vmem:[#allocation5 + $0x3c8] sm:$0xff]
    %v217 = vld [vmem:[#allocation5 + $0x3d0] sm:$0xff]
    %v218 = vld [vmem:[#allocation5 + $0x3d8] sm:$0xff]
    %v219 = vld [vmem:[#allocation5 + $0x3e0] sm:$0xff]
    %v220 = vld [vmem:[#allocation5 + $0x3e8] sm:$0xff]
    %v221 = vld [vmem:[#allocation5 + $0x3f0] sm:$0xff]
    %v222 = vld [vmem:[#allocation5 + $0x3f8] sm:$0xff]
    %v223 = vld [vmem:[#allocation5 + $0x400] sm:$0xff]
    %v224 = vld [vmem:[#allocation5 + $0x408] sm:$0xff]
    %v225 = vld [vmem:[#allocation5 + $0x410] sm:$0xff]
    %v226 = vld [vmem:[#allocation5 + $0x418] sm:$0xff]
    %v227 = vld [vmem:[#allocation5 + $0x420] sm:$0xff]
    %v228 = vld [vmem:[#allocation5 + $0x428] sm:$0xff]
    %v229 = vld [vmem:[#allocation5 + $0x430] sm:$0xff]
    %v230 = vld [vmem:[#allocation5 + $0x438] sm:$0xff]
    %v231 = vld [vmem:[#allocation5 + $0x440] sm:$0xff]
    %v232 = vld [vmem:[#allocation5 + $0x448] sm:$0xff]
    %v233 = vld [vmem:[#allocation5 + $0x450] sm:$0xff]
    %v234 = vld [vmem:[#allocation5 + $0x458] sm:$0xff]
    %v235 = vld [vmem:[#allocation5 + $0x460] sm:$0xff]
    %v236 = vld [vmem:[#allocation5 + $0x468] sm:$0xff]
    %v237 = vld [vmem:[#allocation5 + $0x470] sm:$0xff]
    %v238 = vld [vmem:[#allocation5 + $0x478] sm:$0xff]
    %v239 = vld [vmem:[#allocation5 + $0x480] sm:$0xff]
    %v240 = vld [vmem:[#allocation5 + $0x488] sm:$0xff]
    %v241 = vld [vmem:[#allocation5 + $0x490] sm:$0xff]
    %v242 = vld [vmem:[#allocation5 + $0x498] sm:$0xff]
    %v243 = vld [vmem:[#allocation5 + $0x4a0] sm:$0xff]
    %v244 = vld [vmem:[#allocation5 + $0x4a8] sm:$0xff]
    %v245 = vld [vmem:[#allocation5 + $0x4b0] sm:$0xff]
    %v246 = vld [vmem:[#allocation5 + $0x4b8] sm:$0xff]
    %v247 = vld [vmem:[#allocation5 + $0x4c0] sm:$0xff]
    %v248 = vld [vmem:[#allocation5 + $0x4c8] sm:$0xff]
    %v249 = vld [vmem:[#allocation5 + $0x4d0] sm:$0xff]
    %v250 = vld [vmem:[#allocation5 + $0x4d8] sm:$0xff]
    %v251 = vld [vmem:[#allocation5 + $0x4e0] sm:$0xff]
    %v252 = vld [vmem:[#allocation5 + $0x4e8] sm:$0xff]
    %v253 = vld [vmem:[#allocation5 + $0x4f0] sm:$0xff]
    %v254 = vld [vmem:[#allocation5 + $0x4f8] sm:$0xff]
    %v255 = vld [vmem:[#allocation5 + $0x500] sm:$0xff]
    %v256 = vld [vmem:[#allocation5 + $0x508] sm:$0xff]
    %v257 = vld [vmem:[#allocation5 + $0x510] sm:$0xff]
    %v258 = vld [vmem:[#allocation5 + $0x518] sm:$0xff]
    %v259 = vld [vmem:[#allocation5 + $0x520] sm:$0xff]
    %v260 = vld [vmem:[#allocation5 + $0x528] sm:$0xff]
    %v261 = vld [vmem:[#allocation5 + $0x530] sm:$0xff]
    %v262 = vld [vmem:[#allocation5 + $0x538] sm:$0xff]
    %v263 = vld [vmem:[#allocation5 + $0x540] sm:$0xff]
    %v264 = vld [vmem:[#allocation5 + $0x548] sm:$0xff]
    %v265 = vld [vmem:[#allocation5 + $0x550] sm:$0xff]
    %v266 = vld [vmem:[#allocation5 + $0x558] sm:$0xff]
    %v267 = vld [vmem:[#allocation5 + $0x560] sm:$0xff]
    %v268 = vld [vmem:[#allocation5 + $0x568] sm:$0xff]
    %v269 = vld [vmem:[#allocation5 + $0x570] sm:$0xff]
    %v270 = vld [vmem:[#allocation5 + $0x578] sm:$0xff]
    %v271 = vld [vmem:[#allocation5 + $0x580] sm:$0xff]
    %v272 = vld [vmem:[#allocation5 + $0x588] sm:$0xff]
    %v273 = vld [vmem:[#allocation5 + $0x590] sm:$0xff]
    %v274 = vld [vmem:[#allocation5 + $0x598] sm:$0xff]
    %v275 = vld [vmem:[#allocation5 + $0x5a0] sm:$0xff]
    %v276 = vld [vmem:[#allocation5 + $0x5a8] sm:$0xff]
    %v277 = vld [vmem:[#allocation5 + $0x5b0] sm:$0xff]
    %v278 = vld [vmem:[#allocation5 + $0x5b8] sm:$0xff]
    %v279 = vld [vmem:[#allocation5 + $0x5c0] sm:$0xff]
    %v280 = vld [vmem:[#allocation5 + $0x5c8] sm:$0xff]
    %v281 = vld [vmem:[#allocation5 + $0x5d0] sm:$0xff]
    %v282 = vld [vmem:[#allocation5 + $0x5d8] sm:$0xff]
    %v283 = vld [vmem:[#allocation5 + $0x5e0] sm:$0xff]
    %v284 = vld [vmem:[#allocation5 + $0x5e8] sm:$0xff]
    %v285 = vld [vmem:[#allocation5 + $0x5f0] sm:$0xff]
    %v286 = vld [vmem:[#allocation5 + $0x5f8] sm:$0xff]
    %v287 = vld [vmem:[#allocation5 + $0x600] sm:$0xff]
    %v288 = vld [vmem:[#allocation5 + $0x608] sm:$0xff]
    %v289 = vld [vmem:[#allocation5 + $0x610] sm:$0xff]
    %v290 = vld [vmem:[#allocation5 + $0x618] sm:$0xff]
    %v291 = vld [vmem:[#allocation5 + $0x620] sm:$0xff]
    %v292 = vld [vmem:[#allocation5 + $0x628] sm:$0xff]
    %v293 = vld [vmem:[#allocation5 + $0x630] sm:$0xff]
    %v294 = vld [vmem:[#allocation5 + $0x638] sm:$0xff]
    %v295 = vld [vmem:[#allocation5 + $0x640] sm:$0xff]
    %v296 = vld [vmem:[#allocation5 + $0x648] sm:$0xff]
    %v297 = vld [vmem:[#allocation5 + $0x650] sm:$0xff]
    %v298 = vld [vmem:[#allocation5 + $0x658] sm:$0xff]
    %v299 = vld [vmem:[#allocation5 + $0x660] sm:$0xff]
    %v300 = vld [vmem:[#allocation5 + $0x668] sm:$0xff]
    %v301 = vld [vmem:[#allocation5 + $0x670] sm:$0xff]
    %v302 = vld [vmem:[#allocation5 + $0x678] sm:$0xff]
    %v303 = vld [vmem:[#allocation5 + $0x680] sm:$0xff]
    %v304 = vld [vmem:[#allocation5 + $0x688] sm:$0xff]
    %v305 = vld [vmem:[#allocation5 + $0x690] sm:$0xff]
    %v306 = vld [vmem:[#allocation5 + $0x698] sm:$0xff]
    %v307 = vld [vmem:[#allocation5 + $0x6a0] sm:$0xff]
    %v308 = vld [vmem:[#allocation5 + $0x6a8] sm:$0xff]
    %v309 = vld [vmem:[#allocation5 + $0x6b0] sm:$0xff]
    %v310 = vld [vmem:[#allocation5 + $0x6b8] sm:$0xff]
    %v311 = vld [vmem:[#allocation5 + $0x6c0] sm:$0xff]
    %v312 = vld [vmem:[#allocation5 + $0x6c8] sm:$0xff]
    %v313 = vld [vmem:[#allocation5 + $0x6d0] sm:$0xff]
    %v314 = vld [vmem:[#allocation5 + $0x6d8] sm:$0xff]
    %v315 = vld [vmem:[#allocation5 + $0x6e0] sm:$0xff]
    %v316 = vld [vmem:[#allocation5 + $0x6e8] sm:$0xff]
    %v317 = vld [vmem:[#allocation5 + $0x6f0] sm:$0xff]
    %v318 = vld [vmem:[#allocation5 + $0x6f8] sm:$0xff]
    %v319 = vld [vmem:[#allocation5 + $0x700] sm:$0xff]
    %v320 = vld [vmem:[#allocation5 + $0x708] sm:$0xff]
    %v321 = vld [vmem:[#allocation5 + $0x710] sm:$0xff]
    %v322 = vld [vmem:[#allocation5 + $0x718] sm:$0xff]
    %v323 = vld [vmem:[#allocation5 + $0x720] sm:$0xff]
    %v324 = vld [vmem:[#allocation5 + $0x728] sm:$0xff]
    %v325 = vld [vmem:[#allocation5 + $0x730] sm:$0xff]
    %v326 = vld [vmem:[#allocation5 + $0x738] sm:$0xff]
    %v327 = vld [vmem:[#allocation5 + $0x740] sm:$0xff]
    %v328 = vld [vmem:[#allocation5 + $0x748] sm:$0xff]
    %v329 = vld [vmem:[#allocation5 + $0x750] sm:$0xff]
    %v330 = vld [vmem:[#allocation5 + $0x758] sm:$0xff]
    %v331 = vld [vmem:[#allocation5 + $0x760] sm:$0xff]
    %v332 = vld [vmem:[#allocation5 + $0x768] sm:$0xff]
    %v333 = vld [vmem:[#allocation5 + $0x770] sm:$0xff]
    %v334 = vld [vmem:[#allocation5 + $0x778] sm:$0xff]
    %v335 = vld [vmem:[#allocation5 + $0x780] sm:$0xff]
    %v336 = vld [vmem:[#allocation5 + $0x788] sm:$0xff]
    %v337 = vld [vmem:[#allocation5 + $0x790] sm:$0xff]
    %v338 = vld [vmem:[#allocation5 + $0x798] sm:$0xff]
    %v339 = vld [vmem:[#allocation5 + $0x7a0] sm:$0xff]
    %v340 = vld [vmem:[#allocation5 + $0x7a8] sm:$0xff]
    %v341 = vld [vmem:[#allocation5 + $0x7b0] sm:$0xff]
    %v342 = vld [vmem:[#allocation5 + $0x7b8] sm:$0xff]
    %v343 = vld [vmem:[#allocation5 + $0x7c0] sm:$0xff]
    %v344 = vld [vmem:[#allocation5 + $0x7c8] sm:$0xff]
    %v345 = vld [vmem:[#allocation5 + $0x7d0] sm:$0xff]
    %v346 = vld [vmem:[#allocation5 + $0x7d8] sm:$0xff]
    %v347 = vld [vmem:[#allocation5 + $0x7e0] sm:$0xff]
    %v348 = vld [vmem:[#allocation5 + $0x7e8] sm:$0xff]
    %v349 = vld [vmem:[#allocation5 + $0x7f0] sm:$0xff]
    %v350 = vld [vmem:[#allocation5 + $0x7f8] sm:$0xff]
    %v351 = vld [vmem:[#allocation5 + $0x800] sm:$0xff]
    %v352 = vld [vmem:[#allocation5 + $0x808] sm:$0xff]
    %v353 = vld [vmem:[#allocation5 + $0x810] sm:$0xff]
    %v354 = vld [vmem:[#allocation5 + $0x818] sm:$0xff]
    %v355 = vld [vmem:[#allocation5 + $0x820] sm:$0xff]
    %v356 = vld [vmem:[#allocation5 + $0x828] sm:$0xff]
    %v357 = vld [vmem:[#allocation5 + $0x830] sm:$0xff]
    %v358 = vld [vmem:[#allocation5 + $0x838] sm:$0xff]
    %v359 = vld [vmem:[#allocation5 + $0x840] sm:$0xff]
    %v360 = vld [vmem:[#allocation5 + $0x848] sm:$0xff]
    %v361 = vld [vmem:[#allocation5 + $0x850] sm:$0xff]
    %v362 = vld [vmem:[#allocation5 + $0x858] sm:$0xff]
    %v363 = vld [vmem:[#allocation5 + $0x860] sm:$0xff]
    %v364 = vld [vmem:[#allocation5 + $0x868] sm:$0xff]
    %v365 = vld [vmem:[#allocation5 + $0x870] sm:$0xff]
    %v366 = vld [vmem:[#allocation5 + $0x878] sm:$0xff]
    %v367 = vld [vmem:[#allocation5 + $0x880] sm:$0xff]
    %v368 = vld [vmem:[#allocation5 + $0x888] sm:$0xff]
    %v369 = vld [vmem:[#allocation5 + $0x890] sm:$0xff]
    %v370 = vld [vmem:[#allocation5 + $0x898] sm:$0xff]
    %v371 = vld [vmem:[#allocation5 + $0x8a0] sm:$0xff]
    %v372 = vld [vmem:[#allocation5 + $0x8a8] sm:$0xff]
    %v373 = vld [vmem:[#allocation5 + $0x8b0] sm:$0xff]
    %v374 = vld [vmem:[#allocation5 + $0x8b8] sm:$0xff]
    %v375 = vld [vmem:[#allocation5 + $0x8c0] sm:$0xff]
    %v376 = vld [vmem:[#allocation5 + $0x8c8] sm:$0xff]
    %v377 = vld [vmem:[#allocation5 + $0x8d0] sm:$0xff]
    %v378 = vld [vmem:[#allocation5 + $0x8d8] sm:$0xff]
    %v379 = vld [vmem:[#allocation5 + $0x8e0] sm:$0xff]
    %v380 = vld [vmem:[#allocation5 + $0x8e8] sm:$0xff]
    %v381 = vld [vmem:[#allocation5 + $0x8f0] sm:$0xff]
    %v382 = vld [vmem:[#allocation5 + $0x8f8] sm:$0xff]
    %v383 = vld [vmem:[#allocation5 + $0x900] sm:$0xff]
    %v384 = vld [vmem:[#allocation5 + $0x908] sm:$0xff]
    %v385 = vld [vmem:[#allocation5 + $0x910] sm:$0xff]
    %v386 = vld [vmem:[#allocation5 + $0x918] sm:$0xff]
    %v387 = vld [vmem:[#allocation5 + $0x920] sm:$0xff]
    %v388 = vld [vmem:[#allocation5 + $0x928] sm:$0xff]
    %v389 = vld [vmem:[#allocation5 + $0x930] sm:$0xff]
    %v390 = vld [vmem:[#allocation5 + $0x938] sm:$0xff]
    %v391 = vld [vmem:[#allocation5 + $0x940] sm:$0xff]
    %v392 = vld [vmem:[#allocation5 + $0x948] sm:$0xff]
    %v393 = vld [vmem:[#allocation5 + $0x950] sm:$0xff]
    %v394 = vld [vmem:[#allocation5 + $0x958] sm:$0xff]
    %v395 = vld [vmem:[#allocation5 + $0x960] sm:$0xff]
    %v396 = vld [vmem:[#allocation5 + $0x968] sm:$0xff]
    %v397 = vld [vmem:[#allocation5 + $0x970] sm:$0xff]
    %v398 = vld [vmem:[#allocation5 + $0x978] sm:$0xff]
    %v399 = vld [vmem:[#allocation5 + $0x980] sm:$0xff]
    %v400 = vld [vmem:[#allocation5 + $0x988] sm:$0xff]
    %v401 = vld [vmem:[#allocation5 + $0x990] sm:$0xff]
    %v402 = vld [vmem:[#allocation5 + $0x998] sm:$0xff]
    %v403 = vld [vmem:[#allocation5 + $0x9a0] sm:$0xff]
    %v404 = vld [vmem:[#allocation5 + $0x9a8] sm:$0xff]
    %v405 = vld [vmem:[#allocation5 + $0x9b0] sm:$0xff]
    %v406 = vld [vmem:[#allocation5 + $0x9b8] sm:$0xff]
    %v407 = vld [vmem:[#allocation5 + $0x9c0] sm:$0xff]
    %v408 = vld [vmem:[#allocation5 + $0x9c8] sm:$0xff]
    %v409 = vld [vmem:[#allocation5 + $0x9d0] sm:$0xff]
    %v410 = vld [vmem:[#allocation5 + $0x9d8] sm:$0xff]
    %v411 = vld [vmem:[#allocation5 + $0x9e0] sm:$0xff]
    %v412 = vld [vmem:[#allocation5 + $0x9e8] sm:$0xff]
    %v413 = vld [vmem:[#allocation5 + $0x9f0] sm:$0xff]
    %v414 = vld [vmem:[#allocation5 + $0x9f8] sm:$0xff]
    %v415 = vld [vmem:[#allocation5 + $0xa00] sm:$0xff]
    %v416 = vld [vmem:[#allocation5 + $0xa08] sm:$0xff]
    %v417 = vld [vmem:[#allocation5 + $0xa10] sm:$0xff]
    %v418 = vld [vmem:[#allocation5 + $0xa18] sm:$0xff]
    %v419 = vld [vmem:[#allocation5 + $0xa20] sm:$0xff]
    %v420 = vld [vmem:[#allocation5 + $0xa28] sm:$0xff]
    %v421 = vld [vmem:[#allocation5 + $0xa30] sm:$0xff]
    %v422 = vld [vmem:[#allocation5 + $0xa38] sm:$0xff]
    %v423 = vld [vmem:[#allocation5 + $0xa40] sm:$0xff]
    %v424 = vld [vmem:[#allocation5 + $0xa48] sm:$0xff]
    %v425 = vld [vmem:[#allocation5 + $0xa50] sm:$0xff]
    %v426 = vld [vmem:[#allocation5 + $0xa58] sm:$0xff]
    %v427 = vld [vmem:[#allocation5 + $0xa60] sm:$0xff]
    %v428 = vld [vmem:[#allocation5 + $0xa68] sm:$0xff]
    %v429 = vld [vmem:[#allocation5 + $0xa70] sm:$0xff]
    %v430 = vld [vmem:[#allocation5 + $0xa78] sm:$0xff]
    %v431 = vld [vmem:[#allocation5 + $0xa80] sm:$0xff]
    %v432 = vld [vmem:[#allocation5 + $0xa88] sm:$0xff]
    %v433 = vld [vmem:[#allocation5 + $0xa90] sm:$0xff]
    %v434 = vld [vmem:[#allocation5 + $0xa98] sm:$0xff]
    %v435 = vld [vmem:[#allocation5 + $0xaa0] sm:$0xff]
    %v436 = vld [vmem:[#allocation5 + $0xaa8] sm:$0xff]
    %v437 = vld [vmem:[#allocation5 + $0xab0] sm:$0xff]
    %v438 = vld [vmem:[#allocation5 + $0xab8] sm:$0xff]
    %v439 = vld [vmem:[#allocation5 + $0xac0] sm:$0xff]
    %v440 = vld [vmem:[#allocation5 + $0xac8] sm:$0xff]
    %v441 = vld [vmem:[#allocation5 + $0xad0] sm:$0xff]
    %v442 = vld [vmem:[#allocation5 + $0xad8] sm:$0xff]
    %v443 = vld [vmem:[#allocation5 + $0xae0] sm:$0xff]
    %v444 = vld [vmem:[#allocation5 + $0xae8] sm:$0xff]
    %v445 = vld [vmem:[#allocation5 + $0xaf0] sm:$0xff]
    %v446 = vld [vmem:[#allocation5 + $0xaf8] sm:$0xff]
    %v447 = vld [vmem:[#allocation5 + $0xb00] sm:$0xff]
    %v448 = vld [vmem:[#allocation5 + $0xb08] sm:$0xff]
    %v449 = vld [vmem:[#allocation5 + $0xb10] sm:$0xff]
    %v450 = vld [vmem:[#allocation5 + $0xb18] sm:$0xff]
    %v451 = vld [vmem:[#allocation5 + $0xb20] sm:$0xff]
    %v452 = vld [vmem:[#allocation5 + $0xb28] sm:$0xff]
    %v453 = vld [vmem:[#allocation5 + $0xb30] sm:$0xff]
    %v454 = vld [vmem:[#allocation5 + $0xb38] sm:$0xff]
    %v455 = vld [vmem:[#allocation5 + $0xb40] sm:$0xff]
    %v456 = vld [vmem:[#allocation5 + $0xb48] sm:$0xff]
    %v457 = vld [vmem:[#allocation5 + $0xb50] sm:$0xff]
    %v458 = vld [vmem:[#allocation5 + $0xb58] sm:$0xff]
    %v459 = vld [vmem:[#allocation5 + $0xb60] sm:$0xff]
    %v460 = vld [vmem:[#allocation5 + $0xb68] sm:$0xff]
    %v461 = vld [vmem:[#allocation5 + $0xb70] sm:$0xff]
    %v462 = vld [vmem:[#allocation5 + $0xb78] sm:$0xff]
    %v463 = vld [vmem:[#allocation5 + $0xb80] sm:$0xff]
    %v464 = vld [vmem:[#allocation5 + $0xb88] sm:$0xff]
    %v465 = vld [vmem:[#allocation5 + $0xb90] sm:$0xff]
    %v466 = vld [vmem:[#allocation5 + $0xb98] sm:$0xff]
    %v467 = vld [vmem:[#allocation5 + $0xba0] sm:$0xff]
    %v468 = vld [vmem:[#allocation5 + $0xba8] sm:$0xff]
    %v469 = vld [vmem:[#allocation5 + $0xbb0] sm:$0xff]
    %v470 = vld [vmem:[#allocation5 + $0xbb8] sm:$0xff]
    %v471 = vld [vmem:[#allocation5 + $0xbc0] sm:$0xff]
    %v472 = vld [vmem:[#allocation5 + $0xbc8] sm:$0xff]
    %v473 = vld [vmem:[#allocation5 + $0xbd0] sm:$0xff]
    %v474 = vld [vmem:[#allocation5 + $0xbd8] sm:$0xff]
    %v475 = vld [vmem:[#allocation5 + $0xbe0] sm:$0xff]
    %v476 = vld [vmem:[#allocation5 + $0xbe8] sm:$0xff]
    %v477 = vld [vmem:[#allocation5 + $0xbf0] sm:$0xff]
    %v478 = vld [vmem:[#allocation5 + $0xbf8] sm:$0xff]
    %v479 = vld [vmem:[#allocation5 + $0xc00] sm:$0xff]
    %v480 = vld [vmem:[#allocation5 + $0xc08] sm:$0xff]
    %v481 = vld [vmem:[#allocation5 + $0xc10] sm:$0xff]
    %v482 = vld [vmem:[#allocation5 + $0xc18] sm:$0xff]
    %v483 = vld [vmem:[#allocation5 + $0xc20] sm:$0xff]
    %v484 = vld [vmem:[#allocation5 + $0xc28] sm:$0xff]
    %v485 = vld [vmem:[#allocation5 + $0xc30] sm:$0xff]
    %v486 = vld [vmem:[#allocation5 + $0xc38] sm:$0xff]
    %v487 = vld [vmem:[#allocation5 + $0xc40] sm:$0xff]
    %v488 = vld [vmem:[#allocation5 + $0xc48] sm:$0xff]
    %v489 = vld [vmem:[#allocation5 + $0xc50] sm:$0xff]
    %v490 = vld [vmem:[#allocation5 + $0xc58] sm:$0xff]
    %v491 = vld [vmem:[#allocation5 + $0xc60] sm:$0xff]
    %v492 = vld [vmem:[#allocation5 + $0xc68] sm:$0xff]
    %v493 = vld [vmem:[#allocation5 + $0xc70] sm:$0xff]
    %v494 = vld [vmem:[#allocation5 + $0xc78] sm:$0xff]
    %v495 = vld [vmem:[#allocation5 + $0xc80] sm:$0xff]
    %v496 = vld [vmem:[#allocation5 + $0xc88] sm:$0xff]
    %v497 = vld [vmem:[#allocation5 + $0xc90] sm:$0xff]
    %v498 = vld [vmem:[#allocation5 + $0xc98] sm:$0xff]
    %v499 = vld [vmem:[#allocation5 + $0xca0] sm:$0xff]
    %v500 = vld [vmem:[#allocation5 + $0xca8] sm:$0xff]
    %v501 = vld [vmem:[#allocation5 + $0xcb0] sm:$0xff]
    %v502 = vld [vmem:[#allocation5 + $0xcb8] sm:$0xff]
    %v503 = vld [vmem:[#allocation5 + $0xcc0] sm:$0xff]
    %v504 = vld [vmem:[#allocation5 + $0xcc8] sm:$0xff]
    %v505 = vld [vmem:[#allocation5 + $0xcd0] sm:$0xff]
    %v506 = vld [vmem:[#allocation5 + $0xcd8] sm:$0xff]
    %v507 = vld [vmem:[#allocation5 + $0xce0] sm:$0xff]
    %v508 = vld [vmem:[#allocation5 + $0xce8] sm:$0xff]
    %v509 = vld [vmem:[#allocation5 + $0xcf0] sm:$0xff]
    %v510 = vld [vmem:[#allocation5 + $0xcf8] sm:$0xff]
    %v511 = vld [vmem:[#allocation5 + $0xd00] sm:$0xff]
    %v512 = vld [vmem:[#allocation5 + $0xd08] sm:$0xff]
    %v513 = vld [vmem:[#allocation5 + $0xd10] sm:$0xff]
    %v514 = vld [vmem:[#allocation5 + $0xd18] sm:$0xff]
    %v515 = vld [vmem:[#allocation5 + $0xd20] sm:$0xff]
    %v516 = vld [vmem:[#allocation5 + $0xd28] sm:$0xff]
    %v517 = vld [vmem:[#allocation5 + $0xd30] sm:$0xff]
    %v518 = vld [vmem:[#allocation5 + $0xd38] sm:$0xff]
    %v519 = vld [vmem:[#allocation5 + $0xd40] sm:$0xff]
    %v520 = vld [vmem:[#allocation5 + $0xd48] sm:$0xff]
    %v521 = vld [vmem:[#allocation5 + $0xd50] sm:$0xff]
    %v522 = vld [vmem:[#allocation5 + $0xd58] sm:$0xff]
    %v523 = vld [vmem:[#allocation5 + $0xd60] sm:$0xff]
    %v524 = vld [vmem:[#allocation5 + $0xd68] sm:$0xff]
    %v525 = vld [vmem:[#allocation5 + $0xd70] sm:$0xff]
    %v526 = vld [vmem:[#allocation5 + $0xd78] sm:$0xff]
    %v527 = vld [vmem:[#allocation5 + $0xd80] sm:$0xff]
    %v528 = vld [vmem:[#allocation5 + $0xd88] sm:$0xff]
    %v529 = vld [vmem:[#allocation5 + $0xd90] sm:$0xff]
    %v530 = vld [vmem:[#allocation5 + $0xd98] sm:$0xff]
    %v531 = vld [vmem:[#allocation5 + $0xda0] sm:$0xff]
    %v532 = vld [vmem:[#allocation5 + $0xda8] sm:$0xff]
    %v533 = vld [vmem:[#allocation5 + $0xdb0] sm:$0xff]
    %v534 = vld [vmem:[#allocation5 + $0xdb8] sm:$0xff]
    %v535 = vld [vmem:[#allocation5 + $0xdc0] sm:$0xff]
    %v536 = vld [vmem:[#allocation5 + $0xdc8] sm:$0xff]
    %v537 = vld [vmem:[#allocation5 + $0xdd0] sm:$0xff]
    %v538 = vld [vmem:[#allocation5 + $0xdd8] sm:$0xff]
    %v539 = vld [vmem:[#allocation5 + $0xde0] sm:$0xff]
    %v540 = vld [vmem:[#allocation5 + $0xde8] sm:$0xff]
    %v541 = vld [vmem:[#allocation5 + $0xdf0] sm:$0xff]
    %v542 = vld [vmem:[#allocation5 + $0xdf8] sm:$0xff]
    %v543 = vld [vmem:[#allocation5 + $0xe00] sm:$0xff]
    %v544 = vld [vmem:[#allocation5 + $0xe08] sm:$0xff]
    %v545 = vld [vmem:[#allocation5 + $0xe10] sm:$0xff]
    %v546 = vld [vmem:[#allocation5 + $0xe18] sm:$0xff]
    %v547 = vld [vmem:[#allocation5 + $0xe20] sm:$0xff]
    %v548 = vld [vmem:[#allocation5 + $0xe28] sm:$0xff]
    %v549 = vld [vmem:[#allocation5 + $0xe30] sm:$0xff]
    %v550 = vld [vmem:[#allocation5 + $0xe38] sm:$0xff]
    %v551 = vld [vmem:[#allocation5 + $0xe40] sm:$0xff]
    %v552 = vld [vmem:[#allocation5 + $0xe48] sm:$0xff]
    %v553 = vld [vmem:[#allocation5 + $0xe50] sm:$0xff]
    %v554 = vld [vmem:[#allocation5 + $0xe58] sm:$0xff]
    %v555 = vld [vmem:[#allocation5 + $0xe60] sm:$0xff]
    %v556 = vld [vmem:[#allocation5 + $0xe68] sm:$0xff]
    %v557 = vld [vmem:[#allocation5 + $0xe70] sm:$0xff]
    %v558 = vld [vmem:[#allocation5 + $0xe78] sm:$0xff]
    %v559 = vld [vmem:[#allocation5 + $0xe80] sm:$0xff]
    %v560 = vld [vmem:[#allocation5 + $0xe88] sm:$0xff]
    %v561 = vld [vmem:[#allocation5 + $0xe90] sm:$0xff]
    %v562 = vld [vmem:[#allocation5 + $0xe98] sm:$0xff]
    %v563 = vld [vmem:[#allocation5 + $0xea0] sm:$0xff]
    %v564 = vld [vmem:[#allocation5 + $0xea8] sm:$0xff]
    %v565 = vld [vmem:[#allocation5 + $0xeb0] sm:$0xff]
    %v566 = vld [vmem:[#allocation5 + $0xeb8] sm:$0xff]
    %v567 = vld [vmem:[#allocation5 + $0xec0] sm:$0xff]
    %v568 = vld [vmem:[#allocation5 + $0xec8] sm:$0xff]
    %v569 = vld [vmem:[#allocation5 + $0xed0] sm:$0xff]
    %v570 = vld [vmem:[#allocation5 + $0xed8] sm:$0xff]
    %v571 = vld [vmem:[#allocation5 + $0xee0] sm:$0xff]
    %v572 = vld [vmem:[#allocation5 + $0xee8] sm:$0xff]
    %v573 = vld [vmem:[#allocation5 + $0xef0] sm:$0xff]
    %v574 = vld [vmem:[#allocation5 + $0xef8] sm:$0xff]
    %v575 = vld [vmem:[#allocation5 + $0xf00] sm:$0xff]
    %v576 = vld [vmem:[#allocation5 + $0xf08] sm:$0xff]
    %v577 = vld [vmem:[#allocation5 + $0xf10] sm:$0xff]
    %v578 = vld [vmem:[#allocation5 + $0xf18] sm:$0xff]
    %v579 = vld [vmem:[#allocation5 + $0xf20] sm:$0xff]
    %v580 = vld [vmem:[#allocation5 + $0xf28] sm:$0xff]
    %v581 = vld [vmem:[#allocation5 + $0xf30] sm:$0xff]
    %v582 = vld [vmem:[#allocation5 + $0xf38] sm:$0xff]
    %v583 = vld [vmem:[#allocation5 + $0xf40] sm:$0xff]
    %v584 = vld [vmem:[#allocation5 + $0xf48] sm:$0xff]
    %v585 = vld [vmem:[#allocation5 + $0xf50] sm:$0xff]
    %v586 = vld [vmem:[#allocation5 + $0xf58] sm:$0xff]
    %v587 = vld [vmem:[#allocation5 + $0xf60] sm:$0xff]
    %v588 = vld [vmem:[#allocation5 + $0xf68] sm:$0xff]
    %v589 = vld [vmem:[#allocation5 + $0xf70] sm:$0xff]
    %v590 = vld [vmem:[#allocation5 + $0xf78] sm:$0xff]
    %v591 = vld [vmem:[#allocation5 + $0xf80] sm:$0xff]
    %v592 = vld [vmem:[#allocation5 + $0xf88] sm:$0xff]
    %v593 = vld [vmem:[#allocation5 + $0xf90] sm:$0xff]
    %v594 = vld [vmem:[#allocation5 + $0xf98] sm:$0xff]
    %v595 = vld [vmem:[#allocation5 + $0xfa0] sm:$0xff]
    %v596 = vld [vmem:[#allocation5 + $0xfa8] sm:$0xff]
    %v597 = vld [vmem:[#allocation5 + $0xfb0] sm:$0xff]
    %v598 = vld [vmem:[#allocation5 + $0xfb8] sm:$0xff]
    %v599 = vld [vmem:[#allocation5 + $0xfc0] sm:$0xff]
    %v600 = vld [vmem:[#allocation5 + $0xfc8] sm:$0xff]
    %v601 = vld [vmem:[#allocation5 + $0xfd0] sm:$0xff]
    %v602 = vld [vmem:[#allocation5 + $0xfd8] sm:$0xff]
    %v603 = vld [vmem:[#allocation5 + $0xfe0] sm:$0xff]
    %v604 = vld [vmem:[#allocation5 + $0xfe8] sm:$0xff]
    %v605 = vld [vmem:[#allocation5 + $0xff0] sm:$0xff]
    %v606 = vld [vmem:[#allocation5 + $0xff8] sm:$0xff]
    %v607 = vld [vmem:[#allocation5 + $0x1000] sm:$0xff]
    %v608 = vld [vmem:[#allocation5 + $0x1008] sm:$0xff]
    %v609 = vld [vmem:[#allocation5 + $0x1010] sm:$0xff]
    %v610 = vld [vmem:[#allocation5 + $0x1018] sm:$0xff]
    %v611 = vld [vmem:[#allocation5 + $0x1020] sm:$0xff]
    %v612 = vld [vmem:[#allocation5 + $0x1028] sm:$0xff]
    %v613 = vld [vmem:[#allocation5 + $0x1030] sm:$0xff]
    %v614 = vld [vmem:[#allocation5 + $0x1038] sm:$0xff]
    %v615 = vld [vmem:[#allocation5 + $0x1040] sm:$0xff]
    %v616 = vld [vmem:[#allocation5 + $0x1048] sm:$0xff]
    %v617 = vld [vmem:[#allocation5 + $0x1050] sm:$0xff]
    %v618 = vld [vmem:[#allocation5 + $0x1058] sm:$0xff]
    %v619 = vld [vmem:[#allocation5 + $0x1060] sm:$0xff]
    %v620 = vld [vmem:[#allocation5 + $0x1068] sm:$0xff]
    %v621 = vld [vmem:[#allocation5 + $0x1070] sm:$0xff]
    %v622 = vld [vmem:[#allocation5 + $0x1078] sm:$0xff]
    %v623 = vld [vmem:[#allocation5 + $0x1080] sm:$0xff]
    %v624 = vld [vmem:[#allocation5 + $0x1088] sm:$0xff]
    %v625 = vld [vmem:[#allocation5 + $0x1090] sm:$0xff]
    %v626 = vld [vmem:[#allocation5 + $0x1098] sm:$0xff]
    %v627 = vld [vmem:[#allocation5 + $0x10a0] sm:$0xff]
    %v628 = vld [vmem:[#allocation5 + $0x10a8] sm:$0xff]
    %v629 = vld [vmem:[#allocation5 + $0x10b0] sm:$0xff]
    %v630 = vld [vmem:[#allocation5 + $0x10b8] sm:$0xff]
    %v631 = vld [vmem:[#allocation5 + $0x10c0] sm:$0xff]
    %v632 = vld [vmem:[#allocation5 + $0x10c8] sm:$0xff]
    %v633 = vld [vmem:[#allocation5 + $0x10d0] sm:$0xff]
    %v634 = vld [vmem:[#allocation5 + $0x10d8] sm:$0xff]
    %v635 = vld [vmem:[#allocation5 + $0x10e0] sm:$0xff]
    %v636 = vld [vmem:[#allocation5 + $0x10e8] sm:$0xff]
    %v637 = vld [vmem:[#allocation5 + $0x10f0] sm:$0xff]
    %v638 = vld [vmem:[#allocation5 + $0x10f8] sm:$0xff]
    %v639 = vld [vmem:[#allocation5 + $0x1100] sm:$0xff]
    %v640 = vld [vmem:[#allocation5 + $0x1108] sm:$0xff]
    %v641 = vld [vmem:[#allocation5 + $0x1110] sm:$0xff]
    %v642 = vld [vmem:[#allocation5 + $0x1118] sm:$0xff]
    %v643 = vld [vmem:[#allocation5 + $0x1120] sm:$0xff]
    %v644 = vld [vmem:[#allocation5 + $0x1128] sm:$0xff]
    %v645 = vld [vmem:[#allocation5 + $0x1130] sm:$0xff]
    %v646 = vld [vmem:[#allocation5 + $0x1138] sm:$0xff]
    %v647 = vld [vmem:[#allocation5 + $0x1140] sm:$0xff]
    %v648 = vld [vmem:[#allocation5 + $0x1148] sm:$0xff]
    %v649 = vld [vmem:[#allocation5 + $0x1150] sm:$0xff]
    %v650 = vld [vmem:[#allocation5 + $0x1158] sm:$0xff]
    %v651 = vld [vmem:[#allocation5 + $0x1160] sm:$0xff]
    %v652 = vld [vmem:[#allocation5 + $0x1168] sm:$0xff]
    %v653 = vld [vmem:[#allocation5 + $0x1170] sm:$0xff]
    %v654 = vld [vmem:[#allocation5 + $0x1178] sm:$0xff]
    %v655 = vld [vmem:[#allocation5 + $0x1180] sm:$0xff]
    %v656 = vld [vmem:[#allocation5 + $0x1188] sm:$0xff]
    %v657 = vld [vmem:[#allocation5 + $0x1190] sm:$0xff]
    %v658 = vld [vmem:[#allocation5 + $0x1198] sm:$0xff]
    %v659 = vld [vmem:[#allocation5 + $0x11a0] sm:$0xff]
    %v660 = vld [vmem:[#allocation5 + $0x11a8] sm:$0xff]
    %v661 = vld [vmem:[#allocation5 + $0x11b0] sm:$0xff]
    %v662 = vld [vmem:[#allocation5 + $0x11b8] sm:$0xff]
    %v663 = vld [vmem:[#allocation5 + $0x11c0] sm:$0xff]
    %v664 = vld [vmem:[#allocation5 + $0x11c8] sm:$0xff]
    %v665 = vld [vmem:[#allocation5 + $0x11d0] sm:$0xff]
    %v666 = vld [vmem:[#allocation5 + $0x11d8] sm:$0xff]
    %v667 = vld [vmem:[#allocation5 + $0x11e0] sm:$0xff]
    %v668 = vld [vmem:[#allocation5 + $0x11e8] sm:$0xff]
    %v669 = vld [vmem:[#allocation5 + $0x11f0] sm:$0xff]
    %v670 = vld [vmem:[#allocation5 + $0x11f8] sm:$0xff]
    %v671 = vld [vmem:[#allocation7] sm:$0x3f]
    %v673 = vlaneseq
    %v674 = vshrl.u32 %v673, 7
    %v675 = vsub.s32 0, %v674
    %v676 = vrot.slane %v671, %v675
    %v677 = vlaneseq
    %v678 = vshrl.u32 %v677, 7
    %v679 = vsub.s32 1, %v678
    %v680 = vrot.slane %v671, %v679
    %v681 = vlaneseq
    %v682 = vshrl.u32 %v681, 7
    %v683 = vsub.s32 2, %v682
    %v684 = vrot.slane %v671, %v683
    %v685 = vlaneseq
    %v686 = vshrl.u32 %v685, 7
    %v687 = vsub.s32 3, %v686
    %v688 = vrot.slane %v671, %v687
    %v689 = vlaneseq
    %v690 = vshrl.u32 %v689, 7
    %v691 = vsub.s32 4, %v690
    %v692 = vrot.slane %v671, %v691
    %v693 = vlaneseq
    %v694 = vshrl.u32 %v693, 7
    %v695 = vsub.s32 5, %v694
    %v696 = vrot.slane %v671, %v695
    %v1279 = vunpack.c.l.b16 %v95
    %v1280 = vunpack.c.h.b16 %v95
    %v1281 = vunpack.c.l.b16 %v96
    %v1282 = vunpack.c.h.b16 %v96
    %v1283 = vunpack.c.l.b16 %v97
    %v1284 = vunpack.c.h.b16 %v97
    %v1285 = vunpack.c.l.b16 %v98
    %v1286 = vunpack.c.h.b16 %v98
    %v1287 = vunpack.c.l.b16 %v99
    %v1288 = vunpack.c.h.b16 %v99
    %v1289 = vunpack.c.l.b16 %v100
    %v1290 = vunpack.c.h.b16 %v100
    %v1291 = vunpack.c.l.b16 %v101
    %v1292 = vunpack.c.h.b16 %v101
    %v1293 = vunpack.c.l.b16 %v102
    %v1294 = vunpack.c.h.b16 %v102
    %v1295 = vunpack.c.l.b16 %v103
    %v1296 = vunpack.c.h.b16 %v103
    %v1297 = vunpack.c.l.b16 %v104
    %v1298 = vunpack.c.h.b16 %v104
    %v1299 = vunpack.c.l.b16 %v105
    %v1300 = vunpack.c.h.b16 %v105
    %v1301 = vunpack.c.l.b16 %v106
    %v1302 = vunpack.c.h.b16 %v106
    %v1303 = vunpack.c.l.b16 %v107
    %v1304 = vunpack.c.h.b16 %v107
    %v1305 = vunpack.c.l.b16 %v108
    %v1306 = vunpack.c.h.b16 %v108
    %v1307 = vunpack.c.l.b16 %v109
    %v1308 = vunpack.c.h.b16 %v109
    %v1309 = vunpack.c.l.b16 %v110
    %v1310 = vunpack.c.h.b16 %v110
    %v1311 = vunpack.c.l.b16 %v111
    %v1312 = vunpack.c.h.b16 %v111
    %v1313 = vunpack.c.l.b16 %v112
    %v1314 = vunpack.c.h.b16 %v112
    %v1315 = vunpack.c.l.b16 %v113
    %v1316 = vunpack.c.h.b16 %v113
    %v1317 = vunpack.c.l.b16 %v114
    %v1318 = vunpack.c.h.b16 %v114
    %v1319 = vunpack.c.l.b16 %v115
    %v1320 = vunpack.c.h.b16 %v115
    %v1321 = vunpack.c.l.b16 %v116
    %v1322 = vunpack.c.h.b16 %v116
    %v1323 = vunpack.c.l.b16 %v117
    %v1324 = vunpack.c.h.b16 %v117
    %v1325 = vunpack.c.l.b16 %v118
    %v1326 = vunpack.c.h.b16 %v118
    %v1327 = vunpack.c.l.b16 %v119
    %v1328 = vunpack.c.h.b16 %v119
    %v1329 = vunpack.c.l.b16 %v120
    %v1330 = vunpack.c.h.b16 %v120
    %v1331 = vunpack.c.l.b16 %v121
    %v1332 = vunpack.c.h.b16 %v121
    %v1333 = vunpack.c.l.b16 %v122
    %v1334 = vunpack.c.h.b16 %v122
    %v1335 = vunpack.c.l.b16 %v123
    %v1336 = vunpack.c.h.b16 %v123
    %v1337 = vunpack.c.l.b16 %v124
    %v1338 = vunpack.c.h.b16 %v124
    %v1339 = vunpack.c.l.b16 %v125
    %v1340 = vunpack.c.h.b16 %v125
    %v1341 = vunpack.c.l.b16 %v126
    %v1342 = vunpack.c.h.b16 %v126
    %v1343 = vunpack.c.l.b16 %v127
    %v1344 = vunpack.c.h.b16 %v127
    %v1345 = vunpack.c.l.b16 %v128
    %v1346 = vunpack.c.h.b16 %v128
    %v1347 = vunpack.c.l.b16 %v129
    %v1348 = vunpack.c.h.b16 %v129
    %v1349 = vunpack.c.l.b16 %v130
    %v1350 = vunpack.c.h.b16 %v130
    %v1351 = vunpack.c.l.b16 %v131
    %v1352 = vunpack.c.h.b16 %v131
    %v1353 = vunpack.c.l.b16 %v132
    %v1354 = vunpack.c.h.b16 %v132
    %v1355 = vunpack.c.l.b16 %v133
    %v1356 = vunpack.c.h.b16 %v133
    %v1357 = vunpack.c.l.b16 %v134
    %v1358 = vunpack.c.h.b16 %v134
    %v1359 = vunpack.c.l.b16 %v135
    %v1360 = vunpack.c.h.b16 %v135
    %v1361 = vunpack.c.l.b16 %v136
    %v1362 = vunpack.c.h.b16 %v136
    %v1363 = vunpack.c.l.b16 %v137
    %v1364 = vunpack.c.h.b16 %v137
    %v1365 = vunpack.c.l.b16 %v138
    %v1366 = vunpack.c.h.b16 %v138
    %v1367 = vunpack.c.l.b16 %v139
    %v1368 = vunpack.c.h.b16 %v139
    %v1369 = vunpack.c.l.b16 %v140
    %v1370 = vunpack.c.h.b16 %v140
    %v1371 = vunpack.c.l.b16 %v141
    %v1372 = vunpack.c.h.b16 %v141
    %v1373 = vunpack.c.l.b16 %v142
    %v1374 = vunpack.c.h.b16 %v142
    %v1375 = vunpack.c.l.b16 %v143
    %v1376 = vunpack.c.h.b16 %v143
    %v1377 = vunpack.c.l.b16 %v144
    %v1378 = vunpack.c.h.b16 %v144
    %v1379 = vunpack.c.l.b16 %v145
    %v1380 = vunpack.c.h.b16 %v145
    %v1381 = vunpack.c.l.b16 %v146
    %v1382 = vunpack.c.h.b16 %v146
    %v1383 = vunpack.c.l.b16 %v147
    %v1384 = vunpack.c.h.b16 %v147
    %v1385 = vunpack.c.l.b16 %v148
    %v1386 = vunpack.c.h.b16 %v148
    %v1387 = vunpack.c.l.b16 %v149
    %v1388 = vunpack.c.h.b16 %v149
    %v1389 = vunpack.c.l.b16 %v150
    %v1390 = vunpack.c.h.b16 %v150
    %v1391 = vunpack.c.l.b16 %v151
    %v1392 = vunpack.c.h.b16 %v151
    %v1393 = vunpack.c.l.b16 %v152
    %v1394 = vunpack.c.h.b16 %v152
    %v1395 = vunpack.c.l.b16 %v153
    %v1396 = vunpack.c.h.b16 %v153
    %v1397 = vunpack.c.l.b16 %v154
    %v1398 = vunpack.c.h.b16 %v154
    %v1399 = vunpack.c.l.b16 %v155
    %v1400 = vunpack.c.h.b16 %v155
    %v1401 = vunpack.c.l.b16 %v156
    %v1402 = vunpack.c.h.b16 %v156
    %v1403 = vunpack.c.l.b16 %v157
    %v1404 = vunpack.c.h.b16 %v157
    %v1405 = vunpack.c.l.b16 %v158
    %v1406 = vunpack.c.h.b16 %v158
    %v1407 = vunpack.c.l.b16 %v159
    %v1408 = vunpack.c.h.b16 %v159
    %v1409 = vunpack.c.l.b16 %v160
    %v1410 = vunpack.c.h.b16 %v160
    %v1411 = vunpack.c.l.b16 %v161
    %v1412 = vunpack.c.h.b16 %v161
    %v1413 = vunpack.c.l.b16 %v162
    %v1414 = vunpack.c.h.b16 %v162
    %v1415 = vunpack.c.l.b16 %v163
    %v1416 = vunpack.c.h.b16 %v163
    %v1417 = vunpack.c.l.b16 %v164
    %v1418 = vunpack.c.h.b16 %v164
    %v1419 = vunpack.c.l.b16 %v165
    %v1420 = vunpack.c.h.b16 %v165
    %v1421 = vunpack.c.l.b16 %v166
    %v1422 = vunpack.c.h.b16 %v166
    %v1423 = vunpack.c.l.b16 %v167
    %v1424 = vunpack.c.h.b16 %v167
    %v1425 = vunpack.c.l.b16 %v168
    %v1426 = vunpack.c.h.b16 %v168
    %v1427 = vunpack.c.l.b16 %v169
    %v1428 = vunpack.c.h.b16 %v169
    %v1429 = vunpack.c.l.b16 %v170
    %v1430 = vunpack.c.h.b16 %v170
    %v1431 = vunpack.c.l.b16 %v171
    %v1432 = vunpack.c.h.b16 %v171
    %v1433 = vunpack.c.l.b16 %v172
    %v1434 = vunpack.c.h.b16 %v172
    %v1435 = vunpack.c.l.b16 %v173
    %v1436 = vunpack.c.h.b16 %v173
    %v1437 = vunpack.c.l.b16 %v174
    %v1438 = vunpack.c.h.b16 %v174
    %v1439 = vunpack.c.l.b16 %v175
    %v1440 = vunpack.c.h.b16 %v175
    %v1441 = vunpack.c.l.b16 %v176
    %v1442 = vunpack.c.h.b16 %v176
    %v1443 = vunpack.c.l.b16 %v177
    %v1444 = vunpack.c.h.b16 %v177
    %v1445 = vunpack.c.l.b16 %v178
    %v1446 = vunpack.c.h.b16 %v178
    %v1447 = vunpack.c.l.b16 %v179
    %v1448 = vunpack.c.h.b16 %v179
    %v1449 = vunpack.c.l.b16 %v180
    %v1450 = vunpack.c.h.b16 %v180
    %v1451 = vunpack.c.l.b16 %v181
    %v1452 = vunpack.c.h.b16 %v181
    %v1453 = vunpack.c.l.b16 %v182
    %v1454 = vunpack.c.h.b16 %v182
    %v1455 = vunpack.c.l.b16 %v183
    %v1456 = vunpack.c.h.b16 %v183
    %v1457 = vunpack.c.l.b16 %v184
    %v1458 = vunpack.c.h.b16 %v184
    %v1459 = vunpack.c.l.b16 %v185
    %v1460 = vunpack.c.h.b16 %v185
    %v1461 = vunpack.c.l.b16 %v186
    %v1462 = vunpack.c.h.b16 %v186
    %v1463 = vunpack.c.l.b16 %v187
    %v1464 = vunpack.c.h.b16 %v187
    %v1465 = vunpack.c.l.b16 %v188
    %v1466 = vunpack.c.h.b16 %v188
    %v1467 = vunpack.c.l.b16 %v189
    %v1468 = vunpack.c.h.b16 %v189
    %v1469 = vunpack.c.l.b16 %v190
    %v1470 = vunpack.c.h.b16 %v190
    %v1471 = vunpack.c.l.b16 %v191
    %v1472 = vunpack.c.h.b16 %v191
    %v1473 = vunpack.c.l.b16 %v192
    %v1474 = vunpack.c.h.b16 %v192
    %v1475 = vunpack.c.l.b16 %v193
    %v1476 = vunpack.c.h.b16 %v193
    %v1477 = vunpack.c.l.b16 %v194
    %v1478 = vunpack.c.h.b16 %v194
    %v1479 = vunpack.c.l.b16 %v195
    %v1480 = vunpack.c.h.b16 %v195
    %v1481 = vunpack.c.l.b16 %v196
    %v1482 = vunpack.c.h.b16 %v196
    %v1483 = vunpack.c.l.b16 %v197
    %v1484 = vunpack.c.h.b16 %v197
    %v1485 = vunpack.c.l.b16 %v198
    %v1486 = vunpack.c.h.b16 %v198
    %v1487 = vunpack.c.l.b16 %v199
    %v1488 = vunpack.c.h.b16 %v199
    %v1489 = vunpack.c.l.b16 %v200
    %v1490 = vunpack.c.h.b16 %v200
    %v1491 = vunpack.c.l.b16 %v201
    %v1492 = vunpack.c.h.b16 %v201
    %v1493 = vunpack.c.l.b16 %v202
    %v1494 = vunpack.c.h.b16 %v202
    %v1495 = vunpack.c.l.b16 %v203
    %v1496 = vunpack.c.h.b16 %v203
    %v1497 = vunpack.c.l.b16 %v204
    %v1498 = vunpack.c.h.b16 %v204
    %v1499 = vunpack.c.l.b16 %v205
    %v1500 = vunpack.c.h.b16 %v205
    %v1501 = vunpack.c.l.b16 %v206
    %v1502 = vunpack.c.h.b16 %v206
    %v1503 = vunpack.c.l.b16 %v207
    %v1504 = vunpack.c.h.b16 %v207
    %v1505 = vunpack.c.l.b16 %v208
    %v1506 = vunpack.c.h.b16 %v208
    %v1507 = vunpack.c.l.b16 %v209
    %v1508 = vunpack.c.h.b16 %v209
    %v1509 = vunpack.c.l.b16 %v210
    %v1510 = vunpack.c.h.b16 %v210
    %v1511 = vunpack.c.l.b16 %v211
    %v1512 = vunpack.c.h.b16 %v211
    %v1513 = vunpack.c.l.b16 %v212
    %v1514 = vunpack.c.h.b16 %v212
    %v1515 = vunpack.c.l.b16 %v213
    %v1516 = vunpack.c.h.b16 %v213
    %v1517 = vunpack.c.l.b16 %v214
    %v1518 = vunpack.c.h.b16 %v214
    %v1519 = vunpack.c.l.b16 %v215
    %v1520 = vunpack.c.h.b16 %v215
    %v1521 = vunpack.c.l.b16 %v216
    %v1522 = vunpack.c.h.b16 %v216
    %v1523 = vunpack.c.l.b16 %v217
    %v1524 = vunpack.c.h.b16 %v217
    %v1525 = vunpack.c.l.b16 %v218
    %v1526 = vunpack.c.h.b16 %v218
    %v1527 = vunpack.c.l.b16 %v219
    %v1528 = vunpack.c.h.b16 %v219
    %v1529 = vunpack.c.l.b16 %v220
    %v1530 = vunpack.c.h.b16 %v220
    %v1531 = vunpack.c.l.b16 %v221
    %v1532 = vunpack.c.h.b16 %v221
    %v1533 = vunpack.c.l.b16 %v222
    %v1534 = vunpack.c.h.b16 %v222
    %v1535 = vunpack.c.l.b16 %v223
    %v1536 = vunpack.c.h.b16 %v223
    %v1537 = vunpack.c.l.b16 %v224
    %v1538 = vunpack.c.h.b16 %v224
    %v1539 = vunpack.c.l.b16 %v225
    %v1540 = vunpack.c.h.b16 %v225
    %v1541 = vunpack.c.l.b16 %v226
    %v1542 = vunpack.c.h.b16 %v226
    %v1543 = vunpack.c.l.b16 %v227
    %v1544 = vunpack.c.h.b16 %v227
    %v1545 = vunpack.c.l.b16 %v228
    %v1546 = vunpack.c.h.b16 %v228
    %v1547 = vunpack.c.l.b16 %v229
    %v1548 = vunpack.c.h.b16 %v229
    %v1549 = vunpack.c.l.b16 %v230
    %v1550 = vunpack.c.h.b16 %v230
    %v1551 = vunpack.c.l.b16 %v231
    %v1552 = vunpack.c.h.b16 %v231
    %v1553 = vunpack.c.l.b16 %v232
    %v1554 = vunpack.c.h.b16 %v232
    %v1555 = vunpack.c.l.b16 %v233
    %v1556 = vunpack.c.h.b16 %v233
    %v1557 = vunpack.c.l.b16 %v234
    %v1558 = vunpack.c.h.b16 %v234
    %v1559 = vunpack.c.l.b16 %v235
    %v1560 = vunpack.c.h.b16 %v235
    %v1561 = vunpack.c.l.b16 %v236
    %v1562 = vunpack.c.h.b16 %v236
    %v1563 = vunpack.c.l.b16 %v237
    %v1564 = vunpack.c.h.b16 %v237
    %v1565 = vunpack.c.l.b16 %v238
    %v1566 = vunpack.c.h.b16 %v238
    %v1567 = vunpack.c.l.b16 %v239
    %v1568 = vunpack.c.h.b16 %v239
    %v1569 = vunpack.c.l.b16 %v240
    %v1570 = vunpack.c.h.b16 %v240
    %v1571 = vunpack.c.l.b16 %v241
    %v1572 = vunpack.c.h.b16 %v241
    %v1573 = vunpack.c.l.b16 %v242
    %v1574 = vunpack.c.h.b16 %v242
    %v1575 = vunpack.c.l.b16 %v243
    %v1576 = vunpack.c.h.b16 %v243
    %v1577 = vunpack.c.l.b16 %v244
    %v1578 = vunpack.c.h.b16 %v244
    %v1579 = vunpack.c.l.b16 %v245
    %v1580 = vunpack.c.h.b16 %v245
    %v1581 = vunpack.c.l.b16 %v246
    %v1582 = vunpack.c.h.b16 %v246
    %v1583 = vunpack.c.l.b16 %v247
    %v1584 = vunpack.c.h.b16 %v247
    %v1585 = vunpack.c.l.b16 %v248
    %v1586 = vunpack.c.h.b16 %v248
    %v1587 = vunpack.c.l.b16 %v249
    %v1588 = vunpack.c.h.b16 %v249
    %v1589 = vunpack.c.l.b16 %v250
    %v1590 = vunpack.c.h.b16 %v250
    %v1591 = vunpack.c.l.b16 %v251
    %v1592 = vunpack.c.h.b16 %v251
    %v1593 = vunpack.c.l.b16 %v252
    %v1594 = vunpack.c.h.b16 %v252
    %v1595 = vunpack.c.l.b16 %v253
    %v1596 = vunpack.c.h.b16 %v253
    %v1597 = vunpack.c.l.b16 %v254
    %v1598 = vunpack.c.h.b16 %v254
    %v1599 = vunpack.c.l.b16 %v255
    %v1600 = vunpack.c.h.b16 %v255
    %v1601 = vunpack.c.l.b16 %v256
    %v1602 = vunpack.c.h.b16 %v256
    %v1603 = vunpack.c.l.b16 %v257
    %v1604 = vunpack.c.h.b16 %v257
    %v1605 = vunpack.c.l.b16 %v258
    %v1606 = vunpack.c.h.b16 %v258
    %v1607 = vunpack.c.l.b16 %v259
    %v1608 = vunpack.c.h.b16 %v259
    %v1609 = vunpack.c.l.b16 %v260
    %v1610 = vunpack.c.h.b16 %v260
    %v1611 = vunpack.c.l.b16 %v261
    %v1612 = vunpack.c.h.b16 %v261
    %v1613 = vunpack.c.l.b16 %v262
    %v1614 = vunpack.c.h.b16 %v262
    %v1615 = vunpack.c.l.b16 %v263
    %v1616 = vunpack.c.h.b16 %v263
    %v1617 = vunpack.c.l.b16 %v264
    %v1618 = vunpack.c.h.b16 %v264
    %v1619 = vunpack.c.l.b16 %v265
    %v1620 = vunpack.c.h.b16 %v265
    %v1621 = vunpack.c.l.b16 %v266
    %v1622 = vunpack.c.h.b16 %v266
    %v1623 = vunpack.c.l.b16 %v267
    %v1624 = vunpack.c.h.b16 %v267
    %v1625 = vunpack.c.l.b16 %v268
    %v1626 = vunpack.c.h.b16 %v268
    %v1627 = vunpack.c.l.b16 %v269
    %v1628 = vunpack.c.h.b16 %v269
    %v1629 = vunpack.c.l.b16 %v270
    %v1630 = vunpack.c.h.b16 %v270
    %v1631 = vunpack.c.l.b16 %v271
    %v1632 = vunpack.c.h.b16 %v271
    %v1633 = vunpack.c.l.b16 %v272
    %v1634 = vunpack.c.h.b16 %v272
    %v1635 = vunpack.c.l.b16 %v273
    %v1636 = vunpack.c.h.b16 %v273
    %v1637 = vunpack.c.l.b16 %v274
    %v1638 = vunpack.c.h.b16 %v274
    %v1639 = vunpack.c.l.b16 %v275
    %v1640 = vunpack.c.h.b16 %v275
    %v1641 = vunpack.c.l.b16 %v276
    %v1642 = vunpack.c.h.b16 %v276
    %v1643 = vunpack.c.l.b16 %v277
    %v1644 = vunpack.c.h.b16 %v277
    %v1645 = vunpack.c.l.b16 %v278
    %v1646 = vunpack.c.h.b16 %v278
    %v1647 = vunpack.c.l.b16 %v279
    %v1648 = vunpack.c.h.b16 %v279
    %v1649 = vunpack.c.l.b16 %v280
    %v1650 = vunpack.c.h.b16 %v280
    %v1651 = vunpack.c.l.b16 %v281
    %v1652 = vunpack.c.h.b16 %v281
    %v1653 = vunpack.c.l.b16 %v282
    %v1654 = vunpack.c.h.b16 %v282
    %v1655 = vunpack.c.l.b16 %v283
    %v1656 = vunpack.c.h.b16 %v283
    %v1657 = vunpack.c.l.b16 %v284
    %v1658 = vunpack.c.h.b16 %v284
    %v1659 = vunpack.c.l.b16 %v285
    %v1660 = vunpack.c.h.b16 %v285
    %v1661 = vunpack.c.l.b16 %v286
    %v1662 = vunpack.c.h.b16 %v286
    %v1663 = vunpack.c.l.b16 %v287
    %v1664 = vunpack.c.h.b16 %v287
    %v1665 = vunpack.c.l.b16 %v288
    %v1666 = vunpack.c.h.b16 %v288
    %v1667 = vunpack.c.l.b16 %v289
    %v1668 = vunpack.c.h.b16 %v289
    %v1669 = vunpack.c.l.b16 %v290
    %v1670 = vunpack.c.h.b16 %v290
    %v1671 = vunpack.c.l.b16 %v291
    %v1672 = vunpack.c.h.b16 %v291
    %v1673 = vunpack.c.l.b16 %v292
    %v1674 = vunpack.c.h.b16 %v292
    %v1675 = vunpack.c.l.b16 %v293
    %v1676 = vunpack.c.h.b16 %v293
    %v1677 = vunpack.c.l.b16 %v294
    %v1678 = vunpack.c.h.b16 %v294
    %v1679 = vunpack.c.l.b16 %v295
    %v1680 = vunpack.c.h.b16 %v295
    %v1681 = vunpack.c.l.b16 %v296
    %v1682 = vunpack.c.h.b16 %v296
    %v1683 = vunpack.c.l.b16 %v297
    %v1684 = vunpack.c.h.b16 %v297
    %v1685 = vunpack.c.l.b16 %v298
    %v1686 = vunpack.c.h.b16 %v298
    %v1687 = vunpack.c.l.b16 %v299
    %v1688 = vunpack.c.h.b16 %v299
    %v1689 = vunpack.c.l.b16 %v300
    %v1690 = vunpack.c.h.b16 %v300
    %v1691 = vunpack.c.l.b16 %v301
    %v1692 = vunpack.c.h.b16 %v301
    %v1693 = vunpack.c.l.b16 %v302
    %v1694 = vunpack.c.h.b16 %v302
    %v1695 = vunpack.c.l.b16 %v303
    %v1696 = vunpack.c.h.b16 %v303
    %v1697 = vunpack.c.l.b16 %v304
    %v1698 = vunpack.c.h.b16 %v304
    %v1699 = vunpack.c.l.b16 %v305
    %v1700 = vunpack.c.h.b16 %v305
    %v1701 = vunpack.c.l.b16 %v306
    %v1702 = vunpack.c.h.b16 %v306
    %v1703 = vunpack.c.l.b16 %v307
    %v1704 = vunpack.c.h.b16 %v307
    %v1705 = vunpack.c.l.b16 %v308
    %v1706 = vunpack.c.h.b16 %v308
    %v1707 = vunpack.c.l.b16 %v309
    %v1708 = vunpack.c.h.b16 %v309
    %v1709 = vunpack.c.l.b16 %v310
    %v1710 = vunpack.c.h.b16 %v310
    %v1711 = vunpack.c.l.b16 %v311
    %v1712 = vunpack.c.h.b16 %v311
    %v1713 = vunpack.c.l.b16 %v312
    %v1714 = vunpack.c.h.b16 %v312
    %v1715 = vunpack.c.l.b16 %v313
    %v1716 = vunpack.c.h.b16 %v313
    %v1717 = vunpack.c.l.b16 %v314
    %v1718 = vunpack.c.h.b16 %v314
    %v1719 = vunpack.c.l.b16 %v315
    %v1720 = vunpack.c.h.b16 %v315
    %v1721 = vunpack.c.l.b16 %v316
    %v1722 = vunpack.c.h.b16 %v316
    %v1723 = vunpack.c.l.b16 %v317
    %v1724 = vunpack.c.h.b16 %v317
    %v1725 = vunpack.c.l.b16 %v318
    %v1726 = vunpack.c.h.b16 %v318
    %v1727 = vunpack.c.l.b16 %v319
    %v1728 = vunpack.c.h.b16 %v319
    %v1729 = vunpack.c.l.b16 %v320
    %v1730 = vunpack.c.h.b16 %v320
    %v1731 = vunpack.c.l.b16 %v321
    %v1732 = vunpack.c.h.b16 %v321
    %v1733 = vunpack.c.l.b16 %v322
    %v1734 = vunpack.c.h.b16 %v322
    %v1735 = vunpack.c.l.b16 %v323
    %v1736 = vunpack.c.h.b16 %v323
    %v1737 = vunpack.c.l.b16 %v324
    %v1738 = vunpack.c.h.b16 %v324
    %v1739 = vunpack.c.l.b16 %v325
    %v1740 = vunpack.c.h.b16 %v325
    %v1741 = vunpack.c.l.b16 %v326
    %v1742 = vunpack.c.h.b16 %v326
    %v1743 = vunpack.c.l.b16 %v327
    %v1744 = vunpack.c.h.b16 %v327
    %v1745 = vunpack.c.l.b16 %v328
    %v1746 = vunpack.c.h.b16 %v328
    %v1747 = vunpack.c.l.b16 %v329
    %v1748 = vunpack.c.h.b16 %v329
    %v1749 = vunpack.c.l.b16 %v330
    %v1750 = vunpack.c.h.b16 %v330
    %v1751 = vunpack.c.l.b16 %v331
    %v1752 = vunpack.c.h.b16 %v331
    %v1753 = vunpack.c.l.b16 %v332
    %v1754 = vunpack.c.h.b16 %v332
    %v1755 = vunpack.c.l.b16 %v333
    %v1756 = vunpack.c.h.b16 %v333
    %v1757 = vunpack.c.l.b16 %v334
    %v1758 = vunpack.c.h.b16 %v334
    %v1759 = vunpack.c.l.b16 %v335
    %v1760 = vunpack.c.h.b16 %v335
    %v1761 = vunpack.c.l.b16 %v336
    %v1762 = vunpack.c.h.b16 %v336
    %v1763 = vunpack.c.l.b16 %v337
    %v1764 = vunpack.c.h.b16 %v337
    %v1765 = vunpack.c.l.b16 %v338
    %v1766 = vunpack.c.h.b16 %v338
    %v1767 = vunpack.c.l.b16 %v339
    %v1768 = vunpack.c.h.b16 %v339
    %v1769 = vunpack.c.l.b16 %v340
    %v1770 = vunpack.c.h.b16 %v340
    %v1771 = vunpack.c.l.b16 %v341
    %v1772 = vunpack.c.h.b16 %v341
    %v1773 = vunpack.c.l.b16 %v342
    %v1774 = vunpack.c.h.b16 %v342
    %v1775 = vunpack.c.l.b16 %v343
    %v1776 = vunpack.c.h.b16 %v343
    %v1777 = vunpack.c.l.b16 %v344
    %v1778 = vunpack.c.h.b16 %v344
    %v1779 = vunpack.c.l.b16 %v345
    %v1780 = vunpack.c.h.b16 %v345
    %v1781 = vunpack.c.l.b16 %v346
    %v1782 = vunpack.c.h.b16 %v346
    %v1783 = vunpack.c.l.b16 %v347
    %v1784 = vunpack.c.h.b16 %v347
    %v1785 = vunpack.c.l.b16 %v348
    %v1786 = vunpack.c.h.b16 %v348
    %v1787 = vunpack.c.l.b16 %v349
    %v1788 = vunpack.c.h.b16 %v349
    %v1789 = vunpack.c.l.b16 %v350
    %v1790 = vunpack.c.h.b16 %v350
    %v1791 = vunpack.c.l.b16 %v351
    %v1792 = vunpack.c.h.b16 %v351
    %v1793 = vunpack.c.l.b16 %v352
    %v1794 = vunpack.c.h.b16 %v352
    %v1795 = vunpack.c.l.b16 %v353
    %v1796 = vunpack.c.h.b16 %v353
    %v1797 = vunpack.c.l.b16 %v354
    %v1798 = vunpack.c.h.b16 %v354
    %v1799 = vunpack.c.l.b16 %v355
    %v1800 = vunpack.c.h.b16 %v355
    %v1801 = vunpack.c.l.b16 %v356
    %v1802 = vunpack.c.h.b16 %v356
    %v1803 = vunpack.c.l.b16 %v357
    %v1804 = vunpack.c.h.b16 %v357
    %v1805 = vunpack.c.l.b16 %v358
    %v1806 = vunpack.c.h.b16 %v358
    %v1807 = vunpack.c.l.b16 %v359
    %v1808 = vunpack.c.h.b16 %v359
    %v1809 = vunpack.c.l.b16 %v360
    %v1810 = vunpack.c.h.b16 %v360
    %v1811 = vunpack.c.l.b16 %v361
    %v1812 = vunpack.c.h.b16 %v361
    %v1813 = vunpack.c.l.b16 %v362
    %v1814 = vunpack.c.h.b16 %v362
    %v1815 = vunpack.c.l.b16 %v363
    %v1816 = vunpack.c.h.b16 %v363
    %v1817 = vunpack.c.l.b16 %v364
    %v1818 = vunpack.c.h.b16 %v364
    %v1819 = vunpack.c.l.b16 %v365
    %v1820 = vunpack.c.h.b16 %v365
    %v1821 = vunpack.c.l.b16 %v366
    %v1822 = vunpack.c.h.b16 %v366
    %v1823 = vunpack.c.l.b16 %v367
    %v1824 = vunpack.c.h.b16 %v367
    %v1825 = vunpack.c.l.b16 %v368
    %v1826 = vunpack.c.h.b16 %v368
    %v1827 = vunpack.c.l.b16 %v369
    %v1828 = vunpack.c.h.b16 %v369
    %v1829 = vunpack.c.l.b16 %v370
    %v1830 = vunpack.c.h.b16 %v370
    %v1831 = vunpack.c.l.b16 %v371
    %v1832 = vunpack.c.h.b16 %v371
    %v1833 = vunpack.c.l.b16 %v372
    %v1834 = vunpack.c.h.b16 %v372
    %v1835 = vunpack.c.l.b16 %v373
    %v1836 = vunpack.c.h.b16 %v373
    %v1837 = vunpack.c.l.b16 %v374
    %v1838 = vunpack.c.h.b16 %v374
    %v1839 = vunpack.c.l.b16 %v375
    %v1840 = vunpack.c.h.b16 %v375
    %v1841 = vunpack.c.l.b16 %v376
    %v1842 = vunpack.c.h.b16 %v376
    %v1843 = vunpack.c.l.b16 %v377
    %v1844 = vunpack.c.h.b16 %v377
    %v1845 = vunpack.c.l.b16 %v378
    %v1846 = vunpack.c.h.b16 %v378
    %v1847 = vunpack.c.l.b16 %v379
    %v1848 = vunpack.c.h.b16 %v379
    %v1849 = vunpack.c.l.b16 %v380
    %v1850 = vunpack.c.h.b16 %v380
    %v1851 = vunpack.c.l.b16 %v381
    %v1852 = vunpack.c.h.b16 %v381
    %v1853 = vunpack.c.l.b16 %v382
    %v1854 = vunpack.c.h.b16 %v382
    %v1855 = vunpack.c.l.b16 %v383
    %v1856 = vunpack.c.h.b16 %v383
    %v1857 = vunpack.c.l.b16 %v384
    %v1858 = vunpack.c.h.b16 %v384
    %v1859 = vunpack.c.l.b16 %v385
    %v1860 = vunpack.c.h.b16 %v385
    %v1861 = vunpack.c.l.b16 %v386
    %v1862 = vunpack.c.h.b16 %v386
    %v1863 = vunpack.c.l.b16 %v387
    %v1864 = vunpack.c.h.b16 %v387
    %v1865 = vunpack.c.l.b16 %v388
    %v1866 = vunpack.c.h.b16 %v388
    %v1867 = vunpack.c.l.b16 %v389
    %v1868 = vunpack.c.h.b16 %v389
    %v1869 = vunpack.c.l.b16 %v390
    %v1870 = vunpack.c.h.b16 %v390
    %v1871 = vunpack.c.l.b16 %v391
    %v1872 = vunpack.c.h.b16 %v391
    %v1873 = vunpack.c.l.b16 %v392
    %v1874 = vunpack.c.h.b16 %v392
    %v1875 = vunpack.c.l.b16 %v393
    %v1876 = vunpack.c.h.b16 %v393
    %v1877 = vunpack.c.l.b16 %v394
    %v1878 = vunpack.c.h.b16 %v394
    %v1879 = vunpack.c.l.b16 %v395
    %v1880 = vunpack.c.h.b16 %v395
    %v1881 = vunpack.c.l.b16 %v396
    %v1882 = vunpack.c.h.b16 %v396
    %v1883 = vunpack.c.l.b16 %v397
    %v1884 = vunpack.c.h.b16 %v397
    %v1885 = vunpack.c.l.b16 %v398
    %v1886 = vunpack.c.h.b16 %v398
    %v1887 = vunpack.c.l.b16 %v399
    %v1888 = vunpack.c.h.b16 %v399
    %v1889 = vunpack.c.l.b16 %v400
    %v1890 = vunpack.c.h.b16 %v400
    %v1891 = vunpack.c.l.b16 %v401
    %v1892 = vunpack.c.h.b16 %v401
    %v1893 = vunpack.c.l.b16 %v402
    %v1894 = vunpack.c.h.b16 %v402
    %v1895 = vunpack.c.l.b16 %v403
    %v1896 = vunpack.c.h.b16 %v403
    %v1897 = vunpack.c.l.b16 %v404
    %v1898 = vunpack.c.h.b16 %v404
    %v1899 = vunpack.c.l.b16 %v405
    %v1900 = vunpack.c.h.b16 %v405
    %v1901 = vunpack.c.l.b16 %v406
    %v1902 = vunpack.c.h.b16 %v406
    %v1903 = vunpack.c.l.b16 %v407
    %v1904 = vunpack.c.h.b16 %v407
    %v1905 = vunpack.c.l.b16 %v408
    %v1906 = vunpack.c.h.b16 %v408
    %v1907 = vunpack.c.l.b16 %v409
    %v1908 = vunpack.c.h.b16 %v409
    %v1909 = vunpack.c.l.b16 %v410
    %v1910 = vunpack.c.h.b16 %v410
    %v1911 = vunpack.c.l.b16 %v411
    %v1912 = vunpack.c.h.b16 %v411
    %v1913 = vunpack.c.l.b16 %v412
    %v1914 = vunpack.c.h.b16 %v412
    %v1915 = vunpack.c.l.b16 %v413
    %v1916 = vunpack.c.h.b16 %v413
    %v1917 = vunpack.c.l.b16 %v414
    %v1918 = vunpack.c.h.b16 %v414
    %v1919 = vunpack.c.l.b16 %v415
    %v1920 = vunpack.c.h.b16 %v415
    %v1921 = vunpack.c.l.b16 %v416
    %v1922 = vunpack.c.h.b16 %v416
    %v1923 = vunpack.c.l.b16 %v417
    %v1924 = vunpack.c.h.b16 %v417
    %v1925 = vunpack.c.l.b16 %v418
    %v1926 = vunpack.c.h.b16 %v418
    %v1927 = vunpack.c.l.b16 %v419
    %v1928 = vunpack.c.h.b16 %v419
    %v1929 = vunpack.c.l.b16 %v420
    %v1930 = vunpack.c.h.b16 %v420
    %v1931 = vunpack.c.l.b16 %v421
    %v1932 = vunpack.c.h.b16 %v421
    %v1933 = vunpack.c.l.b16 %v422
    %v1934 = vunpack.c.h.b16 %v422
    %v1935 = vunpack.c.l.b16 %v423
    %v1936 = vunpack.c.h.b16 %v423
    %v1937 = vunpack.c.l.b16 %v424
    %v1938 = vunpack.c.h.b16 %v424
    %v1939 = vunpack.c.l.b16 %v425
    %v1940 = vunpack.c.h.b16 %v425
    %v1941 = vunpack.c.l.b16 %v426
    %v1942 = vunpack.c.h.b16 %v426
    %v1943 = vunpack.c.l.b16 %v427
    %v1944 = vunpack.c.h.b16 %v427
    %v1945 = vunpack.c.l.b16 %v428
    %v1946 = vunpack.c.h.b16 %v428
    %v1947 = vunpack.c.l.b16 %v429
    %v1948 = vunpack.c.h.b16 %v429
    %v1949 = vunpack.c.l.b16 %v430
    %v1950 = vunpack.c.h.b16 %v430
    %v1951 = vunpack.c.l.b16 %v431
    %v1952 = vunpack.c.h.b16 %v431
    %v1953 = vunpack.c.l.b16 %v432
    %v1954 = vunpack.c.h.b16 %v432
    %v1955 = vunpack.c.l.b16 %v433
    %v1956 = vunpack.c.h.b16 %v433
    %v1957 = vunpack.c.l.b16 %v434
    %v1958 = vunpack.c.h.b16 %v434
    %v1959 = vunpack.c.l.b16 %v435
    %v1960 = vunpack.c.h.b16 %v435
    %v1961 = vunpack.c.l.b16 %v436
    %v1962 = vunpack.c.h.b16 %v436
    %v1963 = vunpack.c.l.b16 %v437
    %v1964 = vunpack.c.h.b16 %v437
    %v1965 = vunpack.c.l.b16 %v438
    %v1966 = vunpack.c.h.b16 %v438
    %v1967 = vunpack.c.l.b16 %v439
    %v1968 = vunpack.c.h.b16 %v439
    %v1969 = vunpack.c.l.b16 %v440
    %v1970 = vunpack.c.h.b16 %v440
    %v1971 = vunpack.c.l.b16 %v441
    %v1972 = vunpack.c.h.b16 %v441
    %v1973 = vunpack.c.l.b16 %v442
    %v1974 = vunpack.c.h.b16 %v442
    %v1975 = vunpack.c.l.b16 %v443
    %v1976 = vunpack.c.h.b16 %v443
    %v1977 = vunpack.c.l.b16 %v444
    %v1978 = vunpack.c.h.b16 %v444
    %v1979 = vunpack.c.l.b16 %v445
    %v1980 = vunpack.c.h.b16 %v445
    %v1981 = vunpack.c.l.b16 %v446
    %v1982 = vunpack.c.h.b16 %v446
    %v1983 = vunpack.c.l.b16 %v447
    %v1984 = vunpack.c.h.b16 %v447
    %v1985 = vunpack.c.l.b16 %v448
    %v1986 = vunpack.c.h.b16 %v448
    %v1987 = vunpack.c.l.b16 %v449
    %v1988 = vunpack.c.h.b16 %v449
    %v1989 = vunpack.c.l.b16 %v450
    %v1990 = vunpack.c.h.b16 %v450
    %v1991 = vunpack.c.l.b16 %v451
    %v1992 = vunpack.c.h.b16 %v451
    %v1993 = vunpack.c.l.b16 %v452
    %v1994 = vunpack.c.h.b16 %v452
    %v1995 = vunpack.c.l.b16 %v453
    %v1996 = vunpack.c.h.b16 %v453
    %v1997 = vunpack.c.l.b16 %v454
    %v1998 = vunpack.c.h.b16 %v454
    %v1999 = vunpack.c.l.b16 %v455
    %v2000 = vunpack.c.h.b16 %v455
    %v2001 = vunpack.c.l.b16 %v456
    %v2002 = vunpack.c.h.b16 %v456
    %v2003 = vunpack.c.l.b16 %v457
    %v2004 = vunpack.c.h.b16 %v457
    %v2005 = vunpack.c.l.b16 %v458
    %v2006 = vunpack.c.h.b16 %v458
    %v2007 = vunpack.c.l.b16 %v459
    %v2008 = vunpack.c.h.b16 %v459
    %v2009 = vunpack.c.l.b16 %v460
    %v2010 = vunpack.c.h.b16 %v460
    %v2011 = vunpack.c.l.b16 %v461
    %v2012 = vunpack.c.h.b16 %v461
    %v2013 = vunpack.c.l.b16 %v462
    %v2014 = vunpack.c.h.b16 %v462
    %v2015 = vunpack.c.l.b16 %v463
    %v2016 = vunpack.c.h.b16 %v463
    %v2017 = vunpack.c.l.b16 %v464
    %v2018 = vunpack.c.h.b16 %v464
    %v2019 = vunpack.c.l.b16 %v465
    %v2020 = vunpack.c.h.b16 %v465
    %v2021 = vunpack.c.l.b16 %v466
    %v2022 = vunpack.c.h.b16 %v466
    %v2023 = vunpack.c.l.b16 %v467
    %v2024 = vunpack.c.h.b16 %v467
    %v2025 = vunpack.c.l.b16 %v468
    %v2026 = vunpack.c.h.b16 %v468
    %v2027 = vunpack.c.l.b16 %v469
    %v2028 = vunpack.c.h.b16 %v469
    %v2029 = vunpack.c.l.b16 %v470
    %v2030 = vunpack.c.h.b16 %v470
    %v2031 = vunpack.c.l.b16 %v471
    %v2032 = vunpack.c.h.b16 %v471
    %v2033 = vunpack.c.l.b16 %v472
    %v2034 = vunpack.c.h.b16 %v472
    %v2035 = vunpack.c.l.b16 %v473
    %v2036 = vunpack.c.h.b16 %v473
    %v2037 = vunpack.c.l.b16 %v474
    %v2038 = vunpack.c.h.b16 %v474
    %v2039 = vunpack.c.l.b16 %v475
    %v2040 = vunpack.c.h.b16 %v475
    %v2041 = vunpack.c.l.b16 %v476
    %v2042 = vunpack.c.h.b16 %v476
    %v2043 = vunpack.c.l.b16 %v477
    %v2044 = vunpack.c.h.b16 %v477
    %v2045 = vunpack.c.l.b16 %v478
    %v2046 = vunpack.c.h.b16 %v478
    %v2047 = vunpack.c.l.b16 %v479
    %v2048 = vunpack.c.h.b16 %v479
    %v2049 = vunpack.c.l.b16 %v480
    %v2050 = vunpack.c.h.b16 %v480
    %v2051 = vunpack.c.l.b16 %v481
    %v2052 = vunpack.c.h.b16 %v481
    %v2053 = vunpack.c.l.b16 %v482
    %v2054 = vunpack.c.h.b16 %v482
    %v2055 = vunpack.c.l.b16 %v483
    %v2056 = vunpack.c.h.b16 %v483
    %v2057 = vunpack.c.l.b16 %v484
    %v2058 = vunpack.c.h.b16 %v484
    %v2059 = vunpack.c.l.b16 %v485
    %v2060 = vunpack.c.h.b16 %v485
    %v2061 = vunpack.c.l.b16 %v486
    %v2062 = vunpack.c.h.b16 %v486
    %v2063 = vunpack.c.l.b16 %v487
    %v2064 = vunpack.c.h.b16 %v487
    %v2065 = vunpack.c.l.b16 %v488
    %v2066 = vunpack.c.h.b16 %v488
    %v2067 = vunpack.c.l.b16 %v489
    %v2068 = vunpack.c.h.b16 %v489
    %v2069 = vunpack.c.l.b16 %v490
    %v2070 = vunpack.c.h.b16 %v490
    %v2071 = vunpack.c.l.b16 %v491
    %v2072 = vunpack.c.h.b16 %v491
    %v2073 = vunpack.c.l.b16 %v492
    %v2074 = vunpack.c.h.b16 %v492
    %v2075 = vunpack.c.l.b16 %v493
    %v2076 = vunpack.c.h.b16 %v493
    %v2077 = vunpack.c.l.b16 %v494
    %v2078 = vunpack.c.h.b16 %v494
    %v2079 = vunpack.c.l.b16 %v495
    %v2080 = vunpack.c.h.b16 %v495
    %v2081 = vunpack.c.l.b16 %v496
    %v2082 = vunpack.c.h.b16 %v496
    %v2083 = vunpack.c.l.b16 %v497
    %v2084 = vunpack.c.h.b16 %v497
    %v2085 = vunpack.c.l.b16 %v498
    %v2086 = vunpack.c.h.b16 %v498
    %v2087 = vunpack.c.l.b16 %v499
    %v2088 = vunpack.c.h.b16 %v499
    %v2089 = vunpack.c.l.b16 %v500
    %v2090 = vunpack.c.h.b16 %v500
    %v2091 = vunpack.c.l.b16 %v501
    %v2092 = vunpack.c.h.b16 %v501
    %v2093 = vunpack.c.l.b16 %v502
    %v2094 = vunpack.c.h.b16 %v502
    %v2095 = vunpack.c.l.b16 %v503
    %v2096 = vunpack.c.h.b16 %v503
    %v2097 = vunpack.c.l.b16 %v504
    %v2098 = vunpack.c.h.b16 %v504
    %v2099 = vunpack.c.l.b16 %v505
    %v2100 = vunpack.c.h.b16 %v505
    %v2101 = vunpack.c.l.b16 %v506
    %v2102 = vunpack.c.h.b16 %v506
    %v2103 = vunpack.c.l.b16 %v507
    %v2104 = vunpack.c.h.b16 %v507
    %v2105 = vunpack.c.l.b16 %v508
    %v2106 = vunpack.c.h.b16 %v508
    %v2107 = vunpack.c.l.b16 %v509
    %v2108 = vunpack.c.h.b16 %v509
    %v2109 = vunpack.c.l.b16 %v510
    %v2110 = vunpack.c.h.b16 %v510
    %v2111 = vunpack.c.l.b16 %v511
    %v2112 = vunpack.c.h.b16 %v511
    %v2113 = vunpack.c.l.b16 %v512
    %v2114 = vunpack.c.h.b16 %v512
    %v2115 = vunpack.c.l.b16 %v513
    %v2116 = vunpack.c.h.b16 %v513
    %v2117 = vunpack.c.l.b16 %v514
    %v2118 = vunpack.c.h.b16 %v514
    %v2119 = vunpack.c.l.b16 %v515
    %v2120 = vunpack.c.h.b16 %v515
    %v2121 = vunpack.c.l.b16 %v516
    %v2122 = vunpack.c.h.b16 %v516
    %v2123 = vunpack.c.l.b16 %v517
    %v2124 = vunpack.c.h.b16 %v517
    %v2125 = vunpack.c.l.b16 %v518
    %v2126 = vunpack.c.h.b16 %v518
    %v2127 = vunpack.c.l.b16 %v519
    %v2128 = vunpack.c.h.b16 %v519
    %v2129 = vunpack.c.l.b16 %v520
    %v2130 = vunpack.c.h.b16 %v520
    %v2131 = vunpack.c.l.b16 %v521
    %v2132 = vunpack.c.h.b16 %v521
    %v2133 = vunpack.c.l.b16 %v522
    %v2134 = vunpack.c.h.b16 %v522
    %v2135 = vunpack.c.l.b16 %v523
    %v2136 = vunpack.c.h.b16 %v523
    %v2137 = vunpack.c.l.b16 %v524
    %v2138 = vunpack.c.h.b16 %v524
    %v2139 = vunpack.c.l.b16 %v525
    %v2140 = vunpack.c.h.b16 %v525
    %v2141 = vunpack.c.l.b16 %v526
    %v2142 = vunpack.c.h.b16 %v526
    %v2143 = vunpack.c.l.b16 %v527
    %v2144 = vunpack.c.h.b16 %v527
    %v2145 = vunpack.c.l.b16 %v528
    %v2146 = vunpack.c.h.b16 %v528
    %v2147 = vunpack.c.l.b16 %v529
    %v2148 = vunpack.c.h.b16 %v529
    %v2149 = vunpack.c.l.b16 %v530
    %v2150 = vunpack.c.h.b16 %v530
    %v2151 = vunpack.c.l.b16 %v531
    %v2152 = vunpack.c.h.b16 %v531
    %v2153 = vunpack.c.l.b16 %v532
    %v2154 = vunpack.c.h.b16 %v532
    %v2155 = vunpack.c.l.b16 %v533
    %v2156 = vunpack.c.h.b16 %v533
    %v2157 = vunpack.c.l.b16 %v534
    %v2158 = vunpack.c.h.b16 %v534
    %v2159 = vunpack.c.l.b16 %v535
    %v2160 = vunpack.c.h.b16 %v535
    %v2161 = vunpack.c.l.b16 %v536
    %v2162 = vunpack.c.h.b16 %v536
    %v2163 = vunpack.c.l.b16 %v537
    %v2164 = vunpack.c.h.b16 %v537
    %v2165 = vunpack.c.l.b16 %v538
    %v2166 = vunpack.c.h.b16 %v538
    %v2167 = vunpack.c.l.b16 %v539
    %v2168 = vunpack.c.h.b16 %v539
    %v2169 = vunpack.c.l.b16 %v540
    %v2170 = vunpack.c.h.b16 %v540
    %v2171 = vunpack.c.l.b16 %v541
    %v2172 = vunpack.c.h.b16 %v541
    %v2173 = vunpack.c.l.b16 %v542
    %v2174 = vunpack.c.h.b16 %v542
    %v2175 = vunpack.c.l.b16 %v543
    %v2176 = vunpack.c.h.b16 %v543
    %v2177 = vunpack.c.l.b16 %v544
    %v2178 = vunpack.c.h.b16 %v544
    %v2179 = vunpack.c.l.b16 %v545
    %v2180 = vunpack.c.h.b16 %v545
    %v2181 = vunpack.c.l.b16 %v546
    %v2182 = vunpack.c.h.b16 %v546
    %v2183 = vunpack.c.l.b16 %v547
    %v2184 = vunpack.c.h.b16 %v547
    %v2185 = vunpack.c.l.b16 %v548
    %v2186 = vunpack.c.h.b16 %v548
    %v2187 = vunpack.c.l.b16 %v549
    %v2188 = vunpack.c.h.b16 %v549
    %v2189 = vunpack.c.l.b16 %v550
    %v2190 = vunpack.c.h.b16 %v550
    %v2191 = vunpack.c.l.b16 %v551
    %v2192 = vunpack.c.h.b16 %v551
    %v2193 = vunpack.c.l.b16 %v552
    %v2194 = vunpack.c.h.b16 %v552
    %v2195 = vunpack.c.l.b16 %v553
    %v2196 = vunpack.c.h.b16 %v553
    %v2197 = vunpack.c.l.b16 %v554
    %v2198 = vunpack.c.h.b16 %v554
    %v2199 = vunpack.c.l.b16 %v555
    %v2200 = vunpack.c.h.b16 %v555
    %v2201 = vunpack.c.l.b16 %v556
    %v2202 = vunpack.c.h.b16 %v556
    %v2203 = vunpack.c.l.b16 %v557
    %v2204 = vunpack.c.h.b16 %v557
    %v2205 = vunpack.c.l.b16 %v558
    %v2206 = vunpack.c.h.b16 %v558
    %v2207 = vunpack.c.l.b16 %v559
    %v2208 = vunpack.c.h.b16 %v559
    %v2209 = vunpack.c.l.b16 %v560
    %v2210 = vunpack.c.h.b16 %v560
    %v2211 = vunpack.c.l.b16 %v561
    %v2212 = vunpack.c.h.b16 %v561
    %v2213 = vunpack.c.l.b16 %v562
    %v2214 = vunpack.c.h.b16 %v562
    %v2215 = vunpack.c.l.b16 %v563
    %v2216 = vunpack.c.h.b16 %v563
    %v2217 = vunpack.c.l.b16 %v564
    %v2218 = vunpack.c.h.b16 %v564
    %v2219 = vunpack.c.l.b16 %v565
    %v2220 = vunpack.c.h.b16 %v565
    %v2221 = vunpack.c.l.b16 %v566
    %v2222 = vunpack.c.h.b16 %v566
    %v2223 = vunpack.c.l.b16 %v567
    %v2224 = vunpack.c.h.b16 %v567
    %v2225 = vunpack.c.l.b16 %v568
    %v2226 = vunpack.c.h.b16 %v568
    %v2227 = vunpack.c.l.b16 %v569
    %v2228 = vunpack.c.h.b16 %v569
    %v2229 = vunpack.c.l.b16 %v570
    %v2230 = vunpack.c.h.b16 %v570
    %v2231 = vunpack.c.l.b16 %v571
    %v2232 = vunpack.c.h.b16 %v571
    %v2233 = vunpack.c.l.b16 %v572
    %v2234 = vunpack.c.h.b16 %v572
    %v2235 = vunpack.c.l.b16 %v573
    %v2236 = vunpack.c.h.b16 %v573
    %v2237 = vunpack.c.l.b16 %v574
    %v2238 = vunpack.c.h.b16 %v574
    %v2239 = vunpack.c.l.b16 %v575
    %v2240 = vunpack.c.h.b16 %v575
    %v2241 = vunpack.c.l.b16 %v576
    %v2242 = vunpack.c.h.b16 %v576
    %v2243 = vunpack.c.l.b16 %v577
    %v2244 = vunpack.c.h.b16 %v577
    %v2245 = vunpack.c.l.b16 %v578
    %v2246 = vunpack.c.h.b16 %v578
    %v2247 = vunpack.c.l.b16 %v579
    %v2248 = vunpack.c.h.b16 %v579
    %v2249 = vunpack.c.l.b16 %v580
    %v2250 = vunpack.c.h.b16 %v580
    %v2251 = vunpack.c.l.b16 %v581
    %v2252 = vunpack.c.h.b16 %v581
    %v2253 = vunpack.c.l.b16 %v582
    %v2254 = vunpack.c.h.b16 %v582
    %v2255 = vunpack.c.l.b16 %v583
    %v2256 = vunpack.c.h.b16 %v583
    %v2257 = vunpack.c.l.b16 %v584
    %v2258 = vunpack.c.h.b16 %v584
    %v2259 = vunpack.c.l.b16 %v585
    %v2260 = vunpack.c.h.b16 %v585
    %v2261 = vunpack.c.l.b16 %v586
    %v2262 = vunpack.c.h.b16 %v586
    %v2263 = vunpack.c.l.b16 %v587
    %v2264 = vunpack.c.h.b16 %v587
    %v2265 = vunpack.c.l.b16 %v588
    %v2266 = vunpack.c.h.b16 %v588
    %v2267 = vunpack.c.l.b16 %v589
    %v2268 = vunpack.c.h.b16 %v589
    %v2269 = vunpack.c.l.b16 %v590
    %v2270 = vunpack.c.h.b16 %v590
    %v2271 = vunpack.c.l.b16 %v591
    %v2272 = vunpack.c.h.b16 %v591
    %v2273 = vunpack.c.l.b16 %v592
    %v2274 = vunpack.c.h.b16 %v592
    %v2275 = vunpack.c.l.b16 %v593
    %v2276 = vunpack.c.h.b16 %v593
    %v2277 = vunpack.c.l.b16 %v594
    %v2278 = vunpack.c.h.b16 %v594
    %v2279 = vunpack.c.l.b16 %v595
    %v2280 = vunpack.c.h.b16 %v595
    %v2281 = vunpack.c.l.b16 %v596
    %v2282 = vunpack.c.h.b16 %v596
    %v2283 = vunpack.c.l.b16 %v597
    %v2284 = vunpack.c.h.b16 %v597
    %v2285 = vunpack.c.l.b16 %v598
    %v2286 = vunpack.c.h.b16 %v598
    %v2287 = vunpack.c.l.b16 %v599
    %v2288 = vunpack.c.h.b16 %v599
    %v2289 = vunpack.c.l.b16 %v600
    %v2290 = vunpack.c.h.b16 %v600
    %v2291 = vunpack.c.l.b16 %v601
    %v2292 = vunpack.c.h.b16 %v601
    %v2293 = vunpack.c.l.b16 %v602
    %v2294 = vunpack.c.h.b16 %v602
    %v2295 = vunpack.c.l.b16 %v603
    %v2296 = vunpack.c.h.b16 %v603
    %v2297 = vunpack.c.l.b16 %v604
    %v2298 = vunpack.c.h.b16 %v604
    %v2299 = vunpack.c.l.b16 %v605
    %v2300 = vunpack.c.h.b16 %v605
    %v2301 = vunpack.c.l.b16 %v606
    %v2302 = vunpack.c.h.b16 %v606
    %v2303 = vunpack.c.l.b16 %v607
    %v2304 = vunpack.c.h.b16 %v607
    %v2305 = vunpack.c.l.b16 %v608
    %v2306 = vunpack.c.h.b16 %v608
    %v2307 = vunpack.c.l.b16 %v609
    %v2308 = vunpack.c.h.b16 %v609
    %v2309 = vunpack.c.l.b16 %v610
    %v2310 = vunpack.c.h.b16 %v610
    %v2311 = vunpack.c.l.b16 %v611
    %v2312 = vunpack.c.h.b16 %v611
    %v2313 = vunpack.c.l.b16 %v612
    %v2314 = vunpack.c.h.b16 %v612
    %v2315 = vunpack.c.l.b16 %v613
    %v2316 = vunpack.c.h.b16 %v613
    %v2317 = vunpack.c.l.b16 %v614
    %v2318 = vunpack.c.h.b16 %v614
    %v2319 = vunpack.c.l.b16 %v615
    %v2320 = vunpack.c.h.b16 %v615
    %v2321 = vunpack.c.l.b16 %v616
    %v2322 = vunpack.c.h.b16 %v616
    %v2323 = vunpack.c.l.b16 %v617
    %v2324 = vunpack.c.h.b16 %v617
    %v2325 = vunpack.c.l.b16 %v618
    %v2326 = vunpack.c.h.b16 %v618
    %v2327 = vunpack.c.l.b16 %v619
    %v2328 = vunpack.c.h.b16 %v619
    %v2329 = vunpack.c.l.b16 %v620
    %v2330 = vunpack.c.h.b16 %v620
    %v2331 = vunpack.c.l.b16 %v621
    %v2332 = vunpack.c.h.b16 %v621
    %v2333 = vunpack.c.l.b16 %v622
    %v2334 = vunpack.c.h.b16 %v622
    %v2335 = vunpack.c.l.b16 %v623
    %v2336 = vunpack.c.h.b16 %v623
    %v2337 = vunpack.c.l.b16 %v624
    %v2338 = vunpack.c.h.b16 %v624
    %v2339 = vunpack.c.l.b16 %v625
    %v2340 = vunpack.c.h.b16 %v625
    %v2341 = vunpack.c.l.b16 %v626
    %v2342 = vunpack.c.h.b16 %v626
    %v2343 = vunpack.c.l.b16 %v627
    %v2344 = vunpack.c.h.b16 %v627
    %v2345 = vunpack.c.l.b16 %v628
    %v2346 = vunpack.c.h.b16 %v628
    %v2347 = vunpack.c.l.b16 %v629
    %v2348 = vunpack.c.h.b16 %v629
    %v2349 = vunpack.c.l.b16 %v630
    %v2350 = vunpack.c.h.b16 %v630
    %v2351 = vunpack.c.l.b16 %v631
    %v2352 = vunpack.c.h.b16 %v631
    %v2353 = vunpack.c.l.b16 %v632
    %v2354 = vunpack.c.h.b16 %v632
    %v2355 = vunpack.c.l.b16 %v633
    %v2356 = vunpack.c.h.b16 %v633
    %v2357 = vunpack.c.l.b16 %v634
    %v2358 = vunpack.c.h.b16 %v634
    %v2359 = vunpack.c.l.b16 %v635
    %v2360 = vunpack.c.h.b16 %v635
    %v2361 = vunpack.c.l.b16 %v636
    %v2362 = vunpack.c.h.b16 %v636
    %v2363 = vunpack.c.l.b16 %v637
    %v2364 = vunpack.c.h.b16 %v637
    %v2365 = vunpack.c.l.b16 %v638
    %v2366 = vunpack.c.h.b16 %v638
    %v2367 = vunpack.c.l.b16 %v639
    %v2368 = vunpack.c.h.b16 %v639
    %v2369 = vunpack.c.l.b16 %v640
    %v2370 = vunpack.c.h.b16 %v640
    %v2371 = vunpack.c.l.b16 %v641
    %v2372 = vunpack.c.h.b16 %v641
    %v2373 = vunpack.c.l.b16 %v642
    %v2374 = vunpack.c.h.b16 %v642
    %v2375 = vunpack.c.l.b16 %v643
    %v2376 = vunpack.c.h.b16 %v643
    %v2377 = vunpack.c.l.b16 %v644
    %v2378 = vunpack.c.h.b16 %v644
    %v2379 = vunpack.c.l.b16 %v645
    %v2380 = vunpack.c.h.b16 %v645
    %v2381 = vunpack.c.l.b16 %v646
    %v2382 = vunpack.c.h.b16 %v646
    %v2383 = vunpack.c.l.b16 %v647
    %v2384 = vunpack.c.h.b16 %v647
    %v2385 = vunpack.c.l.b16 %v648
    %v2386 = vunpack.c.h.b16 %v648
    %v2387 = vunpack.c.l.b16 %v649
    %v2388 = vunpack.c.h.b16 %v649
    %v2389 = vunpack.c.l.b16 %v650
    %v2390 = vunpack.c.h.b16 %v650
    %v2391 = vunpack.c.l.b16 %v651
    %v2392 = vunpack.c.h.b16 %v651
    %v2393 = vunpack.c.l.b16 %v652
    %v2394 = vunpack.c.h.b16 %v652
    %v2395 = vunpack.c.l.b16 %v653
    %v2396 = vunpack.c.h.b16 %v653
    %v2397 = vunpack.c.l.b16 %v654
    %v2398 = vunpack.c.h.b16 %v654
    %v2399 = vunpack.c.l.b16 %v655
    %v2400 = vunpack.c.h.b16 %v655
    %v2401 = vunpack.c.l.b16 %v656
    %v2402 = vunpack.c.h.b16 %v656
    %v2403 = vunpack.c.l.b16 %v657
    %v2404 = vunpack.c.h.b16 %v657
    %v2405 = vunpack.c.l.b16 %v658
    %v2406 = vunpack.c.h.b16 %v658
    %v2407 = vunpack.c.l.b16 %v659
    %v2408 = vunpack.c.h.b16 %v659
    %v2409 = vunpack.c.l.b16 %v660
    %v2410 = vunpack.c.h.b16 %v660
    %v2411 = vunpack.c.l.b16 %v661
    %v2412 = vunpack.c.h.b16 %v661
    %v2413 = vunpack.c.l.b16 %v662
    %v2414 = vunpack.c.h.b16 %v662
    %v2415 = vunpack.c.l.b16 %v663
    %v2416 = vunpack.c.h.b16 %v663
    %v2417 = vunpack.c.l.b16 %v664
    %v2418 = vunpack.c.h.b16 %v664
    %v2419 = vunpack.c.l.b16 %v665
    %v2420 = vunpack.c.h.b16 %v665
    %v2421 = vunpack.c.l.b16 %v666
    %v2422 = vunpack.c.h.b16 %v666
    %v2423 = vunpack.c.l.b16 %v667
    %v2424 = vunpack.c.h.b16 %v667
    %v2425 = vunpack.c.l.b16 %v668
    %v2426 = vunpack.c.h.b16 %v668
    %v2427 = vunpack.c.l.b16 %v669
    %v2428 = vunpack.c.h.b16 %v669
    %v2429 = vunpack.c.l.b16 %v670
    %v2430 = vunpack.c.h.b16 %v670
    %v2431 = vpack.c.b16 %v1285, %v1279
    %v2432 = vpack.c.b16 %v1286, %v1280
    %v2433 = vpack.c.b16 %v1287, %v1281
    %v2434 = vpack.c.b16 %v1288, %v1282
    %v2435 = vpack.c.b16 %v1289, %v1283
    %v2436 = vpack.c.b16 %v1290, %v1284
    %v2437 = vpack.c.b16 %v1297, %v1291
    %v2438 = vpack.c.b16 %v1298, %v1292
    %v2439 = vpack.c.b16 %v1299, %v1293
    %v2440 = vpack.c.b16 %v1300, %v1294
    %v2441 = vpack.c.b16 %v1301, %v1295
    %v2442 = vpack.c.b16 %v1302, %v1296
    %v2443 = vpack.c.b16 %v1309, %v1303
    %v2444 = vpack.c.b16 %v1310, %v1304
    %v2445 = vpack.c.b16 %v1311, %v1305
    %v2446 = vpack.c.b16 %v1312, %v1306
    %v2447 = vpack.c.b16 %v1313, %v1307
    %v2448 = vpack.c.b16 %v1314, %v1308
    %v2449 = vpack.c.b16 %v1321, %v1315
    %v2450 = vpack.c.b16 %v1322, %v1316
    %v2451 = vpack.c.b16 %v1323, %v1317
    %v2452 = vpack.c.b16 %v1324, %v1318
    %v2453 = vpack.c.b16 %v1325, %v1319
    %v2454 = vpack.c.b16 %v1326, %v1320
    %v2455 = vpack.c.b16 %v1333, %v1327
    %v2456 = vpack.c.b16 %v1334, %v1328
    %v2457 = vpack.c.b16 %v1335, %v1329
    %v2458 = vpack.c.b16 %v1336, %v1330
    %v2459 = vpack.c.b16 %v1337, %v1331
    %v2460 = vpack.c.b16 %v1338, %v1332
    %v2461 = vpack.c.b16 %v1345, %v1339
    %v2462 = vpack.c.b16 %v1346, %v1340
    %v2463 = vpack.c.b16 %v1347, %v1341
    %v2464 = vpack.c.b16 %v1348, %v1342
    %v2465 = vpack.c.b16 %v1349, %v1343
    %v2466 = vpack.c.b16 %v1350, %v1344
    %v2467 = vpack.c.b16 %v1357, %v1351
    %v2468 = vpack.c.b16 %v1358, %v1352
    %v2469 = vpack.c.b16 %v1359, %v1353
    %v2470 = vpack.c.b16 %v1360, %v1354
    %v2471 = vpack.c.b16 %v1361, %v1355
    %v2472 = vpack.c.b16 %v1362, %v1356
    %v2473 = vpack.c.b16 %v1369, %v1363
    %v2474 = vpack.c.b16 %v1370, %v1364
    %v2475 = vpack.c.b16 %v1371, %v1365
    %v2476 = vpack.c.b16 %v1372, %v1366
    %v2477 = vpack.c.b16 %v1373, %v1367
    %v2478 = vpack.c.b16 %v1374, %v1368
    %v2479 = vpack.c.b16 %v1381, %v1375
    %v2480 = vpack.c.b16 %v1382, %v1376
    %v2481 = vpack.c.b16 %v1383, %v1377
    %v2482 = vpack.c.b16 %v1384, %v1378
    %v2483 = vpack.c.b16 %v1385, %v1379
    %v2484 = vpack.c.b16 %v1386, %v1380
    %v2485 = vpack.c.b16 %v1393, %v1387
    %v2486 = vpack.c.b16 %v1394, %v1388
    %v2487 = vpack.c.b16 %v1395, %v1389
    %v2488 = vpack.c.b16 %v1396, %v1390
    %v2489 = vpack.c.b16 %v1397, %v1391
    %v2490 = vpack.c.b16 %v1398, %v1392
    %v2491 = vpack.c.b16 %v1405, %v1399
    %v2492 = vpack.c.b16 %v1406, %v1400
    %v2493 = vpack.c.b16 %v1407, %v1401
    %v2494 = vpack.c.b16 %v1408, %v1402
    %v2495 = vpack.c.b16 %v1409, %v1403
    %v2496 = vpack.c.b16 %v1410, %v1404
    %v2497 = vpack.c.b16 %v1417, %v1411
    %v2498 = vpack.c.b16 %v1418, %v1412
    %v2499 = vpack.c.b16 %v1419, %v1413
    %v2500 = vpack.c.b16 %v1420, %v1414
    %v2501 = vpack.c.b16 %v1421, %v1415
    %v2502 = vpack.c.b16 %v1422, %v1416
    %v2503 = vpack.c.b16 %v1429, %v1423
    %v2504 = vpack.c.b16 %v1430, %v1424
    %v2505 = vpack.c.b16 %v1431, %v1425
    %v2506 = vpack.c.b16 %v1432, %v1426
    %v2507 = vpack.c.b16 %v1433, %v1427
    %v2508 = vpack.c.b16 %v1434, %v1428
    %v2509 = vpack.c.b16 %v1441, %v1435
    %v2510 = vpack.c.b16 %v1442, %v1436
    %v2511 = vpack.c.b16 %v1443, %v1437
    %v2512 = vpack.c.b16 %v1444, %v1438
    %v2513 = vpack.c.b16 %v1445, %v1439
    %v2514 = vpack.c.b16 %v1446, %v1440
    %v2515 = vpack.c.b16 %v1453, %v1447
    %v2516 = vpack.c.b16 %v1454, %v1448
    %v2517 = vpack.c.b16 %v1455, %v1449
    %v2518 = vpack.c.b16 %v1456, %v1450
    %v2519 = vpack.c.b16 %v1457, %v1451
    %v2520 = vpack.c.b16 %v1458, %v1452
    %v2521 = vpack.c.b16 %v1465, %v1459
    %v2522 = vpack.c.b16 %v1466, %v1460
    %v2523 = vpack.c.b16 %v1467, %v1461
    %v2524 = vpack.c.b16 %v1468, %v1462
    %v2525 = vpack.c.b16 %v1469, %v1463
    %v2526 = vpack.c.b16 %v1470, %v1464
    %v2527 = vpack.c.b16 %v1477, %v1471
    %v2528 = vpack.c.b16 %v1478, %v1472
    %v2529 = vpack.c.b16 %v1479, %v1473
    %v2530 = vpack.c.b16 %v1480, %v1474
    %v2531 = vpack.c.b16 %v1481, %v1475
    %v2532 = vpack.c.b16 %v1482, %v1476
    %v2533 = vpack.c.b16 %v1489, %v1483
    %v2534 = vpack.c.b16 %v1490, %v1484
    %v2535 = vpack.c.b16 %v1491, %v1485
    %v2536 = vpack.c.b16 %v1492, %v1486
    %v2537 = vpack.c.b16 %v1493, %v1487
    %v2538 = vpack.c.b16 %v1494, %v1488
    %v2539 = vpack.c.b16 %v1501, %v1495
    %v2540 = vpack.c.b16 %v1502, %v1496
    %v2541 = vpack.c.b16 %v1503, %v1497
    %v2542 = vpack.c.b16 %v1504, %v1498
    %v2543 = vpack.c.b16 %v1505, %v1499
    %v2544 = vpack.c.b16 %v1506, %v1500
    %v2545 = vpack.c.b16 %v1513, %v1507
    %v2546 = vpack.c.b16 %v1514, %v1508
    %v2547 = vpack.c.b16 %v1515, %v1509
    %v2548 = vpack.c.b16 %v1516, %v1510
    %v2549 = vpack.c.b16 %v1517, %v1511
    %v2550 = vpack.c.b16 %v1518, %v1512
    %v2551 = vpack.c.b16 %v1525, %v1519
    %v2552 = vpack.c.b16 %v1526, %v1520
    %v2553 = vpack.c.b16 %v1527, %v1521
    %v2554 = vpack.c.b16 %v1528, %v1522
    %v2555 = vpack.c.b16 %v1529, %v1523
    %v2556 = vpack.c.b16 %v1530, %v1524
    %v2557 = vpack.c.b16 %v1537, %v1531
    %v2558 = vpack.c.b16 %v1538, %v1532
    %v2559 = vpack.c.b16 %v1539, %v1533
    %v2560 = vpack.c.b16 %v1540, %v1534
    %v2561 = vpack.c.b16 %v1541, %v1535
    %v2562 = vpack.c.b16 %v1542, %v1536
    %v2563 = vpack.c.b16 %v1549, %v1543
    %v2564 = vpack.c.b16 %v1550, %v1544
    %v2565 = vpack.c.b16 %v1551, %v1545
    %v2566 = vpack.c.b16 %v1552, %v1546
    %v2567 = vpack.c.b16 %v1553, %v1547
    %v2568 = vpack.c.b16 %v1554, %v1548
    %v2569 = vpack.c.b16 %v1561, %v1555
    %v2570 = vpack.c.b16 %v1562, %v1556
    %v2571 = vpack.c.b16 %v1563, %v1557
    %v2572 = vpack.c.b16 %v1564, %v1558
    %v2573 = vpack.c.b16 %v1565, %v1559
    %v2574 = vpack.c.b16 %v1566, %v1560
    %v2575 = vpack.c.b16 %v1573, %v1567
    %v2576 = vpack.c.b16 %v1574, %v1568
    %v2577 = vpack.c.b16 %v1575, %v1569
    %v2578 = vpack.c.b16 %v1576, %v1570
    %v2579 = vpack.c.b16 %v1577, %v1571
    %v2580 = vpack.c.b16 %v1578, %v1572
    %v2581 = vpack.c.b16 %v1585, %v1579
    %v2582 = vpack.c.b16 %v1586, %v1580
    %v2583 = vpack.c.b16 %v1587, %v1581
    %v2584 = vpack.c.b16 %v1588, %v1582
    %v2585 = vpack.c.b16 %v1589, %v1583
    %v2586 = vpack.c.b16 %v1590, %v1584
    %v2587 = vpack.c.b16 %v1597, %v1591
    %v2588 = vpack.c.b16 %v1598, %v1592
    %v2589 = vpack.c.b16 %v1599, %v1593
    %v2590 = vpack.c.b16 %v1600, %v1594
    %v2591 = vpack.c.b16 %v1601, %v1595
    %v2592 = vpack.c.b16 %v1602, %v1596
    %v2593 = vpack.c.b16 %v1609, %v1603
    %v2594 = vpack.c.b16 %v1610, %v1604
    %v2595 = vpack.c.b16 %v1611, %v1605
    %v2596 = vpack.c.b16 %v1612, %v1606
    %v2597 = vpack.c.b16 %v1613, %v1607
    %v2598 = vpack.c.b16 %v1614, %v1608
    %v2599 = vpack.c.b16 %v1621, %v1615
    %v2600 = vpack.c.b16 %v1622, %v1616
    %v2601 = vpack.c.b16 %v1623, %v1617
    %v2602 = vpack.c.b16 %v1624, %v1618
    %v2603 = vpack.c.b16 %v1625, %v1619
    %v2604 = vpack.c.b16 %v1626, %v1620
    %v2605 = vpack.c.b16 %v1633, %v1627
    %v2606 = vpack.c.b16 %v1634, %v1628
    %v2607 = vpack.c.b16 %v1635, %v1629
    %v2608 = vpack.c.b16 %v1636, %v1630
    %v2609 = vpack.c.b16 %v1637, %v1631
    %v2610 = vpack.c.b16 %v1638, %v1632
    %v2611 = vpack.c.b16 %v1645, %v1639
    %v2612 = vpack.c.b16 %v1646, %v1640
    %v2613 = vpack.c.b16 %v1647, %v1641
    %v2614 = vpack.c.b16 %v1648, %v1642
    %v2615 = vpack.c.b16 %v1649, %v1643
    %v2616 = vpack.c.b16 %v1650, %v1644
    %v2617 = vpack.c.b16 %v1657, %v1651
    %v2618 = vpack.c.b16 %v1658, %v1652
    %v2619 = vpack.c.b16 %v1659, %v1653
    %v2620 = vpack.c.b16 %v1660, %v1654
    %v2621 = vpack.c.b16 %v1661, %v1655
    %v2622 = vpack.c.b16 %v1662, %v1656
    %v2623 = vpack.c.b16 %v1669, %v1663
    %v2624 = vpack.c.b16 %v1670, %v1664
    %v2625 = vpack.c.b16 %v1671, %v1665
    %v2626 = vpack.c.b16 %v1672, %v1666
    %v2627 = vpack.c.b16 %v1673, %v1667
    %v2628 = vpack.c.b16 %v1674, %v1668
    %v2629 = vpack.c.b16 %v1681, %v1675
    %v2630 = vpack.c.b16 %v1682, %v1676
    %v2631 = vpack.c.b16 %v1683, %v1677
    %v2632 = vpack.c.b16 %v1684, %v1678
    %v2633 = vpack.c.b16 %v1685, %v1679
    %v2634 = vpack.c.b16 %v1686, %v1680
    %v2635 = vpack.c.b16 %v1693, %v1687
    %v2636 = vpack.c.b16 %v1694, %v1688
    %v2637 = vpack.c.b16 %v1695, %v1689
    %v2638 = vpack.c.b16 %v1696, %v1690
    %v2639 = vpack.c.b16 %v1697, %v1691
    %v2640 = vpack.c.b16 %v1698, %v1692
    %v2641 = vpack.c.b16 %v1705, %v1699
    %v2642 = vpack.c.b16 %v1706, %v1700
    %v2643 = vpack.c.b16 %v1707, %v1701
    %v2644 = vpack.c.b16 %v1708, %v1702
    %v2645 = vpack.c.b16 %v1709, %v1703
    %v2646 = vpack.c.b16 %v1710, %v1704
    %v2647 = vpack.c.b16 %v1717, %v1711
    %v2648 = vpack.c.b16 %v1718, %v1712
    %v2649 = vpack.c.b16 %v1719, %v1713
    %v2650 = vpack.c.b16 %v1720, %v1714
    %v2651 = vpack.c.b16 %v1721, %v1715
    %v2652 = vpack.c.b16 %v1722, %v1716
    %v2653 = vpack.c.b16 %v1729, %v1723
    %v2654 = vpack.c.b16 %v1730, %v1724
    %v2655 = vpack.c.b16 %v1731, %v1725
    %v2656 = vpack.c.b16 %v1732, %v1726
    %v2657 = vpack.c.b16 %v1733, %v1727
    %v2658 = vpack.c.b16 %v1734, %v1728
    %v2659 = vpack.c.b16 %v1741, %v1735
    %v2660 = vpack.c.b16 %v1742, %v1736
    %v2661 = vpack.c.b16 %v1743, %v1737
    %v2662 = vpack.c.b16 %v1744, %v1738
    %v2663 = vpack.c.b16 %v1745, %v1739
    %v2664 = vpack.c.b16 %v1746, %v1740
    %v2665 = vpack.c.b16 %v1753, %v1747
    %v2666 = vpack.c.b16 %v1754, %v1748
    %v2667 = vpack.c.b16 %v1755, %v1749
    %v2668 = vpack.c.b16 %v1756, %v1750
    %v2669 = vpack.c.b16 %v1757, %v1751
    %v2670 = vpack.c.b16 %v1758, %v1752
    %v2671 = vpack.c.b16 %v1765, %v1759
    %v2672 = vpack.c.b16 %v1766, %v1760
    %v2673 = vpack.c.b16 %v1767, %v1761
    %v2674 = vpack.c.b16 %v1768, %v1762
    %v2675 = vpack.c.b16 %v1769, %v1763
    %v2676 = vpack.c.b16 %v1770, %v1764
    %v2677 = vpack.c.b16 %v1777, %v1771
    %v2678 = vpack.c.b16 %v1778, %v1772
    %v2679 = vpack.c.b16 %v1779, %v1773
    %v2680 = vpack.c.b16 %v1780, %v1774
    %v2681 = vpack.c.b16 %v1781, %v1775
    %v2682 = vpack.c.b16 %v1782, %v1776
    %v2683 = vpack.c.b16 %v1789, %v1783
    %v2684 = vpack.c.b16 %v1790, %v1784
    %v2685 = vpack.c.b16 %v1791, %v1785
    %v2686 = vpack.c.b16 %v1792, %v1786
    %v2687 = vpack.c.b16 %v1793, %v1787
    %v2688 = vpack.c.b16 %v1794, %v1788
    %v2689 = vpack.c.b16 %v1801, %v1795
    %v2690 = vpack.c.b16 %v1802, %v1796
    %v2691 = vpack.c.b16 %v1803, %v1797
    %v2692 = vpack.c.b16 %v1804, %v1798
    %v2693 = vpack.c.b16 %v1805, %v1799
    %v2694 = vpack.c.b16 %v1806, %v1800
    %v2695 = vpack.c.b16 %v1813, %v1807
    %v2696 = vpack.c.b16 %v1814, %v1808
    %v2697 = vpack.c.b16 %v1815, %v1809
    %v2698 = vpack.c.b16 %v1816, %v1810
    %v2699 = vpack.c.b16 %v1817, %v1811
    %v2700 = vpack.c.b16 %v1818, %v1812
    %v2701 = vpack.c.b16 %v1825, %v1819
    %v2702 = vpack.c.b16 %v1826, %v1820
    %v2703 = vpack.c.b16 %v1827, %v1821
    %v2704 = vpack.c.b16 %v1828, %v1822
    %v2705 = vpack.c.b16 %v1829, %v1823
    %v2706 = vpack.c.b16 %v1830, %v1824
    %v2707 = vpack.c.b16 %v1837, %v1831
    %v2708 = vpack.c.b16 %v1838, %v1832
    %v2709 = vpack.c.b16 %v1839, %v1833
    %v2710 = vpack.c.b16 %v1840, %v1834
    %v2711 = vpack.c.b16 %v1841, %v1835
    %v2712 = vpack.c.b16 %v1842, %v1836
    %v2713 = vpack.c.b16 %v1849, %v1843
    %v2714 = vpack.c.b16 %v1850, %v1844
    %v2715 = vpack.c.b16 %v1851, %v1845
    %v2716 = vpack.c.b16 %v1852, %v1846
    %v2717 = vpack.c.b16 %v1853, %v1847
    %v2718 = vpack.c.b16 %v1854, %v1848
    %v2719 = vpack.c.b16 %v1861, %v1855
    %v2720 = vpack.c.b16 %v1862, %v1856
    %v2721 = vpack.c.b16 %v1863, %v1857
    %v2722 = vpack.c.b16 %v1864, %v1858
    %v2723 = vpack.c.b16 %v1865, %v1859
    %v2724 = vpack.c.b16 %v1866, %v1860
    %v2725 = vpack.c.b16 %v1873, %v1867
    %v2726 = vpack.c.b16 %v1874, %v1868
    %v2727 = vpack.c.b16 %v1875, %v1869
    %v2728 = vpack.c.b16 %v1876, %v1870
    %v2729 = vpack.c.b16 %v1877, %v1871
    %v2730 = vpack.c.b16 %v1878, %v1872
    %v2731 = vpack.c.b16 %v1885, %v1879
    %v2732 = vpack.c.b16 %v1886, %v1880
    %v2733 = vpack.c.b16 %v1887, %v1881
    %v2734 = vpack.c.b16 %v1888, %v1882
    %v2735 = vpack.c.b16 %v1889, %v1883
    %v2736 = vpack.c.b16 %v1890, %v1884
    %v2737 = vpack.c.b16 %v1897, %v1891
    %v2738 = vpack.c.b16 %v1898, %v1892
    %v2739 = vpack.c.b16 %v1899, %v1893
    %v2740 = vpack.c.b16 %v1900, %v1894
    %v2741 = vpack.c.b16 %v1901, %v1895
    %v2742 = vpack.c.b16 %v1902, %v1896
    %v2743 = vpack.c.b16 %v1909, %v1903
    %v2744 = vpack.c.b16 %v1910, %v1904
    %v2745 = vpack.c.b16 %v1911, %v1905
    %v2746 = vpack.c.b16 %v1912, %v1906
    %v2747 = vpack.c.b16 %v1913, %v1907
    %v2748 = vpack.c.b16 %v1914, %v1908
    %v2749 = vpack.c.b16 %v1921, %v1915
    %v2750 = vpack.c.b16 %v1922, %v1916
    %v2751 = vpack.c.b16 %v1923, %v1917
    %v2752 = vpack.c.b16 %v1924, %v1918
    %v2753 = vpack.c.b16 %v1925, %v1919
    %v2754 = vpack.c.b16 %v1926, %v1920
    %v2755 = vpack.c.b16 %v1933, %v1927
    %v2756 = vpack.c.b16 %v1934, %v1928
    %v2757 = vpack.c.b16 %v1935, %v1929
    %v2758 = vpack.c.b16 %v1936, %v1930
    %v2759 = vpack.c.b16 %v1937, %v1931
    %v2760 = vpack.c.b16 %v1938, %v1932
    %v2761 = vpack.c.b16 %v1945, %v1939
    %v2762 = vpack.c.b16 %v1946, %v1940
    %v2763 = vpack.c.b16 %v1947, %v1941
    %v2764 = vpack.c.b16 %v1948, %v1942
    %v2765 = vpack.c.b16 %v1949, %v1943
    %v2766 = vpack.c.b16 %v1950, %v1944
    %v2767 = vpack.c.b16 %v1957, %v1951
    %v2768 = vpack.c.b16 %v1958, %v1952
    %v2769 = vpack.c.b16 %v1959, %v1953
    %v2770 = vpack.c.b16 %v1960, %v1954
    %v2771 = vpack.c.b16 %v1961, %v1955
    %v2772 = vpack.c.b16 %v1962, %v1956
    %v2773 = vpack.c.b16 %v1969, %v1963
    %v2774 = vpack.c.b16 %v1970, %v1964
    %v2775 = vpack.c.b16 %v1971, %v1965
    %v2776 = vpack.c.b16 %v1972, %v1966
    %v2777 = vpack.c.b16 %v1973, %v1967
    %v2778 = vpack.c.b16 %v1974, %v1968
    %v2779 = vpack.c.b16 %v1981, %v1975
    %v2780 = vpack.c.b16 %v1982, %v1976
    %v2781 = vpack.c.b16 %v1983, %v1977
    %v2782 = vpack.c.b16 %v1984, %v1978
    %v2783 = vpack.c.b16 %v1985, %v1979
    %v2784 = vpack.c.b16 %v1986, %v1980
    %v2785 = vpack.c.b16 %v1993, %v1987
    %v2786 = vpack.c.b16 %v1994, %v1988
    %v2787 = vpack.c.b16 %v1995, %v1989
    %v2788 = vpack.c.b16 %v1996, %v1990
    %v2789 = vpack.c.b16 %v1997, %v1991
    %v2790 = vpack.c.b16 %v1998, %v1992
    %v2791 = vpack.c.b16 %v2005, %v1999
    %v2792 = vpack.c.b16 %v2006, %v2000
    %v2793 = vpack.c.b16 %v2007, %v2001
    %v2794 = vpack.c.b16 %v2008, %v2002
    %v2795 = vpack.c.b16 %v2009, %v2003
    %v2796 = vpack.c.b16 %v2010, %v2004
    %v2797 = vpack.c.b16 %v2017, %v2011
    %v2798 = vpack.c.b16 %v2018, %v2012
    %v2799 = vpack.c.b16 %v2019, %v2013
    %v2800 = vpack.c.b16 %v2020, %v2014
    %v2801 = vpack.c.b16 %v2021, %v2015
    %v2802 = vpack.c.b16 %v2022, %v2016
    %v2803 = vpack.c.b16 %v2029, %v2023
    %v2804 = vpack.c.b16 %v2030, %v2024
    %v2805 = vpack.c.b16 %v2031, %v2025
    %v2806 = vpack.c.b16 %v2032, %v2026
    %v2807 = vpack.c.b16 %v2033, %v2027
    %v2808 = vpack.c.b16 %v2034, %v2028
    %v2809 = vpack.c.b16 %v2041, %v2035
    %v2810 = vpack.c.b16 %v2042, %v2036
    %v2811 = vpack.c.b16 %v2043, %v2037
    %v2812 = vpack.c.b16 %v2044, %v2038
    %v2813 = vpack.c.b16 %v2045, %v2039
    %v2814 = vpack.c.b16 %v2046, %v2040
    %v2815 = vpack.c.b16 %v2053, %v2047
    %v2816 = vpack.c.b16 %v2054, %v2048
    %v2817 = vpack.c.b16 %v2055, %v2049
    %v2818 = vpack.c.b16 %v2056, %v2050
    %v2819 = vpack.c.b16 %v2057, %v2051
    %v2820 = vpack.c.b16 %v2058, %v2052
    %v2821 = vpack.c.b16 %v2065, %v2059
    %v2822 = vpack.c.b16 %v2066, %v2060
    %v2823 = vpack.c.b16 %v2067, %v2061
    %v2824 = vpack.c.b16 %v2068, %v2062
    %v2825 = vpack.c.b16 %v2069, %v2063
    %v2826 = vpack.c.b16 %v2070, %v2064
    %v2827 = vpack.c.b16 %v2077, %v2071
    %v2828 = vpack.c.b16 %v2078, %v2072
    %v2829 = vpack.c.b16 %v2079, %v2073
    %v2830 = vpack.c.b16 %v2080, %v2074
    %v2831 = vpack.c.b16 %v2081, %v2075
    %v2832 = vpack.c.b16 %v2082, %v2076
    %v2833 = vpack.c.b16 %v2089, %v2083
    %v2834 = vpack.c.b16 %v2090, %v2084
    %v2835 = vpack.c.b16 %v2091, %v2085
    %v2836 = vpack.c.b16 %v2092, %v2086
    %v2837 = vpack.c.b16 %v2093, %v2087
    %v2838 = vpack.c.b16 %v2094, %v2088
    %v2839 = vpack.c.b16 %v2101, %v2095
    %v2840 = vpack.c.b16 %v2102, %v2096
    %v2841 = vpack.c.b16 %v2103, %v2097
    %v2842 = vpack.c.b16 %v2104, %v2098
    %v2843 = vpack.c.b16 %v2105, %v2099
    %v2844 = vpack.c.b16 %v2106, %v2100
    %v2845 = vpack.c.b16 %v2113, %v2107
    %v2846 = vpack.c.b16 %v2114, %v2108
    %v2847 = vpack.c.b16 %v2115, %v2109
    %v2848 = vpack.c.b16 %v2116, %v2110
    %v2849 = vpack.c.b16 %v2117, %v2111
    %v2850 = vpack.c.b16 %v2118, %v2112
    %v2851 = vpack.c.b16 %v2125, %v2119
    %v2852 = vpack.c.b16 %v2126, %v2120
    %v2853 = vpack.c.b16 %v2127, %v2121
    %v2854 = vpack.c.b16 %v2128, %v2122
    %v2855 = vpack.c.b16 %v2129, %v2123
    %v2856 = vpack.c.b16 %v2130, %v2124
    %v2857 = vpack.c.b16 %v2137, %v2131
    %v2858 = vpack.c.b16 %v2138, %v2132
    %v2859 = vpack.c.b16 %v2139, %v2133
    %v2860 = vpack.c.b16 %v2140, %v2134
    %v2861 = vpack.c.b16 %v2141, %v2135
    %v2862 = vpack.c.b16 %v2142, %v2136
    %v2863 = vpack.c.b16 %v2149, %v2143
    %v2864 = vpack.c.b16 %v2150, %v2144
    %v2865 = vpack.c.b16 %v2151, %v2145
    %v2866 = vpack.c.b16 %v2152, %v2146
    %v2867 = vpack.c.b16 %v2153, %v2147
    %v2868 = vpack.c.b16 %v2154, %v2148
    %v2869 = vpack.c.b16 %v2161, %v2155
    %v2870 = vpack.c.b16 %v2162, %v2156
    %v2871 = vpack.c.b16 %v2163, %v2157
    %v2872 = vpack.c.b16 %v2164, %v2158
    %v2873 = vpack.c.b16 %v2165, %v2159
    %v2874 = vpack.c.b16 %v2166, %v2160
    %v2875 = vpack.c.b16 %v2173, %v2167
    %v2876 = vpack.c.b16 %v2174, %v2168
    %v2877 = vpack.c.b16 %v2175, %v2169
    %v2878 = vpack.c.b16 %v2176, %v2170
    %v2879 = vpack.c.b16 %v2177, %v2171
    %v2880 = vpack.c.b16 %v2178, %v2172
    %v2881 = vpack.c.b16 %v2185, %v2179
    %v2882 = vpack.c.b16 %v2186, %v2180
    %v2883 = vpack.c.b16 %v2187, %v2181
    %v2884 = vpack.c.b16 %v2188, %v2182
    %v2885 = vpack.c.b16 %v2189, %v2183
    %v2886 = vpack.c.b16 %v2190, %v2184
    %v2887 = vpack.c.b16 %v2197, %v2191
    %v2888 = vpack.c.b16 %v2198, %v2192
    %v2889 = vpack.c.b16 %v2199, %v2193
    %v2890 = vpack.c.b16 %v2200, %v2194
    %v2891 = vpack.c.b16 %v2201, %v2195
    %v2892 = vpack.c.b16 %v2202, %v2196
    %v2893 = vpack.c.b16 %v2209, %v2203
    %v2894 = vpack.c.b16 %v2210, %v2204
    %v2895 = vpack.c.b16 %v2211, %v2205
    %v2896 = vpack.c.b16 %v2212, %v2206
    %v2897 = vpack.c.b16 %v2213, %v2207
    %v2898 = vpack.c.b16 %v2214, %v2208
    %v2899 = vpack.c.b16 %v2221, %v2215
    %v2900 = vpack.c.b16 %v2222, %v2216
    %v2901 = vpack.c.b16 %v2223, %v2217
    %v2902 = vpack.c.b16 %v2224, %v2218
    %v2903 = vpack.c.b16 %v2225, %v2219
    %v2904 = vpack.c.b16 %v2226, %v2220
    %v2905 = vpack.c.b16 %v2233, %v2227
    %v2906 = vpack.c.b16 %v2234, %v2228
    %v2907 = vpack.c.b16 %v2235, %v2229
    %v2908 = vpack.c.b16 %v2236, %v2230
    %v2909 = vpack.c.b16 %v2237, %v2231
    %v2910 = vpack.c.b16 %v2238, %v2232
    %v2911 = vpack.c.b16 %v2245, %v2239
    %v2912 = vpack.c.b16 %v2246, %v2240
    %v2913 = vpack.c.b16 %v2247, %v2241
    %v2914 = vpack.c.b16 %v2248, %v2242
    %v2915 = vpack.c.b16 %v2249, %v2243
    %v2916 = vpack.c.b16 %v2250, %v2244
    %v2917 = vpack.c.b16 %v2257, %v2251
    %v2918 = vpack.c.b16 %v2258, %v2252
    %v2919 = vpack.c.b16 %v2259, %v2253
    %v2920 = vpack.c.b16 %v2260, %v2254
    %v2921 = vpack.c.b16 %v2261, %v2255
    %v2922 = vpack.c.b16 %v2262, %v2256
    %v2923 = vpack.c.b16 %v2269, %v2263
    %v2924 = vpack.c.b16 %v2270, %v2264
    %v2925 = vpack.c.b16 %v2271, %v2265
    %v2926 = vpack.c.b16 %v2272, %v2266
    %v2927 = vpack.c.b16 %v2273, %v2267
    %v2928 = vpack.c.b16 %v2274, %v2268
    %v2929 = vpack.c.b16 %v2281, %v2275
    %v2930 = vpack.c.b16 %v2282, %v2276
    %v2931 = vpack.c.b16 %v2283, %v2277
    %v2932 = vpack.c.b16 %v2284, %v2278
    %v2933 = vpack.c.b16 %v2285, %v2279
    %v2934 = vpack.c.b16 %v2286, %v2280
    %v2935 = vpack.c.b16 %v2293, %v2287
    %v2936 = vpack.c.b16 %v2294, %v2288
    %v2937 = vpack.c.b16 %v2295, %v2289
    %v2938 = vpack.c.b16 %v2296, %v2290
    %v2939 = vpack.c.b16 %v2297, %v2291
    %v2940 = vpack.c.b16 %v2298, %v2292
    %v2941 = vpack.c.b16 %v2305, %v2299
    %v2942 = vpack.c.b16 %v2306, %v2300
    %v2943 = vpack.c.b16 %v2307, %v2301
    %v2944 = vpack.c.b16 %v2308, %v2302
    %v2945 = vpack.c.b16 %v2309, %v2303
    %v2946 = vpack.c.b16 %v2310, %v2304
    %v2947 = vpack.c.b16 %v2317, %v2311
    %v2948 = vpack.c.b16 %v2318, %v2312
    %v2949 = vpack.c.b16 %v2319, %v2313
    %v2950 = vpack.c.b16 %v2320, %v2314
    %v2951 = vpack.c.b16 %v2321, %v2315
    %v2952 = vpack.c.b16 %v2322, %v2316
    %v2953 = vpack.c.b16 %v2329, %v2323
    %v2954 = vpack.c.b16 %v2330, %v2324
    %v2955 = vpack.c.b16 %v2331, %v2325
    %v2956 = vpack.c.b16 %v2332, %v2326
    %v2957 = vpack.c.b16 %v2333, %v2327
    %v2958 = vpack.c.b16 %v2334, %v2328
    %v2959 = vpack.c.b16 %v2341, %v2335
    %v2960 = vpack.c.b16 %v2342, %v2336
    %v2961 = vpack.c.b16 %v2343, %v2337
    %v2962 = vpack.c.b16 %v2344, %v2338
    %v2963 = vpack.c.b16 %v2345, %v2339
    %v2964 = vpack.c.b16 %v2346, %v2340
    %v2965 = vpack.c.b16 %v2353, %v2347
    %v2966 = vpack.c.b16 %v2354, %v2348
    %v2967 = vpack.c.b16 %v2355, %v2349
    %v2968 = vpack.c.b16 %v2356, %v2350
    %v2969 = vpack.c.b16 %v2357, %v2351
    %v2970 = vpack.c.b16 %v2358, %v2352
    %v2971 = vpack.c.b16 %v2365, %v2359
    %v2972 = vpack.c.b16 %v2366, %v2360
    %v2973 = vpack.c.b16 %v2367, %v2361
    %v2974 = vpack.c.b16 %v2368, %v2362
    %v2975 = vpack.c.b16 %v2369, %v2363
    %v2976 = vpack.c.b16 %v2370, %v2364
    %v2977 = vpack.c.b16 %v2377, %v2371
    %v2978 = vpack.c.b16 %v2378, %v2372
    %v2979 = vpack.c.b16 %v2379, %v2373
    %v2980 = vpack.c.b16 %v2380, %v2374
    %v2981 = vpack.c.b16 %v2381, %v2375
    %v2982 = vpack.c.b16 %v2382, %v2376
    %v2983 = vpack.c.b16 %v2389, %v2383
    %v2984 = vpack.c.b16 %v2390, %v2384
    %v2985 = vpack.c.b16 %v2391, %v2385
    %v2986 = vpack.c.b16 %v2392, %v2386
    %v2987 = vpack.c.b16 %v2393, %v2387
    %v2988 = vpack.c.b16 %v2394, %v2388
    %v2989 = vpack.c.b16 %v2401, %v2395
    %v2990 = vpack.c.b16 %v2402, %v2396
    %v2991 = vpack.c.b16 %v2403, %v2397
    %v2992 = vpack.c.b16 %v2404, %v2398
    %v2993 = vpack.c.b16 %v2405, %v2399
    %v2994 = vpack.c.b16 %v2406, %v2400
    %v2995 = vpack.c.b16 %v2413, %v2407
    %v2996 = vpack.c.b16 %v2414, %v2408
    %v2997 = vpack.c.b16 %v2415, %v2409
    %v2998 = vpack.c.b16 %v2416, %v2410
    %v2999 = vpack.c.b16 %v2417, %v2411
    %v3000 = vpack.c.b16 %v2418, %v2412
    %v3001 = vpack.c.b16 %v2425, %v2419
    %v3002 = vpack.c.b16 %v2426, %v2420
    %v3003 = vpack.c.b16 %v2427, %v2421
    %v3004 = vpack.c.b16 %v2428, %v2422
    %v3005 = vpack.c.b16 %v2429, %v2423
    %v3006 = vpack.c.b16 %v2430, %v2424
    %3583 = vmatprep.subr.bf16.mxu0 %v2432
    %3584 = vmatpush1.bf16.msra.mxu0 %v2431
    %3585 = vmatprep.subr.bf16.mxu0 %v2438
    %3586 = vmatpush1.bf16.msra.mxu0 %v2437
    %3587 = vmatprep.subr.bf16.mxu0 %v2444
    %3588 = vmatpush1.bf16.msra.mxu0 %v2443
    %3589 = vmatprep.subr.bf16.mxu0 %v2450
    %3590 = vmatpush1.bf16.msra.mxu0 %v2449
    %3591 = vmatprep.subr.bf16.mxu0 %v2456
    %3592 = vmatpush1.bf16.msra.mxu0 %v2455
    %3593 = vmatprep.subr.bf16.mxu0 %v2462
    %3594 = vmatpush1.bf16.msra.mxu0 %v2461
    %3595 = vmatprep.subr.bf16.mxu0 %v2468
    %3596 = vmatpush1.bf16.msra.mxu0 %v2467
    %3597 = vmatprep.subr.bf16.mxu0 %v2474
    %3598 = vmatpush1.bf16.msra.mxu0 %v2473
    %3599 = vmatprep.subr.bf16.mxu0 %v2480
    %3600 = vmatpush1.bf16.msra.mxu0 %v2479
    %3601 = vmatprep.subr.bf16.mxu0 %v2486
    %3602 = vmatpush1.bf16.msra.mxu0 %v2485
    %3603 = vmatprep.subr.bf16.mxu0 %v2492
    %3604 = vmatpush1.bf16.msra.mxu0 %v2491
    %3605 = vmatprep.subr.bf16.mxu0 %v2498
    %3606 = vmatpush1.bf16.msra.mxu0 %v2497
    %3607 = vmatprep.subr.bf16.mxu0 %v2504
    %3608 = vmatpush1.bf16.msra.mxu0 %v2503
    %3609 = vmatprep.subr.bf16.mxu0 %v2510
    %3610 = vmatpush1.bf16.msra.mxu0 %v2509
    %3611 = vmatprep.subr.bf16.mxu0 %v2516
    %3612 = vmatpush1.bf16.msra.mxu0 %v2515
    %3613 = vmatprep.subr.bf16.mxu0 %v2522
    %3614 = vmatpush1.bf16.msra.mxu0 %v2521
    %3615 = vmatprep.mubr.bf16.mxu0 %v84
    %3616 = vmatmul.mubr.bf16.gmra.mrb[0].mxu0 %v83
    %v3617 = vpop.f32.mrb[0].mxu0
    %v3618 = vadd.f32 %v676, %v3617
    %v3619 = vpop.f32.mrb[0].mxu0
    %v3620 = vadd.f32 %v680, %v3619
    %v3621 = vpop.f32.mrb[0].mxu0
    %v3622 = vpop.f32.mrb[0].mxu0
    %3623 = vdwg.mxu0
    %3624 = vmatprep.subr.bf16.mxu0 %v2528
    %3625 = vmatpush1.bf16.msra.mxu0 %v2527
    %3626 = vmatprep.subr.bf16.mxu0 %v2534
    %3627 = vmatpush1.bf16.msra.mxu0 %v2533
    %3628 = vmatprep.subr.bf16.mxu0 %v2540
    %3629 = vmatpush1.bf16.msra.mxu0 %v2539
    %3630 = vmatprep.subr.bf16.mxu0 %v2546
    %3631 = vmatpush1.bf16.msra.mxu0 %v2545
    %3632 = vmatprep.subr.bf16.mxu0 %v2552
    %3633 = vmatpush1.bf16.msra.mxu0 %v2551
    %3634 = vmatprep.subr.bf16.mxu0 %v2558
    %3635 = vmatpush1.bf16.msra.mxu0 %v2557
    %3636 = vmatprep.subr.bf16.mxu0 %v2564
    %3637 = vmatpush1.bf16.msra.mxu0 %v2563
    %3638 = vmatprep.subr.bf16.mxu0 %v2570
    %3639 = vmatpush1.bf16.msra.mxu0 %v2569
    %3640 = vmatprep.subr.bf16.mxu0 %v2576
    %3641 = vmatpush1.bf16.msra.mxu0 %v2575
    %3642 = vmatprep.subr.bf16.mxu0 %v2582
    %3643 = vmatpush1.bf16.msra.mxu0 %v2581
    %3644 = vmatprep.subr.bf16.mxu0 %v2588
    %3645 = vmatpush1.bf16.msra.mxu0 %v2587
    %3646 = vmatprep.subr.bf16.mxu0 %v2594
    %3647 = vmatpush1.bf16.msra.mxu0 %v2593
    %3648 = vmatprep.subr.bf16.mxu0 %v2600
    %3649 = vmatpush1.bf16.msra.mxu0 %v2599
    %3650 = vmatprep.subr.bf16.mxu0 %v2606
    %3651 = vmatpush1.bf16.msra.mxu0 %v2605
    %3652 = vmatprep.subr.bf16.mxu0 %v2612
    %3653 = vmatpush1.bf16.msra.mxu0 %v2611
    %3654 = vmatprep.subr.bf16.mxu0 %v2618
    %3655 = vmatpush1.bf16.msra.mxu0 %v2617
    %3656 = vmatprep.mubr.bf16.mxu0 %v86
    %3657 = vmatmul.mubr.bf16.gmra.mrb[0].mxu0 %v85
    %v3658 = vpop.f32.mrb[0].mxu0
    %v3659 = vadd.f32 %v3618, %v3658
    %v3660 = vpop.f32.mrb[0].mxu0
    %v3661 = vadd.f32 %v3620, %v3660
    %v3662 = vpop.f32.mrb[0].mxu0
    %v3663 = vpop.f32.mrb[0].mxu0
    %3664 = vdwg.mxu0
    %3665 = vmatprep.subr.bf16.mxu0 %v2624
    %3666 = vmatpush1.bf16.msra.mxu0 %v2623
    %3667 = vmatprep.subr.bf16.mxu0 %v2630
    %3668 = vmatpush1.bf16.msra.mxu0 %v2629
    %3669 = vmatprep.subr.bf16.mxu0 %v2636
    %3670 = vmatpush1.bf16.msra.mxu0 %v2635
    %3671 = vmatprep.subr.bf16.mxu0 %v2642
    %3672 = vmatpush1.bf16.msra.mxu0 %v2641
    %3673 = vmatprep.subr.bf16.mxu0 %v2648
    %3674 = vmatpush1.bf16.msra.mxu0 %v2647
    %3675 = vmatprep.subr.bf16.mxu0 %v2654
    %3676 = vmatpush1.bf16.msra.mxu0 %v2653
    %3677 = vmatprep.subr.bf16.mxu0 %v2660
    %3678 = vmatpush1.bf16.msra.mxu0 %v2659
    %3679 = vmatprep.subr.bf16.mxu0 %v2666
    %3680 = vmatpush1.bf16.msra.mxu0 %v2665
    %3681 = vmatprep.subr.bf16.mxu0 %v2672
    %3682 = vmatpush1.bf16.msra.mxu0 %v2671
    %3683 = vmatprep.subr.bf16.mxu0 %v2678
    %3684 = vmatpush1.bf16.msra.mxu0 %v2677
    %3685 = vmatprep.subr.bf16.mxu0 %v2684
    %3686 = vmatpush1.bf16.msra.mxu0 %v2683
    %3687 = vmatprep.subr.bf16.mxu0 %v2690
    %3688 = vmatpush1.bf16.msra.mxu0 %v2689
    %3689 = vmatprep.subr.bf16.mxu0 %v2696
    %3690 = vmatpush1.bf16.msra.mxu0 %v2695
    %3691 = vmatprep.subr.bf16.mxu0 %v2702
    %3692 = vmatpush1.bf16.msra.mxu0 %v2701
    %3693 = vmatprep.subr.bf16.mxu0 %v2708
    %3694 = vmatpush1.bf16.msra.mxu0 %v2707
    %3695 = vmatprep.subr.bf16.mxu0 %v2714
    %3696 = vmatpush1.bf16.msra.mxu0 %v2713
    %3697 = vmatprep.mubr.bf16.mxu0 %v88
    %3698 = vmatmul.mubr.bf16.gmra.mrb[0].mxu0 %v87
    %v3699 = vpop.f32.mrb[0].mxu0
    %v3700 = vadd.f32 %v3659, %v3699
    %v3701 = vpop.f32.mrb[0].mxu0
    %v3702 = vadd.f32 %v3661, %v3701
    %v3703 = vpop.f32.mrb[0].mxu0
    %v3704 = vpop.f32.mrb[0].mxu0
    %3705 = vdwg.mxu0
    %3706 = vmatprep.subr.bf16.mxu0 %v2720
    %3707 = vmatpush1.bf16.msra.mxu0 %v2719
    %3708 = vmatprep.subr.bf16.mxu0 %v2726
    %3709 = vmatpush1.bf16.msra.mxu0 %v2725
    %3710 = vmatprep.subr.bf16.mxu0 %v2732
    %3711 = vmatpush1.bf16.msra.mxu0 %v2731
    %3712 = vmatprep.subr.bf16.mxu0 %v2738
    %3713 = vmatpush1.bf16.msra.mxu0 %v2737
    %3714 = vmatprep.subr.bf16.mxu0 %v2744
    %3715 = vmatpush1.bf16.msra.mxu0 %v2743
    %3716 = vmatprep.subr.bf16.mxu0 %v2750
    %3717 = vmatpush1.bf16.msra.mxu0 %v2749
    %3718 = vmatprep.subr.bf16.mxu0 %v2756
    %3719 = vmatpush1.bf16.msra.mxu0 %v2755
    %3720 = vmatprep.subr.bf16.mxu0 %v2762
    %3721 = vmatpush1.bf16.msra.mxu0 %v2761
    %3722 = vmatprep.subr.bf16.mxu0 %v2768
    %3723 = vmatpush1.bf16.msra.mxu0 %v2767
    %3724 = vmatprep.subr.bf16.mxu0 %v2774
    %3725 = vmatpush1.bf16.msra.mxu0 %v2773
    %3726 = vmatprep.subr.bf16.mxu0 %v2780
    %3727 = vmatpush1.bf16.msra.mxu0 %v2779
    %3728 = vmatprep.subr.bf16.mxu0 %v2786
    %3729 = vmatpush1.bf16.msra.mxu0 %v2785
    %3730 = vmatprep.subr.bf16.mxu0 %v2792
    %3731 = vmatpush1.bf16.msra.mxu0 %v2791
    %3732 = vmatprep.subr.bf16.mxu0 %v2798
    %3733 = vmatpush1.bf16.msra.mxu0 %v2797
    %3734 = vmatprep.subr.bf16.mxu0 %v2804
    %3735 = vmatpush1.bf16.msra.mxu0 %v2803
    %3736 = vmatprep.subr.bf16.mxu0 %v2810
    %3737 = vmatpush1.bf16.msra.mxu0 %v2809
    %3738 = vmatprep.mubr.bf16.mxu0 %v90
    %3739 = vmatmul.mubr.bf16.gmra.mrb[0].mxu0 %v89
    %v3740 = vpop.f32.mrb[0].mxu0
    %v3741 = vadd.f32 %v3700, %v3740
    %v3742 = vpop.f32.mrb[0].mxu0
    %v3743 = vadd.f32 %v3702, %v3742
    %v3744 = vpop.f32.mrb[0].mxu0
    %v3745 = vpop.f32.mrb[0].mxu0
    %3746 = vdwg.mxu0
    %3747 = vmatprep.subr.bf16.mxu0 %v2816
    %3748 = vmatpush1.bf16.msra.mxu0 %v2815
    %3749 = vmatprep.subr.bf16.mxu0 %v2822
    %3750 = vmatpush1.bf16.msra.mxu0 %v2821
    %3751 = vmatprep.subr.bf16.mxu0 %v2828
    %3752 = vmatpush1.bf16.msra.mxu0 %v2827
    %3753 = vmatprep.subr.bf16.mxu0 %v2834
    %3754 = vmatpush1.bf16.msra.mxu0 %v2833
    %3755 = vmatprep.subr.bf16.mxu0 %v2840
    %3756 = vmatpush1.bf16.msra.mxu0 %v2839
    %3757 = vmatprep.subr.bf16.mxu0 %v2846
    %3758 = vmatpush1.bf16.msra.mxu0 %v2845
    %3759 = vmatprep.subr.bf16.mxu0 %v2852
    %3760 = vmatpush1.bf16.msra.mxu0 %v2851
    %3761 = vmatprep.subr.bf16.mxu0 %v2858
    %3762 = vmatpush1.bf16.msra.mxu0 %v2857
    %3763 = vmatprep.subr.bf16.mxu0 %v2864
    %3764 = vmatpush1.bf16.msra.mxu0 %v2863
    %3765 = vmatprep.subr.bf16.mxu0 %v2870
    %3766 = vmatpush1.bf16.msra.mxu0 %v2869
    %3767 = vmatprep.subr.bf16.mxu0 %v2876
    %3768 = vmatpush1.bf16.msra.mxu0 %v2875
    %3769 = vmatprep.subr.bf16.mxu0 %v2882
    %3770 = vmatpush1.bf16.msra.mxu0 %v2881
    %3771 = vmatprep.subr.bf16.mxu0 %v2888
    %3772 = vmatpush1.bf16.msra.mxu0 %v2887
    %3773 = vmatprep.subr.bf16.mxu0 %v2894
    %3774 = vmatpush1.bf16.msra.mxu0 %v2893
    %3775 = vmatprep.subr.bf16.mxu0 %v2900
    %3776 = vmatpush1.bf16.msra.mxu0 %v2899
    %3777 = vmatprep.subr.bf16.mxu0 %v2906
    %3778 = vmatpush1.bf16.msra.mxu0 %v2905
    %3779 = vmatprep.mubr.bf16.mxu0 %v92
    %3780 = vmatmul.mubr.bf16.gmra.mrb[0].mxu0 %v91
    %v3781 = vpop.f32.mrb[0].mxu0
    %v3782 = vadd.f32 %v3741, %v3781
    %v3783 = vpop.f32.mrb[0].mxu0
    %v3784 = vadd.f32 %v3743, %v3783
    %v3785 = vpop.f32.mrb[0].mxu0
    %v3786 = vpop.f32.mrb[0].mxu0
    %3787 = vdwg.mxu0
    %3788 = vmatprep.subr.bf16.mxu0 %v2912
    %3789 = vmatpush1.bf16.msra.mxu0 %v2911
    %3790 = vmatprep.subr.bf16.mxu0 %v2918
    %3791 = vmatpush1.bf16.msra.mxu0 %v2917
    %3792 = vmatprep.subr.bf16.mxu0 %v2924
    %3793 = vmatpush1.bf16.msra.mxu0 %v2923
    %3794 = vmatprep.subr.bf16.mxu0 %v2930
    %3795 = vmatpush1.bf16.msra.mxu0 %v2929
    %3796 = vmatprep.subr.bf16.mxu0 %v2936
    %3797 = vmatpush1.bf16.msra.mxu0 %v2935
    %3798 = vmatprep.subr.bf16.mxu0 %v2942
    %3799 = vmatpush1.bf16.msra.mxu0 %v2941
    %3800 = vmatprep.subr.bf16.mxu0 %v2948
    %3801 = vmatpush1.bf16.msra.mxu0 %v2947
    %3802 = vmatprep.subr.bf16.mxu0 %v2954
    %3803 = vmatpush1.bf16.msra.mxu0 %v2953
    %3804 = vmatprep.subr.bf16.mxu0 %v2960
    %3805 = vmatpush1.bf16.msra.mxu0 %v2959
    %3806 = vmatprep.subr.bf16.mxu0 %v2966
    %3807 = vmatpush1.bf16.msra.mxu0 %v2965
    %3808 = vmatprep.subr.bf16.mxu0 %v2972
    %3809 = vmatpush1.bf16.msra.mxu0 %v2971
    %3810 = vmatprep.subr.bf16.mxu0 %v2978
    %3811 = vmatpush1.bf16.msra.mxu0 %v2977
    %3812 = vmatprep.subr.bf16.mxu0 %v2984
    %3813 = vmatpush1.bf16.msra.mxu0 %v2983
    %3814 = vmatprep.subr.bf16.mxu0 %v2990
    %3815 = vmatpush1.bf16.msra.mxu0 %v2989
    %3816 = vmatprep.subr.bf16.mxu0 %v2996
    %3817 = vmatpush1.bf16.msra.mxu0 %v2995
    %3818 = vmatprep.subr.bf16.mxu0 %v3002
    %3819 = vmatpush1.bf16.msra.mxu0 %v3001
    %3820 = vmatprep.mubr.bf16.mxu0 %v94
    %3821 = vmatmul.mubr.bf16.gmra.mrb[0].mxu0 %v93
    %v3822 = vpop.f32.mrb[0].mxu0
    %v3823 = vadd.f32 %v3782, %v3822
    %v3824 = vpop.f32.mrb[0].mxu0
    %v3825 = vadd.f32 %v3784, %v3824
    %v3826 = vpop.f32.mrb[0].mxu0
    %v3827 = vpop.f32.mrb[0].mxu0
    %3828 = vdwg.mxu0
    %3829 = vmatprep.subr.bf16.mxu0 %v2434
    %3830 = vmatpush1.bf16.msra.mxu0 %v2433
    %3831 = vmatprep.subr.bf16.mxu0 %v2440
    %3832 = vmatpush1.bf16.msra.mxu0 %v2439
    %3833 = vmatprep.subr.bf16.mxu0 %v2446
    %3834 = vmatpush1.bf16.msra.mxu0 %v2445
    %3835 = vmatprep.subr.bf16.mxu0 %v2452
    %3836 = vmatpush1.bf16.msra.mxu0 %v2451
    %3837 = vmatprep.subr.bf16.mxu0 %v2458
    %3838 = vmatpush1.bf16.msra.mxu0 %v2457
    %3839 = vmatprep.subr.bf16.mxu0 %v2464
    %3840 = vmatpush1.bf16.msra.mxu0 %v2463
    %3841 = vmatprep.subr.bf16.mxu0 %v2470
    %3842 = vmatpush1.bf16.msra.mxu0 %v2469
    %3843 = vmatprep.subr.bf16.mxu0 %v2476
    %3844 = vmatpush1.bf16.msra.mxu0 %v2475
    %3845 = vmatprep.subr.bf16.mxu0 %v2482
    %3846 = vmatpush1.bf16.msra.mxu0 %v2481
    %3847 = vmatprep.subr.bf16.mxu0 %v2488
    %3848 = vmatpush1.bf16.msra.mxu0 %v2487
    %3849 = vmatprep.subr.bf16.mxu0 %v2494
    %3850 = vmatpush1.bf16.msra.mxu0 %v2493
    %3851 = vmatprep.subr.bf16.mxu0 %v2500
    %3852 = vmatpush1.bf16.msra.mxu0 %v2499
    %3853 = vmatprep.subr.bf16.mxu0 %v2506
    %3854 = vmatpush1.bf16.msra.mxu0 %v2505
    %3855 = vmatprep.subr.bf16.mxu0 %v2512
    %3856 = vmatpush1.bf16.msra.mxu0 %v2511
    %3857 = vmatprep.subr.bf16.mxu0 %v2518
    %3858 = vmatpush1.bf16.msra.mxu0 %v2517
    %3859 = vmatprep.subr.bf16.mxu0 %v2524
    %3860 = vmatpush1.bf16.msra.mxu0 %v2523
    %3861 = vmatprep.mubr.bf16.mxu0 %v84
    %3862 = vmatmul.mubr.bf16.gmra.mrb[0].mxu0 %v83
    %v3863 = vpop.f32.mrb[0].mxu0
    %v3864 = vadd.f32 %v684, %v3863
    %v3865 = vpop.f32.mrb[0].mxu0
    %v3866 = vadd.f32 %v688, %v3865
    %v3867 = vpop.f32.mrb[0].mxu0
    %v3868 = vpop.f32.mrb[0].mxu0
    %3869 = vdwg.mxu0
    %3870 = vmatprep.subr.bf16.mxu0 %v2530
    %3871 = vmatpush1.bf16.msra.mxu0 %v2529
    %3872 = vmatprep.subr.bf16.mxu0 %v2536
    %3873 = vmatpush1.bf16.msra.mxu0 %v2535
    %3874 = vmatprep.subr.bf16.mxu0 %v2542
    %3875 = vmatpush1.bf16.msra.mxu0 %v2541
    %3876 = vmatprep.subr.bf16.mxu0 %v2548
    %3877 = vmatpush1.bf16.msra.mxu0 %v2547
    %3878 = vmatprep.subr.bf16.mxu0 %v2554
    %3879 = vmatpush1.bf16.msra.mxu0 %v2553
    %3880 = vmatprep.subr.bf16.mxu0 %v2560
    %3881 = vmatpush1.bf16.msra.mxu0 %v2559
    %3882 = vmatprep.subr.bf16.mxu0 %v2566
    %3883 = vmatpush1.bf16.msra.mxu0 %v2565
    %3884 = vmatprep.subr.bf16.mxu0 %v2572
    %3885 = vmatpush1.bf16.msra.mxu0 %v2571
    %3886 = vmatprep.subr.bf16.mxu0 %v2578
    %3887 = vmatpush1.bf16.msra.mxu0 %v2577
    %3888 = vmatprep.subr.bf16.mxu0 %v2584
    %3889 = vmatpush1.bf16.msra.mxu0 %v2583
    %3890 = vmatprep.subr.bf16.mxu0 %v2590
    %3891 = vmatpush1.bf16.msra.mxu0 %v2589
    %3892 = vmatprep.subr.bf16.mxu0 %v2596
    %3893 = vmatpush1.bf16.msra.mxu0 %v2595
    %3894 = vmatprep.subr.bf16.mxu0 %v2602
    %3895 = vmatpush1.bf16.msra.mxu0 %v2601
    %3896 = vmatprep.subr.bf16.mxu0 %v2608
    %3897 = vmatpush1.bf16.msra.mxu0 %v2607
    %3898 = vmatprep.subr.bf16.mxu0 %v2614
    %3899 = vmatpush1.bf16.msra.mxu0 %v2613
    %3900 = vmatprep.subr.bf16.mxu0 %v2620
    %3901 = vmatpush1.bf16.msra.mxu0 %v2619
    %3902 = vmatprep.mubr.bf16.mxu0 %v86
    %3903 = vmatmul.mubr.bf16.gmra.mrb[0].mxu0 %v85
    %v3904 = vpop.f32.mrb[0].mxu0
    %v3905 = vadd.f32 %v3864, %v3904
    %v3906 = vpop.f32.mrb[0].mxu0
    %v3907 = vadd.f32 %v3866, %v3906
    %v3908 = vpop.f32.mrb[0].mxu0
    %v3909 = vpop.f32.mrb[0].mxu0
    %3910 = vdwg.mxu0
    %3911 = vmatprep.subr.bf16.mxu0 %v2626
    %3912 = vmatpush1.bf16.msra.mxu0 %v2625
    %3913 = vmatprep.subr.bf16.mxu0 %v2632
    %3914 = vmatpush1.bf16.msra.mxu0 %v2631
    %3915 = vmatprep.subr.bf16.mxu0 %v2638
    %3916 = vmatpush1.bf16.msra.mxu0 %v2637
    %3917 = vmatprep.subr.bf16.mxu0 %v2644
    %3918 = vmatpush1.bf16.msra.mxu0 %v2643
    %3919 = vmatprep.subr.bf16.mxu0 %v2650
    %3920 = vmatpush1.bf16.msra.mxu0 %v2649
    %3921 = vmatprep.subr.bf16.mxu0 %v2656
    %3922 = vmatpush1.bf16.msra.mxu0 %v2655
    %3923 = vmatprep.subr.bf16.mxu0 %v2662
    %3924 = vmatpush1.bf16.msra.mxu0 %v2661
    %3925 = vmatprep.subr.bf16.mxu0 %v2668
    %3926 = vmatpush1.bf16.msra.mxu0 %v2667
    %3927 = vmatprep.subr.bf16.mxu0 %v2674
    %3928 = vmatpush1.bf16.msra.mxu0 %v2673
    %3929 = vmatprep.subr.bf16.mxu0 %v2680
    %3930 = vmatpush1.bf16.msra.mxu0 %v2679
    %3931 = vmatprep.subr.bf16.mxu0 %v2686
    %3932 = vmatpush1.bf16.msra.mxu0 %v2685
    %3933 = vmatprep.subr.bf16.mxu0 %v2692
    %3934 = vmatpush1.bf16.msra.mxu0 %v2691
    %3935 = vmatprep.subr.bf16.mxu0 %v2698
    %3936 = vmatpush1.bf16.msra.mxu0 %v2697
    %3937 = vmatprep.subr.bf16.mxu0 %v2704
    %3938 = vmatpush1.bf16.msra.mxu0 %v2703
    %3939 = vmatprep.subr.bf16.mxu0 %v2710
    %3940 = vmatpush1.bf16.msra.mxu0 %v2709
    %3941 = vmatprep.subr.bf16.mxu0 %v2716
    %3942 = vmatpush1.bf16.msra.mxu0 %v2715
    %3943 = vmatprep.mubr.bf16.mxu0 %v88
    %3944 = vmatmul.mubr.bf16.gmra.mrb[0].mxu0 %v87
    %v3945 = vpop.f32.mrb[0].mxu0
    %v3946 = vadd.f32 %v3905, %v3945
    %v3947 = vpop.f32.mrb[0].mxu0
    %v3948 = vadd.f32 %v3907, %v3947
    %v3949 = vpop.f32.mrb[0].mxu0
    %v3950 = vpop.f32.mrb[0].mxu0
    %3951 = vdwg.mxu0
    %3952 = vmatprep.subr.bf16.mxu0 %v2722
    %3953 = vmatpush1.bf16.msra.mxu0 %v2721
    %3954 = vmatprep.subr.bf16.mxu0 %v2728
    %3955 = vmatpush1.bf16.msra.mxu0 %v2727
    %3956 = vmatprep.subr.bf16.mxu0 %v2734
    %3957 = vmatpush1.bf16.msra.mxu0 %v2733
    %3958 = vmatprep.subr.bf16.mxu0 %v2740
    %3959 = vmatpush1.bf16.msra.mxu0 %v2739
    %3960 = vmatprep.subr.bf16.mxu0 %v2746
    %3961 = vmatpush1.bf16.msra.mxu0 %v2745
    %3962 = vmatprep.subr.bf16.mxu0 %v2752
    %3963 = vmatpush1.bf16.msra.mxu0 %v2751
    %3964 = vmatprep.subr.bf16.mxu0 %v2758
    %3965 = vmatpush1.bf16.msra.mxu0 %v2757
    %3966 = vmatprep.subr.bf16.mxu0 %v2764
    %3967 = vmatpush1.bf16.msra.mxu0 %v2763
    %3968 = vmatprep.subr.bf16.mxu0 %v2770
    %3969 = vmatpush1.bf16.msra.mxu0 %v2769
    %3970 = vmatprep.subr.bf16.mxu0 %v2776
    %3971 = vmatpush1.bf16.msra.mxu0 %v2775
    %3972 = vmatprep.subr.bf16.mxu0 %v2782
    %3973 = vmatpush1.bf16.msra.mxu0 %v2781
    %3974 = vmatprep.subr.bf16.mxu0 %v2788
    %3975 = vmatpush1.bf16.msra.mxu0 %v2787
    %3976 = vmatprep.subr.bf16.mxu0 %v2794
    %3977 = vmatpush1.bf16.msra.mxu0 %v2793
    %3978 = vmatprep.subr.bf16.mxu0 %v2800
    %3979 = vmatpush1.bf16.msra.mxu0 %v2799
    %3980 = vmatprep.subr.bf16.mxu0 %v2806
    %3981 = vmatpush1.bf16.msra.mxu0 %v2805
    %3982 = vmatprep.subr.bf16.mxu0 %v2812
    %3983 = vmatpush1.bf16.msra.mxu0 %v2811
    %3984 = vmatprep.mubr.bf16.mxu0 %v90
    %3985 = vmatmul.mubr.bf16.gmra.mrb[0].mxu0 %v89
    %v3986 = vpop.f32.mrb[0].mxu0
    %v3987 = vadd.f32 %v3946, %v3986
    %v3988 = vpop.f32.mrb[0].mxu0
    %v3989 = vadd.f32 %v3948, %v3988
    %v3990 = vpop.f32.mrb[0].mxu0
    %v3991 = vpop.f32.mrb[0].mxu0
    %3992 = vdwg.mxu0
    %3993 = vmatprep.subr.bf16.mxu0 %v2818
    %3994 = vmatpush1.bf16.msra.mxu0 %v2817
    %3995 = vmatprep.subr.bf16.mxu0 %v2824
    %3996 = vmatpush1.bf16.msra.mxu0 %v2823
    %3997 = vmatprep.subr.bf16.mxu0 %v2830
    %3998 = vmatpush1.bf16.msra.mxu0 %v2829
    %3999 = vmatprep.subr.bf16.mxu0 %v2836
    %4000 = vmatpush1.bf16.msra.mxu0 %v2835
    %4001 = vmatprep.subr.bf16.mxu0 %v2842
    %4002 = vmatpush1.bf16.msra.mxu0 %v2841
    %4003 = vmatprep.subr.bf16.mxu0 %v2848
    %4004 = vmatpush1.bf16.msra.mxu0 %v2847
    %4005 = vmatprep.subr.bf16.mxu0 %v2854
    %4006 = vmatpush1.bf16.msra.mxu0 %v2853
    %4007 = vmatprep.subr.bf16.mxu0 %v2860
    %4008 = vmatpush1.bf16.msra.mxu0 %v2859
    %4009 = vmatprep.subr.bf16.mxu0 %v2866
    %4010 = vmatpush1.bf16.msra.mxu0 %v2865
    %4011 = vmatprep.subr.bf16.mxu0 %v2872
    %4012 = vmatpush1.bf16.msra.mxu0 %v2871
    %4013 = vmatprep.subr.bf16.mxu0 %v2878
    %4014 = vmatpush1.bf16.msra.mxu0 %v2877
    %4015 = vmatprep.subr.bf16.mxu0 %v2884
    %4016 = vmatpush1.bf16.msra.mxu0 %v2883
    %4017 = vmatprep.subr.bf16.mxu0 %v2890
    %4018 = vmatpush1.bf16.msra.mxu0 %v2889
    %4019 = vmatprep.subr.bf16.mxu0 %v2896
    %4020 = vmatpush1.bf16.msra.mxu0 %v2895
    %4021 = vmatprep.subr.bf16.mxu0 %v2902
    %4022 = vmatpush1.bf16.msra.mxu0 %v2901
    %4023 = vmatprep.subr.bf16.mxu0 %v2908
    %4024 = vmatpush1.bf16.msra.mxu0 %v2907
    %4025 = vmatprep.mubr.bf16.mxu0 %v92
    %4026 = vmatmul.mubr.bf16.gmra.mrb[0].mxu0 %v91
    %v4027 = vpop.f32.mrb[0].mxu0
    %v4028 = vadd.f32 %v3987, %v4027
    %v4029 = vpop.f32.mrb[0].mxu0
    %v4030 = vadd.f32 %v3989, %v4029
    %v4031 = vpop.f32.mrb[0].mxu0
    %v4032 = vpop.f32.mrb[0].mxu0
    %4033 = vdwg.mxu0
    %4034 = vmatprep.subr.bf16.mxu0 %v2914
    %4035 = vmatpush1.bf16.msra.mxu0 %v2913
    %4036 = vmatprep.subr.bf16.mxu0 %v2920
    %4037 = vmatpush1.bf16.msra.mxu0 %v2919
    %4038 = vmatprep.subr.bf16.mxu0 %v2926
    %4039 = vmatpush1.bf16.msra.mxu0 %v2925
    %4040 = vmatprep.subr.bf16.mxu0 %v2932
    %4041 = vmatpush1.bf16.msra.mxu0 %v2931
    %4042 = vmatprep.subr.bf16.mxu0 %v2938
    %4043 = vmatpush1.bf16.msra.mxu0 %v2937
    %4044 = vmatprep.subr.bf16.mxu0 %v2944
    %4045 = vmatpush1.bf16.msra.mxu0 %v2943
    %4046 = vmatprep.subr.bf16.mxu0 %v2950
    %4047 = vmatpush1.bf16.msra.mxu0 %v2949
    %4048 = vmatprep.subr.bf16.mxu0 %v2956
    %4049 = vmatpush1.bf16.msra.mxu0 %v2955
    %4050 = vmatprep.subr.bf16.mxu0 %v2962
    %4051 = vmatpush1.bf16.msra.mxu0 %v2961
    %4052 = vmatprep.subr.bf16.mxu0 %v2968
    %4053 = vmatpush1.bf16.msra.mxu0 %v2967
    %4054 = vmatprep.subr.bf16.mxu0 %v2974
    %4055 = vmatpush1.bf16.msra.mxu0 %v2973
    %4056 = vmatprep.subr.bf16.mxu0 %v2980
    %4057 = vmatpush1.bf16.msra.mxu0 %v2979
    %4058 = vmatprep.subr.bf16.mxu0 %v2986
    %4059 = vmatpush1.bf16.msra.mxu0 %v2985
    %4060 = vmatprep.subr.bf16.mxu0 %v2992
    %4061 = vmatpush1.bf16.msra.mxu0 %v2991
    %4062 = vmatprep.subr.bf16.mxu0 %v2998
    %4063 = vmatpush1.bf16.msra.mxu0 %v2997
    %4064 = vmatprep.subr.bf16.mxu0 %v3004
    %4065 = vmatpush1.bf16.msra.mxu0 %v3003
    %4066 = vmatprep.mubr.bf16.mxu0 %v94
    %4067 = vmatmul.mubr.bf16.gmra.mrb[0].mxu0 %v93
    %v4068 = vpop.f32.mrb[0].mxu0
    %v4069 = vadd.f32 %v4028, %v4068
    %v4070 = vpop.f32.mrb[0].mxu0
    %v4071 = vadd.f32 %v4030, %v4070
    %v4072 = vpop.f32.mrb[0].mxu0
    %v4073 = vpop.f32.mrb[0].mxu0
    %4074 = vdwg.mxu0
    %4075 = vmatprep.subr.bf16.mxu0 %v2436
    %4076 = vmatpush1.bf16.msra.mxu0 %v2435
    %4077 = vmatprep.subr.bf16.mxu0 %v2442
    %4078 = vmatpush1.bf16.msra.mxu0 %v2441
    %4079 = vmatprep.subr.bf16.mxu0 %v2448
    %4080 = vmatpush1.bf16.msra.mxu0 %v2447
    %4081 = vmatprep.subr.bf16.mxu0 %v2454
    %4082 = vmatpush1.bf16.msra.mxu0 %v2453
    %4083 = vmatprep.subr.bf16.mxu0 %v2460
    %4084 = vmatpush1.bf16.msra.mxu0 %v2459
    %4085 = vmatprep.subr.bf16.mxu0 %v2466
    %4086 = vmatpush1.bf16.msra.mxu0 %v2465
    %4087 = vmatprep.subr.bf16.mxu0 %v2472
    %4088 = vmatpush1.bf16.msra.mxu0 %v2471
    %4089 = vmatprep.subr.bf16.mxu0 %v2478
    %4090 = vmatpush1.bf16.msra.mxu0 %v2477
    %4091 = vmatprep.subr.bf16.mxu0 %v2484
    %4092 = vmatpush1.bf16.msra.mxu0 %v2483
    %4093 = vmatprep.subr.bf16.mxu0 %v2490
    %4094 = vmatpush1.bf16.msra.mxu0 %v2489
    %4095 = vmatprep.subr.bf16.mxu0 %v2496
    %4096 = vmatpush1.bf16.msra.mxu0 %v2495
    %4097 = vmatprep.subr.bf16.mxu0 %v2502
    %4098 = vmatpush1.bf16.msra.mxu0 %v2501
    %4099 = vmatprep.subr.bf16.mxu0 %v2508
    %4100 = vmatpush1.bf16.msra.mxu0 %v2507
    %4101 = vmatprep.subr.bf16.mxu0 %v2514
    %4102 = vmatpush1.bf16.msra.mxu0 %v2513
    %4103 = vmatprep.subr.bf16.mxu0 %v2520
    %4104 = vmatpush1.bf16.msra.mxu0 %v2519
    %4105 = vmatprep.subr.bf16.mxu0 %v2526
    %4106 = vmatpush1.bf16.msra.mxu0 %v2525
    %4107 = vmatprep.mubr.bf16.mxu0 %v84
    %4108 = vmatmul.mubr.bf16.gmra.mrb[0].mxu0 %v83
    %v4109 = vpop.f32.mrb[0].mxu0
    %v4110 = vadd.f32 %v692, %v4109
    %v4111 = vpop.f32.mrb[0].mxu0
    %v4112 = vadd.f32 %v696, %v4111
    %v4113 = vpop.f32.mrb[0].mxu0
    %v4114 = vpop.f32.mrb[0].mxu0
    %4115 = vdwg.mxu0
    %4116 = vmatprep.subr.bf16.mxu0 %v2532
    %4117 = vmatpush1.bf16.msra.mxu0 %v2531
    %4118 = vmatprep.subr.bf16.mxu0 %v2538
    %4119 = vmatpush1.bf16.msra.mxu0 %v2537
    %4120 = vmatprep.subr.bf16.mxu0 %v2544
    %4121 = vmatpush1.bf16.msra.mxu0 %v2543
    %4122 = vmatprep.subr.bf16.mxu0 %v2550
    %4123 = vmatpush1.bf16.msra.mxu0 %v2549
    %4124 = vmatprep.subr.bf16.mxu0 %v2556
    %4125 = vmatpush1.bf16.msra.mxu0 %v2555
    %4126 = vmatprep.subr.bf16.mxu0 %v2562
    %4127 = vmatpush1.bf16.msra.mxu0 %v2561
    %4128 = vmatprep.subr.bf16.mxu0 %v2568
    %4129 = vmatpush1.bf16.msra.mxu0 %v2567
    %4130 = vmatprep.subr.bf16.mxu0 %v2574
    %4131 = vmatpush1.bf16.msra.mxu0 %v2573
    %4132 = vmatprep.subr.bf16.mxu0 %v2580
    %4133 = vmatpush1.bf16.msra.mxu0 %v2579
    %4134 = vmatprep.subr.bf16.mxu0 %v2586
    %4135 = vmatpush1.bf16.msra.mxu0 %v2585
    %4136 = vmatprep.subr.bf16.mxu0 %v2592
    %4137 = vmatpush1.bf16.msra.mxu0 %v2591
    %4138 = vmatprep.subr.bf16.mxu0 %v2598
    %4139 = vmatpush1.bf16.msra.mxu0 %v2597
    %4140 = vmatprep.subr.bf16.mxu0 %v2604
    %4141 = vmatpush1.bf16.msra.mxu0 %v2603
    %4142 = vmatprep.subr.bf16.mxu0 %v2610
    %4143 = vmatpush1.bf16.msra.mxu0 %v2609
    %4144 = vmatprep.subr.bf16.mxu0 %v2616
    %4145 = vmatpush1.bf16.msra.mxu0 %v2615
    %4146 = vmatprep.subr.bf16.mxu0 %v2622
    %4147 = vmatpush1.bf16.msra.mxu0 %v2621
    %4148 = vmatprep.mubr.bf16.mxu0 %v86
    %4149 = vmatmul.mubr.bf16.gmra.mrb[0].mxu0 %v85
    %v4150 = vpop.f32.mrb[0].mxu0
    %v4151 = vadd.f32 %v4110, %v4150
    %v4152 = vpop.f32.mrb[0].mxu0
    %v4153 = vadd.f32 %v4112, %v4152
    %v4154 = vpop.f32.mrb[0].mxu0
    %v4155 = vpop.f32.mrb[0].mxu0
    %4156 = vdwg.mxu0
    %4157 = vmatprep.subr.bf16.mxu0 %v2628
    %4158 = vmatpush1.bf16.msra.mxu0 %v2627
    %4159 = vmatprep.subr.bf16.mxu0 %v2634
    %4160 = vmatpush1.bf16.msra.mxu0 %v2633
    %4161 = vmatprep.subr.bf16.mxu0 %v2640
    %4162 = vmatpush1.bf16.msra.mxu0 %v2639
    %4163 = vmatprep.subr.bf16.mxu0 %v2646
    %4164 = vmatpush1.bf16.msra.mxu0 %v2645
    %4165 = vmatprep.subr.bf16.mxu0 %v2652
    %4166 = vmatpush1.bf16.msra.mxu0 %v2651
    %4167 = vmatprep.subr.bf16.mxu0 %v2658
    %4168 = vmatpush1.bf16.msra.mxu0 %v2657
    %4169 = vmatprep.subr.bf16.mxu0 %v2664
    %4170 = vmatpush1.bf16.msra.mxu0 %v2663
    %4171 = vmatprep.subr.bf16.mxu0 %v2670
    %4172 = vmatpush1.bf16.msra.mxu0 %v2669
    %4173 = vmatprep.subr.bf16.mxu0 %v2676
    %4174 = vmatpush1.bf16.msra.mxu0 %v2675
    %4175 = vmatprep.subr.bf16.mxu0 %v2682
    %4176 = vmatpush1.bf16.msra.mxu0 %v2681
    %4177 = vmatprep.subr.bf16.mxu0 %v2688
    %4178 = vmatpush1.bf16.msra.mxu0 %v2687
    %4179 = vmatprep.subr.bf16.mxu0 %v2694
    %4180 = vmatpush1.bf16.msra.mxu0 %v2693
    %4181 = vmatprep.subr.bf16.mxu0 %v2700
    %4182 = vmatpush1.bf16.msra.mxu0 %v2699
    %4183 = vmatprep.subr.bf16.mxu0 %v2706
    %4184 = vmatpush1.bf16.msra.mxu0 %v2705
    %4185 = vmatprep.subr.bf16.mxu0 %v2712
    %4186 = vmatpush1.bf16.msra.mxu0 %v2711
    %4187 = vmatprep.subr.bf16.mxu0 %v2718
    %4188 = vmatpush1.bf16.msra.mxu0 %v2717
    %4189 = vmatprep.mubr.bf16.mxu0 %v88
    %4190 = vmatmul.mubr.bf16.gmra.mrb[0].mxu0 %v87
    %v4191 = vpop.f32.mrb[0].mxu0
    %v4192 = vadd.f32 %v4151, %v4191
    %v4193 = vpop.f32.mrb[0].mxu0
    %v4194 = vadd.f32 %v4153, %v4193
    %v4195 = vpop.f32.mrb[0].mxu0
    %v4196 = vpop.f32.mrb[0].mxu0
    %4197 = vdwg.mxu0
    %4198 = vmatprep.subr.bf16.mxu0 %v2724
    %4199 = vmatpush1.bf16.msra.mxu0 %v2723
    %4200 = vmatprep.subr.bf16.mxu0 %v2730
    %4201 = vmatpush1.bf16.msra.mxu0 %v2729
    %4202 = vmatprep.subr.bf16.mxu0 %v2736
    %4203 = vmatpush1.bf16.msra.mxu0 %v2735
    %4204 = vmatprep.subr.bf16.mxu0 %v2742
    %4205 = vmatpush1.bf16.msra.mxu0 %v2741
    %4206 = vmatprep.subr.bf16.mxu0 %v2748
    %4207 = vmatpush1.bf16.msra.mxu0 %v2747
    %4208 = vmatprep.subr.bf16.mxu0 %v2754
    %4209 = vmatpush1.bf16.msra.mxu0 %v2753
    %4210 = vmatprep.subr.bf16.mxu0 %v2760
    %4211 = vmatpush1.bf16.msra.mxu0 %v2759
    %4212 = vmatprep.subr.bf16.mxu0 %v2766
    %4213 = vmatpush1.bf16.msra.mxu0 %v2765
    %4214 = vmatprep.subr.bf16.mxu0 %v2772
    %4215 = vmatpush1.bf16.msra.mxu0 %v2771
    %4216 = vmatprep.subr.bf16.mxu0 %v2778
    %4217 = vmatpush1.bf16.msra.mxu0 %v2777
    %4218 = vmatprep.subr.bf16.mxu0 %v2784
    %4219 = vmatpush1.bf16.msra.mxu0 %v2783
    %4220 = vmatprep.subr.bf16.mxu0 %v2790
    %4221 = vmatpush1.bf16.msra.mxu0 %v2789
    %4222 = vmatprep.subr.bf16.mxu0 %v2796
    %4223 = vmatpush1.bf16.msra.mxu0 %v2795
    %4224 = vmatprep.subr.bf16.mxu0 %v2802
    %4225 = vmatpush1.bf16.msra.mxu0 %v2801
    %4226 = vmatprep.subr.bf16.mxu0 %v2808
    %4227 = vmatpush1.bf16.msra.mxu0 %v2807
    %4228 = vmatprep.subr.bf16.mxu0 %v2814
    %4229 = vmatpush1.bf16.msra.mxu0 %v2813
    %4230 = vmatprep.mubr.bf16.mxu0 %v90
    %4231 = vmatmul.mubr.bf16.gmra.mrb[0].mxu0 %v89
    %v4232 = vpop.f32.mrb[0].mxu0
    %v4233 = vadd.f32 %v4192, %v4232
    %v4234 = vpop.f32.mrb[0].mxu0
    %v4235 = vadd.f32 %v4194, %v4234
    %v4236 = vpop.f32.mrb[0].mxu0
    %v4237 = vpop.f32.mrb[0].mxu0
    %4238 = vdwg.mxu0
    %4239 = vmatprep.subr.bf16.mxu0 %v2820
    %4240 = vmatpush1.bf16.msra.mxu0 %v2819
    %4241 = vmatprep.subr.bf16.mxu0 %v2826
    %4242 = vmatpush1.bf16.msra.mxu0 %v2825
    %4243 = vmatprep.subr.bf16.mxu0 %v2832
    %4244 = vmatpush1.bf16.msra.mxu0 %v2831
    %4245 = vmatprep.subr.bf16.mxu0 %v2838
    %4246 = vmatpush1.bf16.msra.mxu0 %v2837
    %4247 = vmatprep.subr.bf16.mxu0 %v2844
    %4248 = vmatpush1.bf16.msra.mxu0 %v2843
    %4249 = vmatprep.subr.bf16.mxu0 %v2850
    %4250 = vmatpush1.bf16.msra.mxu0 %v2849
    %4251 = vmatprep.subr.bf16.mxu0 %v2856
    %4252 = vmatpush1.bf16.msra.mxu0 %v2855
    %4253 = vmatprep.subr.bf16.mxu0 %v2862
    %4254 = vmatpush1.bf16.msra.mxu0 %v2861
    %4255 = vmatprep.subr.bf16.mxu0 %v2868
    %4256 = vmatpush1.bf16.msra.mxu0 %v2867
    %4257 = vmatprep.subr.bf16.mxu0 %v2874
    %4258 = vmatpush1.bf16.msra.mxu0 %v2873
    %4259 = vmatprep.subr.bf16.mxu0 %v2880
    %4260 = vmatpush1.bf16.msra.mxu0 %v2879
    %4261 = vmatprep.subr.bf16.mxu0 %v2886
    %4262 = vmatpush1.bf16.msra.mxu0 %v2885
    %4263 = vmatprep.subr.bf16.mxu0 %v2892
    %4264 = vmatpush1.bf16.msra.mxu0 %v2891
    %4265 = vmatprep.subr.bf16.mxu0 %v2898
    %4266 = vmatpush1.bf16.msra.mxu0 %v2897
    %4267 = vmatprep.subr.bf16.mxu0 %v2904
    %4268 = vmatpush1.bf16.msra.mxu0 %v2903
    %4269 = vmatprep.subr.bf16.mxu0 %v2910
    %4270 = vmatpush1.bf16.msra.mxu0 %v2909
    %4271 = vmatprep.mubr.bf16.mxu0 %v92
    %4272 = vmatmul.mubr.bf16.gmra.mrb[0].mxu0 %v91
    %v4273 = vpop.f32.mrb[0].mxu0
    %v4274 = vadd.f32 %v4233, %v4273
    %v4275 = vpop.f32.mrb[0].mxu0
    %v4276 = vadd.f32 %v4235, %v4275
    %v4277 = vpop.f32.mrb[0].mxu0
    %v4278 = vpop.f32.mrb[0].mxu0
    %4279 = vdwg.mxu0
    %4280 = vmatprep.subr.bf16.mxu0 %v2916
    %4281 = vmatpush1.bf16.msra.mxu0 %v2915
    %4282 = vmatprep.subr.bf16.mxu0 %v2922
    %4283 = vmatpush1.bf16.msra.mxu0 %v2921
    %4284 = vmatprep.subr.bf16.mxu0 %v2928
    %4285 = vmatpush1.bf16.msra.mxu0 %v2927
    %4286 = vmatprep.subr.bf16.mxu0 %v2934
    %4287 = vmatpush1.bf16.msra.mxu0 %v2933
    %4288 = vmatprep.subr.bf16.mxu0 %v2940
    %4289 = vmatpush1.bf16.msra.mxu0 %v2939
    %4290 = vmatprep.subr.bf16.mxu0 %v2946
    %4291 = vmatpush1.bf16.msra.mxu0 %v2945
    %4292 = vmatprep.subr.bf16.mxu0 %v2952
    %4293 = vmatpush1.bf16.msra.mxu0 %v2951
    %4294 = vmatprep.subr.bf16.mxu0 %v2958
    %4295 = vmatpush1.bf16.msra.mxu0 %v2957
    %4296 = vmatprep.subr.bf16.mxu0 %v2964
    %4297 = vmatpush1.bf16.msra.mxu0 %v2963
    %4298 = vmatprep.subr.bf16.mxu0 %v2970
    %4299 = vmatpush1.bf16.msra.mxu0 %v2969
    %4300 = vmatprep.subr.bf16.mxu0 %v2976
    %4301 = vmatpush1.bf16.msra.mxu0 %v2975
    %4302 = vmatprep.subr.bf16.mxu0 %v2982
    %4303 = vmatpush1.bf16.msra.mxu0 %v2981
    %4304 = vmatprep.subr.bf16.mxu0 %v2988
    %4305 = vmatpush1.bf16.msra.mxu0 %v2987
    %4306 = vmatprep.subr.bf16.mxu0 %v2994
    %4307 = vmatpush1.bf16.msra.mxu0 %v2993
    %4308 = vmatprep.subr.bf16.mxu0 %v3000
    %4309 = vmatpush1.bf16.msra.mxu0 %v2999
    %4310 = vmatprep.subr.bf16.mxu0 %v3006
    %4311 = vmatpush1.bf16.msra.mxu0 %v3005
    %4312 = vmatprep.mubr.bf16.mxu0 %v94
    %4313 = vmatmul.mubr.bf16.gmra.mrb[0].mxu0 %v93
    %v4314 = vpop.f32.mrb[0].mxu0
    %v4315 = vadd.f32 %v4274, %v4314
    %v4316 = vpop.f32.mrb[0].mxu0
    %v4317 = vadd.f32 %v4276, %v4316
    %v4318 = vpop.f32.mrb[0].mxu0
    %v4319 = vpop.f32.mrb[0].mxu0
    %4320 = vdwg.mxu0
    %v4321 = vmax.f32 %v3823, 0.0
    %v4322 = vmax.f32 %v3825, 0.0
    %v4323 = vmax.f32 %v4069, 0.0
    %v4324 = vmax.f32 %v4071, 0.0
    %v4325 = vmax.f32 %v4315, 0.0
    %v4326 = vmax.f32 %v4317, 0.0
    %v4327 = vpack.c.bf16 %v4321, %v4321
    %v4328 = vpack.c.bf16 %v4322, %v4322
    %v4329 = vpack.c.bf16 %v4323, %v4323
    %v4330 = vpack.c.bf16 %v4324, %v4324
    %v4331 = vpack.c.bf16 %v4325, %v4325
    %v4332 = vpack.c.bf16 %v4326, %v4326
    %v4333 = vld [vmem:[%s3] sm:$0xf]
    %v4334 = vld [vmem:[%s3 + $0x4] sm:$0xf]
    %v4335 = vld [vmem:[%s3 + $0x8] sm:$0xf]
    %v4336 = vld [vmem:[%s3 + $0xc] sm:$0xf]
    %v4337 = vld [vmem:[%s3 + $0x10] sm:$0xf]
    %v4338 = vld [vmem:[%s3 + $0x14] sm:$0xf]
    %v4339 = vld [vmem:[%s3 + $0x18] sm:$0xf]
    %v4340 = vld [vmem:[%s3 + $0x1c] sm:$0xf]
    %v4341 = vld [vmem:[%s3 + $0x20] sm:$0xf]
    %v4342 = vld [vmem:[%s3 + $0x24] sm:$0xf]
    %v4343 = vld [vmem:[%s3 + $0x28] sm:$0xf]
    %v4344 = vld [vmem:[%s3 + $0x2c] sm:$0xf]
    %v4345 = vld [vmem:[%s3 + $0x30] sm:$0xf]
    %v4346 = vld [vmem:[%s3 + $0x34] sm:$0xf]
    %v4347 = vld [vmem:[%s3 + $0x38] sm:$0xf]
    %v4348 = vld [vmem:[%s3 + $0x3c] sm:$0xf]
    %v4349 = vld [vmem:[%s3 + $0x40] sm:$0xf]
    %v4350 = vld [vmem:[%s3 + $0x44] sm:$0xf]
    %v4351 = vld [vmem:[%s3 + $0x48] sm:$0xf]
    %v4352 = vld [vmem:[%s3 + $0x4c] sm:$0xf]
    %v4353 = vld [vmem:[%s3 + $0x50] sm:$0xf]
    %v4354 = vld [vmem:[%s3 + $0x54] sm:$0xf]
    %v4355 = vld [vmem:[%s3 + $0x58] sm:$0xf]
    %v4356 = vld [vmem:[%s3 + $0x5c] sm:$0xf]
    %v4357 = vld [vmem:[%s3 + $0x60] sm:$0xf]
    %v4358 = vld [vmem:[%s3 + $0x64] sm:$0xf]
    %v4359 = vld [vmem:[%s3 + $0x68] sm:$0xf]
    %v4360 = vld [vmem:[%s3 + $0x6c] sm:$0xf]
    %v4361 = vld [vmem:[%s3 + $0x70] sm:$0xf]
    %v4362 = vld [vmem:[%s3 + $0x74] sm:$0xf]
    %v4363 = vld [vmem:[%s3 + $0x78] sm:$0xf]
    %v4364 = vld [vmem:[%s3 + $0x7c] sm:$0xf]
    %v4365 = vld [vmem:[%s3 + $0x80] sm:$0xf]
    %v4366 = vld [vmem:[%s3 + $0x84] sm:$0xf]
    %v4367 = vld [vmem:[%s3 + $0x88] sm:$0xf]
    %v4368 = vld [vmem:[%s3 + $0x8c] sm:$0xf]
    %v4369 = vld [vmem:[%s3 + $0x90] sm:$0xf]
    %v4370 = vld [vmem:[%s3 + $0x94] sm:$0xf]
    %v4371 = vld [vmem:[%s3 + $0x98] sm:$0xf]
    %v4372 = vld [vmem:[%s3 + $0x9c] sm:$0xf]
    %v4373 = vld [vmem:[%s3 + $0xa0] sm:$0xf]
    %v4374 = vld [vmem:[%s3 + $0xa4] sm:$0xf]
    %v4375 = vld [vmem:[%s3 + $0xa8] sm:$0xf]
    %v4376 = vld [vmem:[%s3 + $0xac] sm:$0xf]
    %v4377 = vld [vmem:[%s3 + $0xb0] sm:$0xf]
    %v4378 = vld [vmem:[%s3 + $0xb4] sm:$0xf]
    %v4379 = vld [vmem:[%s3 + $0xb8] sm:$0xf]
    %v4380 = vld [vmem:[%s3 + $0xbc] sm:$0xf]
    %v4381 = vld [vmem:[%s3 + $0xc0] sm:$0xf]
    %v4382 = vld [vmem:[%s3 + $0xc4] sm:$0xf]
    %v4383 = vld [vmem:[%s3 + $0xc8] sm:$0xf]
    %v4384 = vld [vmem:[%s3 + $0xcc] sm:$0xf]
    %v4385 = vld [vmem:[%s3 + $0xd0] sm:$0xf]
    %v4386 = vld [vmem:[%s3 + $0xd4] sm:$0xf]
    %v4387 = vld [vmem:[%s3 + $0xd8] sm:$0xf]
    %v4388 = vld [vmem:[%s3 + $0xdc] sm:$0xf]
    %v4389 = vld [vmem:[%s3 + $0xe0] sm:$0xf]
    %v4390 = vld [vmem:[%s3 + $0xe4] sm:$0xf]
    %v4391 = vld [vmem:[%s3 + $0xe8] sm:$0xf]
    %v4392 = vld [vmem:[%s3 + $0xec] sm:$0xf]
    %v4393 = vld [vmem:[%s3 + $0xf0] sm:$0xf]
    %v4394 = vld [vmem:[%s3 + $0xf4] sm:$0xf]
    %v4395 = vld [vmem:[%s3 + $0xf8] sm:$0xf]
    %v4396 = vld [vmem:[%s3 + $0xfc] sm:$0xf]
    %v4397 = vld [vmem:[%s3 + $0x100] sm:$0xf]
    %v4398 = vld [vmem:[%s3 + $0x104] sm:$0xf]
    %v4399 = vld [vmem:[%s3 + $0x108] sm:$0xf]
    %v4400 = vld [vmem:[%s3 + $0x10c] sm:$0xf]
    %v4401 = vld [vmem:[%s3 + $0x110] sm:$0xf]
    %v4402 = vld [vmem:[%s3 + $0x114] sm:$0xf]
    %v4403 = vld [vmem:[%s3 + $0x118] sm:$0xf]
    %v4404 = vld [vmem:[%s3 + $0x11c] sm:$0xf]
    %v4405 = vld [vmem:[%s3 + $0x120] sm:$0xf]
    %v4406 = vld [vmem:[%s3 + $0x124] sm:$0xf]
    %v4407 = vld [vmem:[%s3 + $0x128] sm:$0xf]
    %v4408 = vld [vmem:[%s3 + $0x12c] sm:$0xf]
    %v4409 = vld [vmem:[%s3 + $0x130] sm:$0xf]
    %v4410 = vld [vmem:[%s3 + $0x134] sm:$0xf]
    %v4411 = vld [vmem:[%s3 + $0x138] sm:$0xf]
    %v4412 = vld [vmem:[%s3 + $0x13c] sm:$0xf]
    %v4413 = vld [vmem:[%s3 + $0x140] sm:$0xf]
    %v4414 = vld [vmem:[%s3 + $0x144] sm:$0xf]
    %v4415 = vld [vmem:[%s3 + $0x148] sm:$0xf]
    %v4416 = vld [vmem:[%s3 + $0x14c] sm:$0xf]
    %v4417 = vld [vmem:[%s3 + $0x150] sm:$0xf]
    %v4418 = vld [vmem:[%s3 + $0x154] sm:$0xf]
    %v4419 = vld [vmem:[%s3 + $0x158] sm:$0xf]
    %v4420 = vld [vmem:[%s3 + $0x15c] sm:$0xf]
    %v4421 = vld [vmem:[%s3 + $0x160] sm:$0xf]
    %v4422 = vld [vmem:[%s3 + $0x164] sm:$0xf]
    %v4423 = vld [vmem:[%s3 + $0x168] sm:$0xf]
    %v4424 = vld [vmem:[%s3 + $0x16c] sm:$0xf]
    %v4425 = vld [vmem:[%s3 + $0x170] sm:$0xf]
    %v4426 = vld [vmem:[%s3 + $0x174] sm:$0xf]
    %v4427 = vld [vmem:[%s3 + $0x178] sm:$0xf]
    %v4428 = vld [vmem:[%s3 + $0x17c] sm:$0xf]
    %v4429 = vld [vmem:[#allocation8] sm:$0x1]
    %v4431 = vlaneseq
    %v4432 = vshrl.u32 %v4431, 7
    %v4433 = vsub.s32 0, %v4432
    %v4434 = vrot.slane %v4429, %v4433
    %v4532 = vunpack.c.l.b16 %v4333
    %v4533 = vunpack.c.l.b16 %v4334
    %v4534 = vunpack.c.l.b16 %v4335
    %v4535 = vunpack.c.l.b16 %v4336
    %v4536 = vunpack.c.l.b16 %v4337
    %v4537 = vunpack.c.l.b16 %v4338
    %v4538 = vunpack.c.l.b16 %v4339
    %v4539 = vunpack.c.l.b16 %v4340
    %v4540 = vunpack.c.l.b16 %v4341
    %v4541 = vunpack.c.l.b16 %v4342
    %v4542 = vunpack.c.l.b16 %v4343
    %v4543 = vunpack.c.l.b16 %v4344
    %v4544 = vunpack.c.l.b16 %v4345
    %v4545 = vunpack.c.l.b16 %v4346
    %v4546 = vunpack.c.l.b16 %v4347
    %v4547 = vunpack.c.l.b16 %v4348
    %v4548 = vunpack.c.l.b16 %v4349
    %v4549 = vunpack.c.l.b16 %v4350
    %v4550 = vunpack.c.l.b16 %v4351
    %v4551 = vunpack.c.l.b16 %v4352
    %v4552 = vunpack.c.l.b16 %v4353
    %v4553 = vunpack.c.l.b16 %v4354
    %v4554 = vunpack.c.l.b16 %v4355
    %v4555 = vunpack.c.l.b16 %v4356
    %v4556 = vunpack.c.l.b16 %v4357
    %v4557 = vunpack.c.l.b16 %v4358
    %v4558 = vunpack.c.l.b16 %v4359
    %v4559 = vunpack.c.l.b16 %v4360
    %v4560 = vunpack.c.l.b16 %v4361
    %v4561 = vunpack.c.l.b16 %v4362
    %v4562 = vunpack.c.l.b16 %v4363
    %v4563 = vunpack.c.l.b16 %v4364
    %v4564 = vunpack.c.l.b16 %v4365
    %v4565 = vunpack.c.l.b16 %v4366
    %v4566 = vunpack.c.l.b16 %v4367
    %v4567 = vunpack.c.l.b16 %v4368
    %v4568 = vunpack.c.l.b16 %v4369
    %v4569 = vunpack.c.l.b16 %v4370
    %v4570 = vunpack.c.l.b16 %v4371
    %v4571 = vunpack.c.l.b16 %v4372
    %v4572 = vunpack.c.l.b16 %v4373
    %v4573 = vunpack.c.l.b16 %v4374
    %v4574 = vunpack.c.l.b16 %v4375
    %v4575 = vunpack.c.l.b16 %v4376
    %v4576 = vunpack.c.l.b16 %v4377
    %v4577 = vunpack.c.l.b16 %v4378
    %v4578 = vunpack.c.l.b16 %v4379
    %v4579 = vunpack.c.l.b16 %v4380
    %v4580 = vunpack.c.l.b16 %v4381
    %v4581 = vunpack.c.l.b16 %v4382
    %v4582 = vunpack.c.l.b16 %v4383
    %v4583 = vunpack.c.l.b16 %v4384
    %v4584 = vunpack.c.l.b16 %v4385
    %v4585 = vunpack.c.l.b16 %v4386
    %v4586 = vunpack.c.l.b16 %v4387
    %v4587 = vunpack.c.l.b16 %v4388
    %v4588 = vunpack.c.l.b16 %v4389
    %v4589 = vunpack.c.l.b16 %v4390
    %v4590 = vunpack.c.l.b16 %v4391
    %v4591 = vunpack.c.l.b16 %v4392
    %v4592 = vunpack.c.l.b16 %v4393
    %v4593 = vunpack.c.l.b16 %v4394
    %v4594 = vunpack.c.l.b16 %v4395
    %v4595 = vunpack.c.l.b16 %v4396
    %v4596 = vunpack.c.l.b16 %v4397
    %v4597 = vunpack.c.l.b16 %v4398
    %v4598 = vunpack.c.l.b16 %v4399
    %v4599 = vunpack.c.l.b16 %v4400
    %v4600 = vunpack.c.l.b16 %v4401
    %v4601 = vunpack.c.l.b16 %v4402
    %v4602 = vunpack.c.l.b16 %v4403
    %v4603 = vunpack.c.l.b16 %v4404
    %v4604 = vunpack.c.l.b16 %v4405
    %v4605 = vunpack.c.l.b16 %v4406
    %v4606 = vunpack.c.l.b16 %v4407
    %v4607 = vunpack.c.l.b16 %v4408
    %v4608 = vunpack.c.l.b16 %v4409
    %v4609 = vunpack.c.l.b16 %v4410
    %v4610 = vunpack.c.l.b16 %v4411
    %v4611 = vunpack.c.l.b16 %v4412
    %v4612 = vunpack.c.l.b16 %v4413
    %v4613 = vunpack.c.l.b16 %v4414
    %v4614 = vunpack.c.l.b16 %v4415
    %v4615 = vunpack.c.l.b16 %v4416
    %v4616 = vunpack.c.l.b16 %v4417
    %v4617 = vunpack.c.l.b16 %v4418
    %v4618 = vunpack.c.l.b16 %v4419
    %v4619 = vunpack.c.l.b16 %v4420
    %v4620 = vunpack.c.l.b16 %v4421
    %v4621 = vunpack.c.l.b16 %v4422
    %v4622 = vunpack.c.l.b16 %v4423
    %v4623 = vunpack.c.l.b16 %v4424
    %v4624 = vunpack.c.l.b16 %v4425
    %v4625 = vunpack.c.l.b16 %v4426
    %v4626 = vunpack.c.l.b16 %v4427
    %v4627 = vunpack.c.l.b16 %v4428
    %v4628 = vpack.c.b16 %v4533, %v4532
    %v4629 = vpack.c.b16 %v4535, %v4534
    %v4630 = vpack.c.b16 %v4537, %v4536
    %v4631 = vpack.c.b16 %v4539, %v4538
    %v4632 = vpack.c.b16 %v4541, %v4540
    %v4633 = vpack.c.b16 %v4543, %v4542
    %v4634 = vpack.c.b16 %v4545, %v4544
    %v4635 = vpack.c.b16 %v4547, %v4546
    %v4636 = vpack.c.b16 %v4549, %v4548
    %v4637 = vpack.c.b16 %v4551, %v4550
    %v4638 = vpack.c.b16 %v4553, %v4552
    %v4639 = vpack.c.b16 %v4555, %v4554
    %v4640 = vpack.c.b16 %v4557, %v4556
    %v4641 = vpack.c.b16 %v4559, %v4558
    %v4642 = vpack.c.b16 %v4561, %v4560
    %v4643 = vpack.c.b16 %v4563, %v4562
    %v4644 = vpack.c.b16 %v4565, %v4564
    %v4645 = vpack.c.b16 %v4567, %v4566
    %v4646 = vpack.c.b16 %v4569, %v4568
    %v4647 = vpack.c.b16 %v4571, %v4570
    %v4648 = vpack.c.b16 %v4573, %v4572
    %v4649 = vpack.c.b16 %v4575, %v4574
    %v4650 = vpack.c.b16 %v4577, %v4576
    %v4651 = vpack.c.b16 %v4579, %v4578
    %v4652 = vpack.c.b16 %v4581, %v4580
    %v4653 = vpack.c.b16 %v4583, %v4582
    %v4654 = vpack.c.b16 %v4585, %v4584
    %v4655 = vpack.c.b16 %v4587, %v4586
    %v4656 = vpack.c.b16 %v4589, %v4588
    %v4657 = vpack.c.b16 %v4591, %v4590
    %v4658 = vpack.c.b16 %v4593, %v4592
    %v4659 = vpack.c.b16 %v4595, %v4594
    %v4660 = vpack.c.b16 %v4597, %v4596
    %v4661 = vpack.c.b16 %v4599, %v4598
    %v4662 = vpack.c.b16 %v4601, %v4600
    %v4663 = vpack.c.b16 %v4603, %v4602
    %v4664 = vpack.c.b16 %v4605, %v4604
    %v4665 = vpack.c.b16 %v4607, %v4606
    %v4666 = vpack.c.b16 %v4609, %v4608
    %v4667 = vpack.c.b16 %v4611, %v4610
    %v4668 = vpack.c.b16 %v4613, %v4612
    %v4669 = vpack.c.b16 %v4615, %v4614
    %v4670 = vpack.c.b16 %v4617, %v4616
    %v4671 = vpack.c.b16 %v4619, %v4618
    %v4672 = vpack.c.b16 %v4621, %v4620
    %v4673 = vpack.c.b16 %v4623, %v4622
    %v4674 = vpack.c.b16 %v4625, %v4624
    %v4675 = vpack.c.b16 %v4627, %v4626
    %4724 = vmatprep.subr.bf16.mxu0 0
    %4725 = vmatpush1.bf16.msra.mxu0 %v4628
    %4726 = vmatprep.subr.bf16.mxu0 0
    %4727 = vmatpush1.bf16.msra.mxu0 %v4629
    %4728 = vmatprep.subr.bf16.mxu0 0
    %4729 = vmatpush1.bf16.msra.mxu0 %v4630
    %4730 = vmatprep.subr.bf16.mxu0 0
    %4731 = vmatpush1.bf16.msra.mxu0 %v4631
    %4732 = vmatprep.subr.bf16.mxu0 0
    %4733 = vmatpush1.bf16.msra.mxu0 %v4632
    %4734 = vmatprep.subr.bf16.mxu0 0
    %4735 = vmatpush1.bf16.msra.mxu0 %v4633
    %4736 = vmatprep.subr.bf16.mxu0 0
    %4737 = vmatpush1.bf16.msra.mxu0 %v4634
    %4738 = vmatprep.subr.bf16.mxu0 0
    %4739 = vmatpush1.bf16.msra.mxu0 %v4635
    %4740 = vmatprep.subr.bf16.mxu0 0
    %4741 = vmatpush1.bf16.msra.mxu0 %v4636
    %4742 = vmatprep.subr.bf16.mxu0 0
    %4743 = vmatpush1.bf16.msra.mxu0 %v4637
    %4744 = vmatprep.subr.bf16.mxu0 0
    %4745 = vmatpush1.bf16.msra.mxu0 %v4638
    %4746 = vmatprep.subr.bf16.mxu0 0
    %4747 = vmatpush1.bf16.msra.mxu0 %v4639
    %4748 = vmatprep.subr.bf16.mxu0 0
    %4749 = vmatpush1.bf16.msra.mxu0 %v4640
    %4750 = vmatprep.subr.bf16.mxu0 0
    %4751 = vmatpush1.bf16.msra.mxu0 %v4641
    %4752 = vmatprep.subr.bf16.mxu0 0
    %4753 = vmatpush1.bf16.msra.mxu0 %v4642
    %4754 = vmatprep.subr.bf16.mxu0 0
    %4755 = vmatpush1.bf16.msra.mxu0 %v4643
    %4756 = vmatprep.mubr.bf16.mxu0 %v4328
    %4757 = vmatmul.mubr.bf16.gmra.mrb[0].mxu0 %v4327
    %v4758 = vpop.f32.mrb[0].mxu0
    %v4759 = vadd.f32 %v4434, %v4758
    %v4760 = vpop.f32.mrb[0].mxu0
    %v4761 = vpop.f32.mrb[0].mxu0
    %v4762 = vpop.f32.mrb[0].mxu0
    %4763 = vdwg.mxu0
    %4764 = vmatprep.subr.bf16.mxu0 0
    %4765 = vmatpush1.bf16.msra.mxu0 %v4644
    %4766 = vmatprep.subr.bf16.mxu0 0
    %4767 = vmatpush1.bf16.msra.mxu0 %v4645
    %4768 = vmatprep.subr.bf16.mxu0 0
    %4769 = vmatpush1.bf16.msra.mxu0 %v4646
    %4770 = vmatprep.subr.bf16.mxu0 0
    %4771 = vmatpush1.bf16.msra.mxu0 %v4647
    %4772 = vmatprep.subr.bf16.mxu0 0
    %4773 = vmatpush1.bf16.msra.mxu0 %v4648
    %4774 = vmatprep.subr.bf16.mxu0 0
    %4775 = vmatpush1.bf16.msra.mxu0 %v4649
    %4776 = vmatprep.subr.bf16.mxu0 0
    %4777 = vmatpush1.bf16.msra.mxu0 %v4650
    %4778 = vmatprep.subr.bf16.mxu0 0
    %4779 = vmatpush1.bf16.msra.mxu0 %v4651
    %4780 = vmatprep.subr.bf16.mxu0 0
    %4781 = vmatpush1.bf16.msra.mxu0 %v4652
    %4782 = vmatprep.subr.bf16.mxu0 0
    %4783 = vmatpush1.bf16.msra.mxu0 %v4653
    %4784 = vmatprep.subr.bf16.mxu0 0
    %4785 = vmatpush1.bf16.msra.mxu0 %v4654
    %4786 = vmatprep.subr.bf16.mxu0 0
    %4787 = vmatpush1.bf16.msra.mxu0 %v4655
    %4788 = vmatprep.subr.bf16.mxu0 0
    %4789 = vmatpush1.bf16.msra.mxu0 %v4656
    %4790 = vmatprep.subr.bf16.mxu0 0
    %4791 = vmatpush1.bf16.msra.mxu0 %v4657
    %4792 = vmatprep.subr.bf16.mxu0 0
    %4793 = vmatpush1.bf16.msra.mxu0 %v4658
    %4794 = vmatprep.subr.bf16.mxu0 0
    %4795 = vmatpush1.bf16.msra.mxu0 %v4659
    %4796 = vmatprep.mubr.bf16.mxu0 %v4330
    %4797 = vmatmul.mubr.bf16.gmra.mrb[0].mxu0 %v4329
    %v4798 = vpop.f32.mrb[0].mxu0
    %v4799 = vadd.f32 %v4759, %v4798
    %v4800 = vpop.f32.mrb[0].mxu0
    %v4801 = vpop.f32.mrb[0].mxu0
    %v4802 = vpop.f32.mrb[0].mxu0
    %4803 = vdwg.mxu0
    %4804 = vmatprep.subr.bf16.mxu0 0
    %4805 = vmatpush1.bf16.msra.mxu0 %v4660
    %4806 = vmatprep.subr.bf16.mxu0 0
    %4807 = vmatpush1.bf16.msra.mxu0 %v4661
    %4808 = vmatprep.subr.bf16.mxu0 0
    %4809 = vmatpush1.bf16.msra.mxu0 %v4662
    %4810 = vmatprep.subr.bf16.mxu0 0
    %4811 = vmatpush1.bf16.msra.mxu0 %v4663
    %4812 = vmatprep.subr.bf16.mxu0 0
    %4813 = vmatpush1.bf16.msra.mxu0 %v4664
    %4814 = vmatprep.subr.bf16.mxu0 0
    %4815 = vmatpush1.bf16.msra.mxu0 %v4665
    %4816 = vmatprep.subr.bf16.mxu0 0
    %4817 = vmatpush1.bf16.msra.mxu0 %v4666
    %4818 = vmatprep.subr.bf16.mxu0 0
    %4819 = vmatpush1.bf16.msra.mxu0 %v4667
    %4820 = vmatprep.subr.bf16.mxu0 0
    %4821 = vmatpush1.bf16.msra.mxu0 %v4668
    %4822 = vmatprep.subr.bf16.mxu0 0
    %4823 = vmatpush1.bf16.msra.mxu0 %v4669
    %4824 = vmatprep.subr.bf16.mxu0 0
    %4825 = vmatpush1.bf16.msra.mxu0 %v4670
    %4826 = vmatprep.subr.bf16.mxu0 0
    %4827 = vmatpush1.bf16.msra.mxu0 %v4671
    %4828 = vmatprep.subr.bf16.mxu0 0
    %4829 = vmatpush1.bf16.msra.mxu0 %v4672
    %4830 = vmatprep.subr.bf16.mxu0 0
    %4831 = vmatpush1.bf16.msra.mxu0 %v4673
    %4832 = vmatprep.subr.bf16.mxu0 0
    %4833 = vmatpush1.bf16.msra.mxu0 %v4674
    %4834 = vmatprep.subr.bf16.mxu0 0
    %4835 = vmatpush1.bf16.msra.mxu0 %v4675
    %4836 = vmatprep.mubr.bf16.mxu0 %v4332
    %4837 = vmatmul.mubr.bf16.gmra.mrb[0].mxu0 %v4331
    %v4838 = vpop.f32.mrb[0].mxu0
    %v4839 = vadd.f32 %v4799, %v4838
    %v4840 = vpop.f32.mrb[0].mxu0
    %v4841 = vpop.f32.mrb[0].mxu0
    %v4842 = vpop.f32.mrb[0].mxu0
    %4843 = vdwg.mxu0
    %vm4844 = vcmask 64512
    %4845 = vst.msk [vmem:[#allocation10] sm:$0xff] %vm4844, %v4839
    // Predicated region
    $region38: #{tpu_custom_call.1} parent=1 // pred_check
      _
    $region39: #{tpu_custom_call.1} parent=1 // pred_check_branch
      %4847 = sbr.rel (0) target = $region41
    $region40: #{tpu_custom_call.1} parent=1 // pred_region
      %s4849 = ssub.s32 128, 128
      %4850 = vsyncadd [#allocation4], %s4849
      %s4852 = sshll.u32 [#allocation10], 4
      %s4853 = int_to_ptr.vmem [resolvable:$true] %s4852
      %4855 = dma.vmem_to_hbm [thread:$0]  %s4853, 128, %s5, [#allocation4]
    $region41: #{tpu_custom_call.1} parent=1 // pred_fallthru
      _
    // Predicated region
    $region42: #{tpu_custom_call.1} parent=1 // pred_check
      _
    $region43: #{tpu_custom_call.1} parent=1 // pred_check_branch
      %4857 = sbr.rel (0) target = $region45
    $region44: #{tpu_custom_call.1} parent=1 // pred_region
      %4858 = dma.done [#allocation4], 128
    $region45: #{tpu_custom_call.1} parent=1 // pred_fallthru
      _
    %4859 = vsyncpa [#allocation3], 1
    %4860 = vsyncpa [#allocation6], 1
    %4861 = vsyncpa [#allocation9], 1
    %4862 = vsyncpa [#allocation4], 1

</llo_original>
